<compile_context>
chip_gen: v5e
topology: v5e:2x2
jax: 0.10.0
libtpu: 0.0.40
codegen_flags: <defaults>
</compile_context>

<pallas_src>
import jax
import jax.numpy as jnp
from jax.experimental import pallas as pl
from jax.experimental.pallas import tpu as pltpu

INPUT_DIM = 1376            # divisible by 8; used as a full-extent block dim (no padding)
HIDDEN_DIMS = (512, 384, 256)
OUTPUT_DIM = 14
BN_EPS = 1e-5

PADDED_OUT = 128            # lane-dense output slab; slice [:, :14] outside the kernel
TILE_B_MAX = 1024           # batch-tile upper bound (VMEM-safe on v5e / v6e / v7x)
SPLIT_THRESHOLD = 512       # batches >= this get >=2 grid steps (v7x megacore sharding)


def _round_up(v, m):
    return (v + m - 1) // m * m


def _choose_tile_b(batch):
    """Pick an 8-aligned batch tile.

    Tiles are balanced (minimal zero-row padding), capped at TILE_B_MAX, and large
    batches are forced onto >=2 grid steps so the "parallel" batch axis can shard
    across both TensorCores on v7x.  v5e/v6e are single-TC, so the split is free.
    """
    b8 = _round_up(batch, 8)
    n_tiles = pl.cdiv(b8, TILE_B_MAX)
    if n_tiles == 1 and b8 >= SPLIT_THRESHOLD:
        n_tiles = 2
    return _round_up(pl.cdiv(b8, n_tiles), 8)


# ----------------------------------------------------------------------------- kernel
def _mlp_kernel(x_ref, w0_ref, b0_ref, w1_ref, b1_ref,
                w2_ref, b2_ref, w3_ref, b3_ref, o_ref):
    # All BN affines are pre-folded into (w, b); dropout is identity in eval mode.
    # Input arrives in its HBM dtype (f32) and is cast to bf16 in-kernel (VPU work,
    # hidden under the first matmul).  All dots feed the MXU with f32 accumulation;
    # bias add / ReLU stay in f32 (v5e VPU has no bf16 arithmetic).
    x = x_ref[...].astype(jnp.bfloat16)

    h = jnp.dot(x, w0_ref[...], preferred_element_type=jnp.float32)
    h = jnp.maximum(h + b0_ref[...], 0.0).astype(jnp.bfloat16)

    h = jnp.dot(h, w1_ref[...], preferred_element_type=jnp.float32)
    h = jnp.maximum(h + b1_ref[...], 0.0).astype(jnp.bfloat16)

    h = jnp.dot(h, w2_ref[...], preferred_element_type=jnp.float32)
    h = jnp.maximum(h + b2_ref[...], 0.0).astype(jnp.bfloat16)

    out = jnp.dot(h, w3_ref[...], preferred_element_type=jnp.float32) + b3_ref[...]
    o_ref[...] = out.astype(o_ref.dtype)   # bf16, lane-dense 128-wide writeback


# ---------------------------------------------------------------------- param helpers
def _fold_bn(gamma, beta, running_mean, running_var, eps=BN_EPS):
    """BatchNorm1d eval-mode -> per-feature (scale, shift), 1-D."""
    scale = gamma / jnp.sqrt(running_var + eps)
    shift = beta - running_mean * scale
    return scale, shift


def init_params(key):
    """Deterministic synthetic parameters matching the PyTorch module's shapes."""
    dims = [INPUT_DIM, *HIDDEN_DIMS, OUTPUT_DIM]
    params = {}
    keys = jax.random.split(key, 32)
    ki = iter(range(32))

    # BatchNorm params: input BN (bn0) + bn1..bn3 (over dims[0..3])
    for li, d in enumerate(dims[:4]):
        params[f"bn{li}_gamma"] = 1.0 + 0.1 * jax.random.normal(keys[next(ki)], (d,), jnp.float32)
        params[f"bn{li}_beta"] = 0.1 * jax.random.normal(keys[next(ki)], (d,), jnp.float32)
        params[f"bn{li}_mean"] = 0.1 * jax.random.normal(keys[next(ki)], (d,), jnp.float32)
        params[f"bn{li}_var"] = jax.random.uniform(
            keys[next(ki)], (d,), jnp.float32, minval=0.5, maxval=1.5
        )

    # Linear params, stored pre-transposed as [D_in, D_out]
    for li in range(4):
        d_in, d_out = dims[li], dims[li + 1]
        params[f"w{li}"] = 0.02 * jax.random.normal(keys[next(ki)], (d_in, d_out), jnp.float32)
        params[f"b{li}"] = 0.02 * jax.random.normal(keys[next(ki)], (d_out,), jnp.float32)
    return params


def prepare_params(params):
    """One-time host-side prep: fold all BNs into weights, pad output lanes, cast bf16."""
    s0, t0 = _fold_bn(params["bn0_gamma"], params["bn0_beta"], params["bn0_mean"], params["bn0_var"])
    s1, t1 = _fold_bn(params["bn1_gamma"], params["bn1_beta"], params["bn1_mean"], params["bn1_var"])
    s2, t2 = _fold_bn(params["bn2_gamma"], params["bn2_beta"], params["bn2_mean"], params["bn2_var"])
    s3, t3 = _fold_bn(params["bn3_gamma"], params["bn3_beta"], params["bn3_mean"], params["bn3_var"])

    # layer 1: (input BN) -> fc1 -> bn1
    w0 = params["w0"] * s0[:, None]               # input BN scale folds into rows
    b0 = t0 @ params["w0"] + params["b0"]         # input BN shift through fc1
    w0 = w0 * s1[None, :]                         # bn1 scale folds into columns
    b0 = b0 * s1 + t1

    # layer 2: fc2 -> bn2
    w1 = params["w1"] * s2[None, :]
    b1 = params["b1"] * s2 + t2

    # layer 3: fc3 -> bn3
    w2 = params["w2"] * s3[None, :]
    b2 = params["b2"] * s3 + t3

    # output layer (no BN); pad output lanes 14 -> 128 for a lane-dense store
    w3 = jnp.pad(params["w3"], ((0, 0), (0, PADDED_OUT - OUTPUT_DIM)))
    b3 = jnp.pad(params["b3"], (0, PADDED_OUT - OUTPUT_DIM))

    return {
        "w0": w0.astype(jnp.bfloat16), "b0": b0[None, :].astype(jnp.float32),
        "w1": w1.astype(jnp.bfloat16), "b1": b1[None, :].astype(jnp.float32),
        "w2": w2.astype(jnp.bfloat16), "b2": b2[None, :].astype(jnp.float32),
        "w3": w3.astype(jnp.bfloat16), "b3": b3[None, :].astype(jnp.float32),
    }


# --------------------------------------------------------------------------- forward
@jax.jit
def chest_xray_classifier_forward(x, prepared):
    """Eval-mode forward pass of ChestXrayClassifier via one Pallas kernel call."""
    B = x.shape[0]
    tile_b = _choose_tile_b(B)
    b_pad = tile_b * pl.cdiv(B, tile_b)

    # Only pad batch rows when necessary; features stay at 1376 (full-extent block
    # dim) and the bf16 cast happens in-kernel, so x makes exactly one HBM pass.
    xp = x if b_pad == B else jnp.pad(x, ((0, b_pad - B), (0, 0)))

    h0, h1, h2 = HIDDEN_DIMS

    x_spec = pl.BlockSpec((tile_b, INPUT_DIM), lambda i: (i, 0))
    out_spec = pl.BlockSpec((tile_b, PADDED_OUT), lambda i: (i, 0))

    def const_spec(shape):
        # whole array, same block every grid step -> stays VMEM-resident
        return pl.BlockSpec(shape, lambda i: (0, 0))

    out = pl.pallas_call(
        _mlp_kernel,
        out_shape=jax.ShapeDtypeStruct((b_pad, PADDED_OUT), jnp.bfloat16),
        grid=(b_pad // tile_b,),
        in_specs=[
            x_spec,
            const_spec((INPUT_DIM, h0)), const_spec((1, h0)),
            const_spec((h0, h1)),        const_spec((1, h1)),
            const_spec((h1, h2)),        const_spec((1, h2)),
            const_spec((h2, PADDED_OUT)), const_spec((1, PADDED_OUT)),
        ],
        out_specs=out_spec,
        compiler_params=pltpu.CompilerParams(
            dimension_semantics=("parallel",),          # megacore-shard the batch axis
            vmem_limit_bytes=48 * 1024 * 1024,          # headroom for 1024-row f32 x tiles
        ),
    )(
        xp,
        prepared["w0"], prepared["b0"],
        prepared["w1"], prepared["b1"],
        prepared["w2"], prepared["b2"],
        prepared["w3"], prepared["b3"],
    )
    return out[:B, :OUTPUT_DIM].astype(jnp.float32)


# ------------------------------------------------------------------------- reference
def _reference_forward(x, params):
    """Plain-JAX f32 reference with the same eval-mode semantics."""
    def bn(h, li):
        s, t = _fold_bn(
            params[f"bn{li}_gamma"], params[f"bn{li}_beta"],
            params[f"bn{li}_mean"], params[f"bn{li}_var"],
        )
        return h * s + t

    h = bn(x, 0)
    h = h @ params["w0"] + params["b0"]
    h = jnp.maximum(bn(h, 1), 0.0)
    h = h @ params["w1"] + params["b1"]
    h = jnp.maximum(bn(h, 2), 0.0)
    h = h @ params["w2"] + params["b2"]
    h = jnp.maximum(bn(h, 3), 0.0)
    h = h @ params["w3"] + params["b3"]
    return h


if __name__ == "__main__":
    key = jax.random.PRNGKey(0)
    pkey, xkey = jax.random.split(key)

    params = init_params(pkey)
    prepared = prepare_params(params)

    # batch=8 is the basic path; batch=20 exercises the batch-row padding path.
    for batch in (8, 20):
        x = jax.random.normal(jax.random.fold_in(xkey, batch), (batch, INPUT_DIM), jnp.float32)

        out = chest_xray_classifier_forward(x, prepared)
        out = jax.block_until_ready(out)
        assert out.shape == (batch, OUTPUT_DIM), out.shape

        ref = _reference_forward(x, params)
        max_err = float(jnp.max(jnp.abs(out - ref)))
        assert jnp.allclose(out, ref, atol=2e-2, rtol=2e-2), (
            f"mismatch vs ref (batch={batch}), max abs err={max_err}"
        )

    # TODO(synk): training-mode Dropout (prng masking) and batch-statistics BatchNorm
    # are not implemented; this kernel covers eval-mode inference only.
    print("KERNEL_OK")
</pallas_src>

<mosaic_0001>
module attributes {stable_mosaic.version = 11 : i64} {
  func.func @_mlp_kernel(%arg0: i32, %arg1: memref<8x1376xf32, #tpu.memory_space<vmem>>, %arg2: memref<1376x512xbf16, #tpu.memory_space<vmem>>, %arg3: memref<1x512xf32, #tpu.memory_space<vmem>>, %arg4: memref<512x384xbf16, #tpu.memory_space<vmem>>, %arg5: memref<1x384xf32, #tpu.memory_space<vmem>>, %arg6: memref<384x256xbf16, #tpu.memory_space<vmem>>, %arg7: memref<1x256xf32, #tpu.memory_space<vmem>>, %arg8: memref<256x128xbf16, #tpu.memory_space<vmem>>, %arg9: memref<1x128xf32, #tpu.memory_space<vmem>>, %arg10: memref<8x128xbf16, #tpu.memory_space<vmem>>) attributes {dimension_semantics = [#tpu.dimension_semantics<parallel>], iteration_bounds = array<i64: 1>, scalar_prefetch = 0 : i64, scratch_operands = 0 : i64, tpu.core_type = #tpu.core_type<tc>, window_params = [{transform_indices = @transform_0, window_bounds = array<i64: 8, 1376>}, {pipeline_mode = #tpu.pipeline_mode<synchronous>, transform_indices = @transform_1, window_bounds = array<i64: 1376, 512>}, {pipeline_mode = #tpu.pipeline_mode<synchronous>, transform_indices = @transform_2, window_bounds = array<i64: 1, 512>}, {pipeline_mode = #tpu.pipeline_mode<synchronous>, transform_indices = @transform_3, window_bounds = array<i64: 512, 384>}, {pipeline_mode = #tpu.pipeline_mode<synchronous>, transform_indices = @transform_4, window_bounds = array<i64: 1, 384>}, {pipeline_mode = #tpu.pipeline_mode<synchronous>, transform_indices = @transform_5, window_bounds = array<i64: 384, 256>}, {pipeline_mode = #tpu.pipeline_mode<synchronous>, transform_indices = @transform_6, window_bounds = array<i64: 1, 256>}, {pipeline_mode = #tpu.pipeline_mode<synchronous>, transform_indices = @transform_7, window_bounds = array<i64: 256, 128>}, {pipeline_mode = #tpu.pipeline_mode<synchronous>, transform_indices = @transform_8, window_bounds = array<i64: 1, 128>}, {transform_indices = @transform_9, window_bounds = array<i64: 8, 128>}]} {
    %c0 = arith.constant 0 : index
    %c0_0 = arith.constant 0 : index
    %0 = vector.load %arg1[%c0, %c0_0] : memref<8x1376xf32, #tpu.memory_space<vmem>>, vector<8x1376xf32>
    %1 = arith.truncf %0 : vector<8x1376xf32> to vector<8x1376xbf16>
    %c0_1 = arith.constant 0 : index
    %c0_2 = arith.constant 0 : index
    %2 = vector.load %arg2[%c0_1, %c0_2] : memref<1376x512xbf16, #tpu.memory_space<vmem>>, vector<1376x512xbf16>
    %cst = arith.constant dense<0.000000e+00> : vector<8x512xf32>
    %3 = tpu.matmul %1, %2, %cst {dimension_numbers = #tpu.dot_dimension_numbers<[1], [0], [0], [1], [0, 0, 1, 1], [], []>} : vector<8x1376xbf16>, vector<1376x512xbf16>, vector<8x512xf32> -> vector<8x512xf32>
    %c0_3 = arith.constant 0 : index
    %c0_4 = arith.constant 0 : index
    %4 = vector.load %arg3[%c0_3, %c0_4] : memref<1x512xf32, #tpu.memory_space<vmem>>, vector<1x512xf32>
    %5 = vector.broadcast %4 : vector<1x512xf32> to vector<8x512xf32>
    %6 = arith.addf %3, %5 : vector<8x512xf32>
    %cst_5 = arith.constant 0.000000e+00 : f32
    %7 = vector.broadcast %cst_5 : f32 to vector<8x512xf32>
    %8 = arith.maximumf %6, %7 : vector<8x512xf32>
    %9 = arith.truncf %8 : vector<8x512xf32> to vector<8x512xbf16>
    %c0_6 = arith.constant 0 : index
    %c0_7 = arith.constant 0 : index
    %10 = vector.load %arg4[%c0_6, %c0_7] : memref<512x384xbf16, #tpu.memory_space<vmem>>, vector<512x384xbf16>
    %cst_8 = arith.constant dense<0.000000e+00> : vector<8x384xf32>
    %11 = tpu.matmul %9, %10, %cst_8 {dimension_numbers = #tpu.dot_dimension_numbers<[1], [0], [0], [1], [0, 0, 1, 1], [], []>} : vector<8x512xbf16>, vector<512x384xbf16>, vector<8x384xf32> -> vector<8x384xf32>
    %c0_9 = arith.constant 0 : index
    %c0_10 = arith.constant 0 : index
    %12 = vector.load %arg5[%c0_9, %c0_10] : memref<1x384xf32, #tpu.memory_space<vmem>>, vector<1x384xf32>
    %13 = vector.broadcast %12 : vector<1x384xf32> to vector<8x384xf32>
    %14 = arith.addf %11, %13 : vector<8x384xf32>
    %cst_11 = arith.constant 0.000000e+00 : f32
    %15 = vector.broadcast %cst_11 : f32 to vector<8x384xf32>
    %16 = arith.maximumf %14, %15 : vector<8x384xf32>
    %17 = arith.truncf %16 : vector<8x384xf32> to vector<8x384xbf16>
    %c0_12 = arith.constant 0 : index
    %c0_13 = arith.constant 0 : index
    %18 = vector.load %arg6[%c0_12, %c0_13] : memref<384x256xbf16, #tpu.memory_space<vmem>>, vector<384x256xbf16>
    %cst_14 = arith.constant dense<0.000000e+00> : vector<8x256xf32>
    %19 = tpu.matmul %17, %18, %cst_14 {dimension_numbers = #tpu.dot_dimension_numbers<[1], [0], [0], [1], [0, 0, 1, 1], [], []>} : vector<8x384xbf16>, vector<384x256xbf16>, vector<8x256xf32> -> vector<8x256xf32>
    %c0_15 = arith.constant 0 : index
    %c0_16 = arith.constant 0 : index
    %20 = vector.load %arg7[%c0_15, %c0_16] : memref<1x256xf32, #tpu.memory_space<vmem>>, vector<1x256xf32>
    %21 = vector.broadcast %20 : vector<1x256xf32> to vector<8x256xf32>
    %22 = arith.addf %19, %21 : vector<8x256xf32>
    %cst_17 = arith.constant 0.000000e+00 : f32
    %23 = vector.broadcast %cst_17 : f32 to vector<8x256xf32>
    %24 = arith.maximumf %22, %23 : vector<8x256xf32>
    %25 = arith.truncf %24 : vector<8x256xf32> to vector<8x256xbf16>
    %c0_18 = arith.constant 0 : index
    %c0_19 = arith.constant 0 : index
    %26 = vector.load %arg8[%c0_18, %c0_19] : memref<256x128xbf16, #tpu.memory_space<vmem>>, vector<256x128xbf16>
    %cst_20 = arith.constant dense<0.000000e+00> : vector<8x128xf32>
    %27 = tpu.matmul %25, %26, %cst_20 {dimension_numbers = #tpu.dot_dimension_numbers<[1], [0], [0], [1], [0, 0, 1, 1], [], []>} : vector<8x256xbf16>, vector<256x128xbf16>, vector<8x128xf32> -> vector<8x128xf32>
    %c0_21 = arith.constant 0 : index
    %c0_22 = arith.constant 0 : index
    %28 = vector.load %arg9[%c0_21, %c0_22] : memref<1x128xf32, #tpu.memory_space<vmem>>, vector<1x128xf32>
    %29 = vector.broadcast %28 : vector<1x128xf32> to vector<8x128xf32>
    %30 = arith.addf %27, %29 : vector<8x128xf32>
    %31 = arith.truncf %30 : vector<8x128xf32> to vector<8x128xbf16>
    %c0_23 = arith.constant 0 : index
    %c0_24 = arith.constant 0 : index
    %32 = vector.load %arg10[%c0_23, %c0_24] : memref<8x128xbf16, #tpu.memory_space<vmem>>, vector<8x128xbf16>
    tpu.vector_store %arg10[%c0_23, %c0_24], %31 {strides = array<i32>} : memref<8x128xbf16, #tpu.memory_space<vmem>>, vector<8x128xbf16>,
    return
  }
  func.func @transform_0(%arg0: i32) -> (i32, i32) {
    %c0_i32 = arith.constant 0 : i32
    %c0_i32_0 = arith.constant 0 : i32
    return %arg0, %c0_i32 : i32, i32
  }
  func.func @transform_1(%arg0: i32) -> (i32, i32) {
    %c0_i32 = arith.constant 0 : i32
    %c0_i32_0 = arith.constant 0 : i32
    %c0_i32_1 = arith.constant 0 : i32
    return %c0_i32, %c0_i32_0 : i32, i32
  }
  func.func @transform_2(%arg0: i32) -> (i32, i32) {
    %c0_i32 = arith.constant 0 : i32
    %c0_i32_0 = arith.constant 0 : i32
    %c0_i32_1 = arith.constant 0 : i32
    return %c0_i32, %c0_i32_0 : i32, i32
  }
  func.func @transform_3(%arg0: i32) -> (i32, i32) {
    %c0_i32 = arith.constant 0 : i32
    %c0_i32_0 = arith.constant 0 : i32
    %c0_i32_1 = arith.constant 0 : i32
    return %c0_i32, %c0_i32_0 : i32, i32
  }
  func.func @transform_4(%arg0: i32) -> (i32, i32) {
    %c0_i32 = arith.constant 0 : i32
    %c0_i32_0 = arith.constant 0 : i32
    %c0_i32_1 = arith.constant 0 : i32
    return %c0_i32, %c0_i32_0 : i32, i32
  }
  func.func @transform_5(%arg0: i32) -> (i32, i32) {
    %c0_i32 = arith.constant 0 : i32
    %c0_i32_0 = arith.constant 0 : i32
    %c0_i32_1 = arith.constant 0 : i32
    return %c0_i32, %c0_i32_0 : i32, i32
  }
  func.func @transform_6(%arg0: i32) -> (i32, i32) {
    %c0_i32 = arith.constant 0 : i32
    %c0_i32_0 = arith.constant 0 : i32
    %c0_i32_1 = arith.constant 0 : i32
    return %c0_i32, %c0_i32_0 : i32, i32
  }
  func.func @transform_7(%arg0: i32) -> (i32, i32) {
    %c0_i32 = arith.constant 0 : i32
    %c0_i32_0 = arith.constant 0 : i32
    %c0_i32_1 = arith.constant 0 : i32
    return %c0_i32, %c0_i32_0 : i32, i32
  }
  func.func @transform_8(%arg0: i32) -> (i32, i32) {
    %c0_i32 = arith.constant 0 : i32
    %c0_i32_0 = arith.constant 0 : i32
    %c0_i32_1 = arith.constant 0 : i32
    return %c0_i32, %c0_i32_0 : i32, i32
  }
  func.func @transform_9(%arg0: i32) -> (i32, i32) {
    %c0_i32 = arith.constant 0 : i32
    %c0_i32_0 = arith.constant 0 : i32
    return %arg0, %c0_i32 : i32, i32
  }
}

</mosaic_0001>

<llo_original>
// kernel: chest_xray_classifier_forward.1
$region0: #{chest_xray_classifier_forward.1}
  #allocation0 [shape = 'u32[]', space=smem, size = 0x4, offset = 0x4, fixed_abs, tag = 'smem constant byte address 0x4 - core index']
  #allocation1 [shape = 'u32[72,128]{1,0:T(1,128)}', space=vmem, size = 0x9000, scoped, tag = 'internal scratch']
  %s0 = inlined_call_operand.hbm [shape: f32[8,1376], index: 0, kind: input, shape index: {}]
  %s1 = inlined_call_operand.hbm [shape: bf16[1376,512], index: 1, kind: input, shape index: {}]
  %s2 = inlined_call_operand.hbm [shape: f32[1,512], index: 2, kind: input, shape index: {}]
  %s3 = inlined_call_operand.hbm [shape: bf16[512,384], index: 3, kind: input, shape index: {}]
  %s4 = inlined_call_operand.hbm [shape: f32[1,384], index: 4, kind: input, shape index: {}]
  %s5 = inlined_call_operand.hbm [shape: bf16[384,256], index: 5, kind: input, shape index: {}]
  %s6 = inlined_call_operand.hbm [shape: f32[1,256], index: 6, kind: input, shape index: {}]
  %s7 = inlined_call_operand.hbm [shape: bf16[256,128], index: 7, kind: input, shape index: {}]
  %s8 = inlined_call_operand.hbm [shape: f32[1,128], index: 8, kind: input, shape index: {}]
  %s9 = inlined_call_operand.vmem [shape: bf16[8,128], index: 9, kind: output, shape index: {}]
  %s10 = sld [smem:[#allocation0]]
  $region82: #{chest_xray_classifier_forward.1} parent=0
    _
  %s12 = ssub.s32 1, %s10
  %s13 = scalar_select 0, %s12, %s10
  $region1: #{chest_xray_classifier_forward.1} parent=0
    #allocation2 [shape = 'u8[45056]{0}', space=vmem, size = 0xb000, scoped, tag = 'input window, operand 0, single buffered']
    #allocation3 [shape = 's32[1]{0}', space=sflag, size = 0x4, scoped, tag = 'scoped memory for chest_xray_classifier_forward.1']
    #allocation4 [shape = 'u8[1409024]{0}', space=vmem, size = 0x158000, scoped, tag = 'input window, operand 1, single buffered']
    #allocation5 [shape = 's32[1]{0}', space=sflag, size = 0x4, scoped, tag = 'scoped memory for chest_xray_classifier_forward.1']
    #allocation6 [shape = 'u8[2048]{0}', space=vmem, size = 0x800, scoped, tag = 'input window, operand 2, single buffered']
    #allocation7 [shape = 'u8[393216]{0}', space=vmem, size = 0x60000, scoped, tag = 'input window, operand 3, single buffered']
    #allocation8 [shape = 's32[1]{0}', space=sflag, size = 0x4, scoped, tag = 'scoped memory for chest_xray_classifier_forward.1']
    #allocation9 [shape = 'u8[1536]{0}', space=vmem, size = 0x800, scoped, tag = 'input window, operand 4, single buffered']
    #allocation10 [shape = 'u8[196608]{0}', space=vmem, size = 0x30000, scoped, tag = 'input window, operand 5, single buffered']
    #allocation11 [shape = 's32[1]{0}', space=sflag, size = 0x4, scoped, tag = 'scoped memory for chest_xray_classifier_forward.1']
    #allocation12 [shape = 'u8[1024]{0}', space=vmem, size = 0x400, scoped, tag = 'input window, operand 6, single buffered']
    #allocation13 [shape = 'u8[65536]{0}', space=vmem, size = 0x10000, scoped, tag = 'input window, operand 7, single buffered']
    #allocation14 [shape = 's32[1]{0}', space=sflag, size = 0x4, scoped, tag = 'scoped memory for chest_xray_classifier_forward.1']
    #allocation15 [shape = 'u8[512]{0}', space=vmem, size = 0x400, scoped, tag = 'input window, operand 8, single buffered']
    %14 = vsyncpa [#allocation3], 0
    %15 = vsyncpa [#allocation5], 0
    %16 = vsyncpa [#allocation8], 0
    %17 = vsyncpa [#allocation11], 0
    %18 = vsyncpa [#allocation14], 0
    // Predicated region
    $region2: #{chest_xray_classifier_forward.1} parent=1 // pred_check
      _
    $region3: #{chest_xray_classifier_forward.1} parent=1 // pred_check_branch
      %20 = sbr.rel (0) target = $region5
    $region4: #{chest_xray_classifier_forward.1} parent=1 // pred_region
      %22 = vsyncadd [#allocation3], 0
      %s24 = sshll.u32 %s0, 4
      %s25 = int_to_ptr.hbm [resolvable:$true] %s24
      %s26 = sshll.u32 [#allocation2], 4
      %s27 = int_to_ptr.vmem [resolvable:$true] %s26
      %29 = dma.hbm_to_vmem [thread:$0]  %s25, 1408, %s27, [#allocation3]
    $region5: #{chest_xray_classifier_forward.1} parent=1 // pred_fallthru
      _
    // Predicated region
    $region6: #{chest_xray_classifier_forward.1} parent=1 // pred_check
      _
    $region7: #{chest_xray_classifier_forward.1} parent=1 // pred_check_branch
      %31 = sbr.rel (0) target = $region9
    $region8: #{chest_xray_classifier_forward.1} parent=1 // pred_region
      %33 = vsyncadd [#allocation5], 0
      %s34 = sshll.u32 %s1, 4
      %s35 = int_to_ptr.hbm [resolvable:$true] %s34
      %s36 = sshll.u32 [#allocation4], 4
      %s37 = int_to_ptr.vmem [resolvable:$true] %s36
      %42 = dma.hbm_to_vmem [thread:$0]  %s35, 44032, %s37, [#allocation5], 256, 256, 16
    $region9: #{chest_xray_classifier_forward.1} parent=1 // pred_fallthru
      _
    // Predicated region
    $region10: #{chest_xray_classifier_forward.1} parent=1 // pred_check
      _
    $region11: #{chest_xray_classifier_forward.1} parent=1 // pred_check_branch
      %44 = sbr.rel (0) target = $region13
    $region12: #{chest_xray_classifier_forward.1} parent=1 // pred_region
      %46 = vsyncadd [#allocation5], 0
      %s48 = sshll.u32 %s2, 4
      %s49 = int_to_ptr.hbm [resolvable:$true] %s48
      %s50 = sshll.u32 [#allocation6], 4
      %s51 = int_to_ptr.vmem [resolvable:$true] %s50
      %53 = dma.hbm_to_vmem [thread:$0]  %s49, 64, %s51, [#allocation5]
    $region13: #{chest_xray_classifier_forward.1} parent=1 // pred_fallthru
      _
    // Predicated region
    $region14: #{chest_xray_classifier_forward.1} parent=1 // pred_check
      _
    $region15: #{chest_xray_classifier_forward.1} parent=1 // pred_check_branch
      %55 = sbr.rel (0) target = $region17
    $region16: #{chest_xray_classifier_forward.1} parent=1 // pred_region
      %57 = vsyncadd [#allocation8], 0
      %s58 = sshll.u32 %s3, 4
      %s59 = int_to_ptr.hbm [resolvable:$true] %s58
      %s60 = sshll.u32 [#allocation7], 4
      %s61 = int_to_ptr.vmem [resolvable:$true] %s60
      %66 = dma.hbm_to_vmem [thread:$0]  %s59, 12288, %s61, [#allocation8], 192, 192, 12
    $region17: #{chest_xray_classifier_forward.1} parent=1 // pred_fallthru
      _
    // Predicated region
    $region18: #{chest_xray_classifier_forward.1} parent=1 // pred_check
      _
    $region19: #{chest_xray_classifier_forward.1} parent=1 // pred_check_branch
      %68 = sbr.rel (0) target = $region21
    $region20: #{chest_xray_classifier_forward.1} parent=1 // pred_region
      %70 = vsyncadd [#allocation8], 0
      %s72 = sshll.u32 %s4, 4
      %s73 = int_to_ptr.hbm [resolvable:$true] %s72
      %s74 = sshll.u32 [#allocation9], 4
      %s75 = int_to_ptr.vmem [resolvable:$true] %s74
      %77 = dma.hbm_to_vmem [thread:$0]  %s73, 48, %s75, [#allocation8]
    $region21: #{chest_xray_classifier_forward.1} parent=1 // pred_fallthru
      _
    // Predicated region
    $region22: #{chest_xray_classifier_forward.1} parent=1 // pred_check
      _
    $region23: #{chest_xray_classifier_forward.1} parent=1 // pred_check_branch
      %79 = sbr.rel (0) target = $region25
    $region24: #{chest_xray_classifier_forward.1} parent=1 // pred_region
      %81 = vsyncadd [#allocation11], 0
      %s82 = sshll.u32 %s5, 4
      %s83 = int_to_ptr.hbm [resolvable:$true] %s82
      %s84 = sshll.u32 [#allocation10], 4
      %s85 = int_to_ptr.vmem [resolvable:$true] %s84
      %90 = dma.hbm_to_vmem [thread:$0]  %s83, 6144, %s85, [#allocation11], 128, 128, 8
    $region25: #{chest_xray_classifier_forward.1} parent=1 // pred_fallthru
      _
    // Predicated region
    $region26: #{chest_xray_classifier_forward.1} parent=1 // pred_check
      _
    $region27: #{chest_xray_classifier_forward.1} parent=1 // pred_check_branch
      %92 = sbr.rel (0) target = $region29
    $region28: #{chest_xray_classifier_forward.1} parent=1 // pred_region
      %94 = vsyncadd [#allocation11], 0
      %s96 = sshll.u32 %s6, 4
      %s97 = int_to_ptr.hbm [resolvable:$true] %s96
      %s98 = sshll.u32 [#allocation12], 4
      %s99 = int_to_ptr.vmem [resolvable:$true] %s98
      %101 = dma.hbm_to_vmem [thread:$0]  %s97, 32, %s99, [#allocation11]
    $region29: #{chest_xray_classifier_forward.1} parent=1 // pred_fallthru
      _
    // Predicated region
    $region30: #{chest_xray_classifier_forward.1} parent=1 // pred_check
      _
    $region31: #{chest_xray_classifier_forward.1} parent=1 // pred_check_branch
      %103 = sbr.rel (0) target = $region33
    $region32: #{chest_xray_classifier_forward.1} parent=1 // pred_region
      %105 = vsyncadd [#allocation14], 0
      %s106 = sshll.u32 %s7, 4
      %s107 = int_to_ptr.hbm [resolvable:$true] %s106
      %s108 = sshll.u32 [#allocation13], 4
      %s109 = int_to_ptr.vmem [resolvable:$true] %s108
      %114 = dma.hbm_to_vmem [thread:$0]  %s107, 2048, %s109, [#allocation14], 64, 64, 4
    $region33: #{chest_xray_classifier_forward.1} parent=1 // pred_fallthru
      _
    // Predicated region
    $region34: #{chest_xray_classifier_forward.1} parent=1 // pred_check
      _
    $region35: #{chest_xray_classifier_forward.1} parent=1 // pred_check_branch
      %116 = sbr.rel (0) target = $region37
    $region36: #{chest_xray_classifier_forward.1} parent=1 // pred_region
      %118 = vsyncadd [#allocation14], 0
      %s120 = sshll.u32 %s8, 4
      %s121 = int_to_ptr.hbm [resolvable:$true] %s120
      %s122 = sshll.u32 [#allocation15], 4
      %s123 = int_to_ptr.vmem [resolvable:$true] %s122
      %125 = dma.hbm_to_vmem [thread:$0]  %s121, 16, %s123, [#allocation14]
    $region37: #{chest_xray_classifier_forward.1} parent=1 // pred_fallthru
      _
    // Predicated region
    $region38: #{chest_xray_classifier_forward.1} parent=1 // pred_check
      _
    $region39: #{chest_xray_classifier_forward.1} parent=1 // pred_check_branch
      %127 = sbr.rel (0) target = $region41
    $region40: #{chest_xray_classifier_forward.1} parent=1 // pred_region
      %129 = dma.done [#allocation3], 1408
    $region41: #{chest_xray_classifier_forward.1} parent=1 // pred_fallthru
      _
    // Predicated region
    $region42: #{chest_xray_classifier_forward.1} parent=1 // pred_check
      _
    $region43: #{chest_xray_classifier_forward.1} parent=1 // pred_check_branch
      %131 = sbr.rel (0) target = $region45
    $region44: #{chest_xray_classifier_forward.1} parent=1 // pred_region
      %133 = dma.done [#allocation5], 44032
    $region45: #{chest_xray_classifier_forward.1} parent=1 // pred_fallthru
      _
    // Predicated region
    $region46: #{chest_xray_classifier_forward.1} parent=1 // pred_check
      _
    $region47: #{chest_xray_classifier_forward.1} parent=1 // pred_check_branch
      %135 = sbr.rel (0) target = $region49
    $region48: #{chest_xray_classifier_forward.1} parent=1 // pred_region
      %137 = dma.done [#allocation5], 64
    $region49: #{chest_xray_classifier_forward.1} parent=1 // pred_fallthru
      _
    // Predicated region
    $region50: #{chest_xray_classifier_forward.1} parent=1 // pred_check
      _
    $region51: #{chest_xray_classifier_forward.1} parent=1 // pred_check_branch
      %139 = sbr.rel (0) target = $region53
    $region52: #{chest_xray_classifier_forward.1} parent=1 // pred_region
      %141 = dma.done [#allocation8], 12288
    $region53: #{chest_xray_classifier_forward.1} parent=1 // pred_fallthru
      _
    // Predicated region
    $region54: #{chest_xray_classifier_forward.1} parent=1 // pred_check
      _
    $region55: #{chest_xray_classifier_forward.1} parent=1 // pred_check_branch
      %143 = sbr.rel (0) target = $region57
    $region56: #{chest_xray_classifier_forward.1} parent=1 // pred_region
      %145 = dma.done [#allocation8], 48
    $region57: #{chest_xray_classifier_forward.1} parent=1 // pred_fallthru
      _
    // Predicated region
    $region58: #{chest_xray_classifier_forward.1} parent=1 // pred_check
      _
    $region59: #{chest_xray_classifier_forward.1} parent=1 // pred_check_branch
      %147 = sbr.rel (0) target = $region61
    $region60: #{chest_xray_classifier_forward.1} parent=1 // pred_region
      %149 = dma.done [#allocation11], 6144
    $region61: #{chest_xray_classifier_forward.1} parent=1 // pred_fallthru
      _
    // Predicated region
    $region62: #{chest_xray_classifier_forward.1} parent=1 // pred_check
      _
    $region63: #{chest_xray_classifier_forward.1} parent=1 // pred_check_branch
      %151 = sbr.rel (0) target = $region65
    $region64: #{chest_xray_classifier_forward.1} parent=1 // pred_region
      %153 = dma.done [#allocation11], 32
    $region65: #{chest_xray_classifier_forward.1} parent=1 // pred_fallthru
      _
    // Predicated region
    $region66: #{chest_xray_classifier_forward.1} parent=1 // pred_check
      _
    $region67: #{chest_xray_classifier_forward.1} parent=1 // pred_check_branch
      %155 = sbr.rel (0) target = $region69
    $region68: #{chest_xray_classifier_forward.1} parent=1 // pred_region
      %157 = dma.done [#allocation14], 2048
    $region69: #{chest_xray_classifier_forward.1} parent=1 // pred_fallthru
      _
    // Predicated region
    $region70: #{chest_xray_classifier_forward.1} parent=1 // pred_check
      _
    $region71: #{chest_xray_classifier_forward.1} parent=1 // pred_check_branch
      %159 = sbr.rel (0) target = $region73
    $region72: #{chest_xray_classifier_forward.1} parent=1 // pred_region
      %161 = dma.done [#allocation14], 16
    $region73: #{chest_xray_classifier_forward.1} parent=1 // pred_fallthru
      _
    %v163 = vld [vmem:[#allocation2] sm:$0xff]
    %v164 = vld [vmem:[#allocation2 + $0x8] sm:$0xff]
    %v165 = vld [vmem:[#allocation2 + $0x10] sm:$0xff]
    %v166 = vld [vmem:[#allocation2 + $0x18] sm:$0xff]
    %v167 = vld [vmem:[#allocation2 + $0x20] sm:$0xff]
    %v168 = vld [vmem:[#allocation2 + $0x28] sm:$0xff]
    %v169 = vld [vmem:[#allocation2 + $0x30] sm:$0xff]
    %v170 = vld [vmem:[#allocation2 + $0x38] sm:$0xff]
    %v171 = vld [vmem:[#allocation2 + $0x40] sm:$0xff]
    %v172 = vld [vmem:[#allocation2 + $0x48] sm:$0xff]
    %v173 = vld [vmem:[#allocation2 + $0x50] sm:$0xff]
    %v174 = vpack.c.bf16 %v163, %v163
    %v175 = vpack.c.bf16 %v164, %v164
    %v176 = vpack.c.bf16 %v165, %v165
    %v177 = vpack.c.bf16 %v166, %v166
    %v178 = vpack.c.bf16 %v167, %v167
    %v179 = vpack.c.bf16 %v168, %v168
    %v180 = vpack.c.bf16 %v169, %v169
    %v181 = vpack.c.bf16 %v170, %v170
    %v182 = vpack.c.bf16 %v171, %v171
    %v183 = vpack.c.bf16 %v172, %v172
    %v184 = vpack.c.bf16 %v173, %v173
    %v185 = vld [vmem:[#allocation4] sm:$0xff]
    %v186 = vld [vmem:[#allocation4 + $0x8] sm:$0xff]
    %v187 = vld [vmem:[#allocation4 + $0x10] sm:$0xff]
    %v188 = vld [vmem:[#allocation4 + $0x18] sm:$0xff]
    %v189 = vld [vmem:[#allocation4 + $0x20] sm:$0xff]
    %v190 = vld [vmem:[#allocation4 + $0x28] sm:$0xff]
    %v191 = vld [vmem:[#allocation4 + $0x30] sm:$0xff]
    %v192 = vld [vmem:[#allocation4 + $0x38] sm:$0xff]
    %v193 = vld [vmem:[#allocation4 + $0x40] sm:$0xff]
    %v194 = vld [vmem:[#allocation4 + $0x48] sm:$0xff]
    %v195 = vld [vmem:[#allocation4 + $0x50] sm:$0xff]
    %v196 = vld [vmem:[#allocation4 + $0x58] sm:$0xff]
    %v197 = vld [vmem:[#allocation4 + $0x60] sm:$0xff]
    %v198 = vld [vmem:[#allocation4 + $0x68] sm:$0xff]
    %v199 = vld [vmem:[#allocation4 + $0x70] sm:$0xff]
    %v200 = vld [vmem:[#allocation4 + $0x78] sm:$0xff]
    %v201 = vld [vmem:[#allocation4 + $0x80] sm:$0xff]
    %v202 = vld [vmem:[#allocation4 + $0x88] sm:$0xff]
    %v203 = vld [vmem:[#allocation4 + $0x90] sm:$0xff]
    %v204 = vld [vmem:[#allocation4 + $0x98] sm:$0xff]
    %v205 = vld [vmem:[#allocation4 + $0xa0] sm:$0xff]
    %v206 = vld [vmem:[#allocation4 + $0xa8] sm:$0xff]
    %v207 = vld [vmem:[#allocation4 + $0xb0] sm:$0xff]
    %v208 = vld [vmem:[#allocation4 + $0xb8] sm:$0xff]
    %v209 = vld [vmem:[#allocation4 + $0xc0] sm:$0xff]
    %v210 = vld [vmem:[#allocation4 + $0xc8] sm:$0xff]
    %v211 = vld [vmem:[#allocation4 + $0xd0] sm:$0xff]
    %v212 = vld [vmem:[#allocation4 + $0xd8] sm:$0xff]
    %v213 = vld [vmem:[#allocation4 + $0xe0] sm:$0xff]
    %v214 = vld [vmem:[#allocation4 + $0xe8] sm:$0xff]
    %v215 = vld [vmem:[#allocation4 + $0xf0] sm:$0xff]
    %v216 = vld [vmem:[#allocation4 + $0xf8] sm:$0xff]
    %v217 = vld [vmem:[#allocation4 + $0x100] sm:$0xff]
    %v218 = vld [vmem:[#allocation4 + $0x108] sm:$0xff]
    %v219 = vld [vmem:[#allocation4 + $0x110] sm:$0xff]
    %v220 = vld [vmem:[#allocation4 + $0x118] sm:$0xff]
    %v221 = vld [vmem:[#allocation4 + $0x120] sm:$0xff]
    %v222 = vld [vmem:[#allocation4 + $0x128] sm:$0xff]
    %v223 = vld [vmem:[#allocation4 + $0x130] sm:$0xff]
    %v224 = vld [vmem:[#allocation4 + $0x138] sm:$0xff]
    %v225 = vld [vmem:[#allocation4 + $0x140] sm:$0xff]
    %v226 = vld [vmem:[#allocation4 + $0x148] sm:$0xff]
    %v227 = vld [vmem:[#allocation4 + $0x150] sm:$0xff]
    %v228 = vld [vmem:[#allocation4 + $0x158] sm:$0xff]
    %v229 = vld [vmem:[#allocation4 + $0x160] sm:$0xff]
    %v230 = vld [vmem:[#allocation4 + $0x168] sm:$0xff]
    %v231 = vld [vmem:[#allocation4 + $0x170] sm:$0xff]
    %v232 = vld [vmem:[#allocation4 + $0x178] sm:$0xff]
    %v233 = vld [vmem:[#allocation4 + $0x180] sm:$0xff]
    %v234 = vld [vmem:[#allocation4 + $0x188] sm:$0xff]
    %v235 = vld [vmem:[#allocation4 + $0x190] sm:$0xff]
    %v236 = vld [vmem:[#allocation4 + $0x198] sm:$0xff]
    %v237 = vld [vmem:[#allocation4 + $0x1a0] sm:$0xff]
    %v238 = vld [vmem:[#allocation4 + $0x1a8] sm:$0xff]
    %v239 = vld [vmem:[#allocation4 + $0x1b0] sm:$0xff]
    %v240 = vld [vmem:[#allocation4 + $0x1b8] sm:$0xff]
    %v241 = vld [vmem:[#allocation4 + $0x1c0] sm:$0xff]
    %v242 = vld [vmem:[#allocation4 + $0x1c8] sm:$0xff]
    %v243 = vld [vmem:[#allocation4 + $0x1d0] sm:$0xff]
    %v244 = vld [vmem:[#allocation4 + $0x1d8] sm:$0xff]
    %v245 = vld [vmem:[#allocation4 + $0x1e0] sm:$0xff]
    %v246 = vld [vmem:[#allocation4 + $0x1e8] sm:$0xff]
    %v247 = vld [vmem:[#allocation4 + $0x1f0] sm:$0xff]
    %v248 = vld [vmem:[#allocation4 + $0x1f8] sm:$0xff]
    %v249 = vld [vmem:[#allocation4 + $0x200] sm:$0xff]
    %v250 = vld [vmem:[#allocation4 + $0x208] sm:$0xff]
    %v251 = vld [vmem:[#allocation4 + $0x210] sm:$0xff]
    %v252 = vld [vmem:[#allocation4 + $0x218] sm:$0xff]
    %v253 = vld [vmem:[#allocation4 + $0x220] sm:$0xff]
    %v254 = vld [vmem:[#allocation4 + $0x228] sm:$0xff]
    %v255 = vld [vmem:[#allocation4 + $0x230] sm:$0xff]
    %v256 = vld [vmem:[#allocation4 + $0x238] sm:$0xff]
    %v257 = vld [vmem:[#allocation4 + $0x240] sm:$0xff]
    %v258 = vld [vmem:[#allocation4 + $0x248] sm:$0xff]
    %v259 = vld [vmem:[#allocation4 + $0x250] sm:$0xff]
    %v260 = vld [vmem:[#allocation4 + $0x258] sm:$0xff]
    %v261 = vld [vmem:[#allocation4 + $0x260] sm:$0xff]
    %v262 = vld [vmem:[#allocation4 + $0x268] sm:$0xff]
    %v263 = vld [vmem:[#allocation4 + $0x270] sm:$0xff]
    %v264 = vld [vmem:[#allocation4 + $0x278] sm:$0xff]
    %v265 = vld [vmem:[#allocation4 + $0x280] sm:$0xff]
    %v266 = vld [vmem:[#allocation4 + $0x288] sm:$0xff]
    %v267 = vld [vmem:[#allocation4 + $0x290] sm:$0xff]
    %v268 = vld [vmem:[#allocation4 + $0x298] sm:$0xff]
    %v269 = vld [vmem:[#allocation4 + $0x2a0] sm:$0xff]
    %v270 = vld [vmem:[#allocation4 + $0x2a8] sm:$0xff]
    %v271 = vld [vmem:[#allocation4 + $0x2b0] sm:$0xff]
    %v272 = vld [vmem:[#allocation4 + $0x2b8] sm:$0xff]
    %v273 = vld [vmem:[#allocation4 + $0x2c0] sm:$0xff]
    %v274 = vld [vmem:[#allocation4 + $0x2c8] sm:$0xff]
    %v275 = vld [vmem:[#allocation4 + $0x2d0] sm:$0xff]
    %v276 = vld [vmem:[#allocation4 + $0x2d8] sm:$0xff]
    %v277 = vld [vmem:[#allocation4 + $0x2e0] sm:$0xff]
    %v278 = vld [vmem:[#allocation4 + $0x2e8] sm:$0xff]
    %v279 = vld [vmem:[#allocation4 + $0x2f0] sm:$0xff]
    %v280 = vld [vmem:[#allocation4 + $0x2f8] sm:$0xff]
    %v281 = vld [vmem:[#allocation4 + $0x300] sm:$0xff]
    %v282 = vld [vmem:[#allocation4 + $0x308] sm:$0xff]
    %v283 = vld [vmem:[#allocation4 + $0x310] sm:$0xff]
    %v284 = vld [vmem:[#allocation4 + $0x318] sm:$0xff]
    %v285 = vld [vmem:[#allocation4 + $0x320] sm:$0xff]
    %v286 = vld [vmem:[#allocation4 + $0x328] sm:$0xff]
    %v287 = vld [vmem:[#allocation4 + $0x330] sm:$0xff]
    %v288 = vld [vmem:[#allocation4 + $0x338] sm:$0xff]
    %v289 = vld [vmem:[#allocation4 + $0x340] sm:$0xff]
    %v290 = vld [vmem:[#allocation4 + $0x348] sm:$0xff]
    %v291 = vld [vmem:[#allocation4 + $0x350] sm:$0xff]
    %v292 = vld [vmem:[#allocation4 + $0x358] sm:$0xff]
    %v293 = vld [vmem:[#allocation4 + $0x360] sm:$0xff]
    %v294 = vld [vmem:[#allocation4 + $0x368] sm:$0xff]
    %v295 = vld [vmem:[#allocation4 + $0x370] sm:$0xff]
    %v296 = vld [vmem:[#allocation4 + $0x378] sm:$0xff]
    %v297 = vld [vmem:[#allocation4 + $0x380] sm:$0xff]
    %v298 = vld [vmem:[#allocation4 + $0x388] sm:$0xff]
    %v299 = vld [vmem:[#allocation4 + $0x390] sm:$0xff]
    %v300 = vld [vmem:[#allocation4 + $0x398] sm:$0xff]
    %v301 = vld [vmem:[#allocation4 + $0x3a0] sm:$0xff]
    %v302 = vld [vmem:[#allocation4 + $0x3a8] sm:$0xff]
    %v303 = vld [vmem:[#allocation4 + $0x3b0] sm:$0xff]
    %v304 = vld [vmem:[#allocation4 + $0x3b8] sm:$0xff]
    %v305 = vld [vmem:[#allocation4 + $0x3c0] sm:$0xff]
    %v306 = vld [vmem:[#allocation4 + $0x3c8] sm:$0xff]
    %v307 = vld [vmem:[#allocation4 + $0x3d0] sm:$0xff]
    %v308 = vld [vmem:[#allocation4 + $0x3d8] sm:$0xff]
    %v309 = vld [vmem:[#allocation4 + $0x3e0] sm:$0xff]
    %v310 = vld [vmem:[#allocation4 + $0x3e8] sm:$0xff]
    %v311 = vld [vmem:[#allocation4 + $0x3f0] sm:$0xff]
    %v312 = vld [vmem:[#allocation4 + $0x3f8] sm:$0xff]
    %v313 = vld [vmem:[#allocation4 + $0x400] sm:$0xff]
    %v314 = vld [vmem:[#allocation4 + $0x408] sm:$0xff]
    %v315 = vld [vmem:[#allocation4 + $0x410] sm:$0xff]
    %v316 = vld [vmem:[#allocation4 + $0x418] sm:$0xff]
    %v317 = vld [vmem:[#allocation4 + $0x420] sm:$0xff]
    %v318 = vld [vmem:[#allocation4 + $0x428] sm:$0xff]
    %v319 = vld [vmem:[#allocation4 + $0x430] sm:$0xff]
    %v320 = vld [vmem:[#allocation4 + $0x438] sm:$0xff]
    %v321 = vld [vmem:[#allocation4 + $0x440] sm:$0xff]
    %v322 = vld [vmem:[#allocation4 + $0x448] sm:$0xff]
    %v323 = vld [vmem:[#allocation4 + $0x450] sm:$0xff]
    %v324 = vld [vmem:[#allocation4 + $0x458] sm:$0xff]
    %v325 = vld [vmem:[#allocation4 + $0x460] sm:$0xff]
    %v326 = vld [vmem:[#allocation4 + $0x468] sm:$0xff]
    %v327 = vld [vmem:[#allocation4 + $0x470] sm:$0xff]
    %v328 = vld [vmem:[#allocation4 + $0x478] sm:$0xff]
    %v329 = vld [vmem:[#allocation4 + $0x480] sm:$0xff]
    %v330 = vld [vmem:[#allocation4 + $0x488] sm:$0xff]
    %v331 = vld [vmem:[#allocation4 + $0x490] sm:$0xff]
    %v332 = vld [vmem:[#allocation4 + $0x498] sm:$0xff]
    %v333 = vld [vmem:[#allocation4 + $0x4a0] sm:$0xff]
    %v334 = vld [vmem:[#allocation4 + $0x4a8] sm:$0xff]
    %v335 = vld [vmem:[#allocation4 + $0x4b0] sm:$0xff]
    %v336 = vld [vmem:[#allocation4 + $0x4b8] sm:$0xff]
    %v337 = vld [vmem:[#allocation4 + $0x4c0] sm:$0xff]
    %v338 = vld [vmem:[#allocation4 + $0x4c8] sm:$0xff]
    %v339 = vld [vmem:[#allocation4 + $0x4d0] sm:$0xff]
    %v340 = vld [vmem:[#allocation4 + $0x4d8] sm:$0xff]
    %v341 = vld [vmem:[#allocation4 + $0x4e0] sm:$0xff]
    %v342 = vld [vmem:[#allocation4 + $0x4e8] sm:$0xff]
    %v343 = vld [vmem:[#allocation4 + $0x4f0] sm:$0xff]
    %v344 = vld [vmem:[#allocation4 + $0x4f8] sm:$0xff]
    %v345 = vld [vmem:[#allocation4 + $0x500] sm:$0xff]
    %v346 = vld [vmem:[#allocation4 + $0x508] sm:$0xff]
    %v347 = vld [vmem:[#allocation4 + $0x510] sm:$0xff]
    %v348 = vld [vmem:[#allocation4 + $0x518] sm:$0xff]
    %v349 = vld [vmem:[#allocation4 + $0x520] sm:$0xff]
    %v350 = vld [vmem:[#allocation4 + $0x528] sm:$0xff]
    %v351 = vld [vmem:[#allocation4 + $0x530] sm:$0xff]
    %v352 = vld [vmem:[#allocation4 + $0x538] sm:$0xff]
    %v353 = vld [vmem:[#allocation4 + $0x540] sm:$0xff]
    %v354 = vld [vmem:[#allocation4 + $0x548] sm:$0xff]
    %v355 = vld [vmem:[#allocation4 + $0x550] sm:$0xff]
    %v356 = vld [vmem:[#allocation4 + $0x558] sm:$0xff]
    %v357 = vld [vmem:[#allocation4 + $0x560] sm:$0xff]
    %v358 = vld [vmem:[#allocation4 + $0x568] sm:$0xff]
    %v359 = vld [vmem:[#allocation4 + $0x570] sm:$0xff]
    %v360 = vld [vmem:[#allocation4 + $0x578] sm:$0xff]
    %v361 = vld [vmem:[#allocation4 + $0x580] sm:$0xff]
    %v362 = vld [vmem:[#allocation4 + $0x588] sm:$0xff]
    %v363 = vld [vmem:[#allocation4 + $0x590] sm:$0xff]
    %v364 = vld [vmem:[#allocation4 + $0x598] sm:$0xff]
    %v365 = vld [vmem:[#allocation4 + $0x5a0] sm:$0xff]
    %v366 = vld [vmem:[#allocation4 + $0x5a8] sm:$0xff]
    %v367 = vld [vmem:[#allocation4 + $0x5b0] sm:$0xff]
    %v368 = vld [vmem:[#allocation4 + $0x5b8] sm:$0xff]
    %v369 = vld [vmem:[#allocation4 + $0x5c0] sm:$0xff]
    %v370 = vld [vmem:[#allocation4 + $0x5c8] sm:$0xff]
    %v371 = vld [vmem:[#allocation4 + $0x5d0] sm:$0xff]
    %v372 = vld [vmem:[#allocation4 + $0x5d8] sm:$0xff]
    %v373 = vld [vmem:[#allocation4 + $0x5e0] sm:$0xff]
    %v374 = vld [vmem:[#allocation4 + $0x5e8] sm:$0xff]
    %v375 = vld [vmem:[#allocation4 + $0x5f0] sm:$0xff]
    %v376 = vld [vmem:[#allocation4 + $0x5f8] sm:$0xff]
    %v377 = vld [vmem:[#allocation4 + $0x600] sm:$0xff]
    %v378 = vld [vmem:[#allocation4 + $0x608] sm:$0xff]
    %v379 = vld [vmem:[#allocation4 + $0x610] sm:$0xff]
    %v380 = vld [vmem:[#allocation4 + $0x618] sm:$0xff]
    %v381 = vld [vmem:[#allocation4 + $0x620] sm:$0xff]
    %v382 = vld [vmem:[#allocation4 + $0x628] sm:$0xff]
    %v383 = vld [vmem:[#allocation4 + $0x630] sm:$0xff]
    %v384 = vld [vmem:[#allocation4 + $0x638] sm:$0xff]
    %v385 = vld [vmem:[#allocation4 + $0x640] sm:$0xff]
    %v386 = vld [vmem:[#allocation4 + $0x648] sm:$0xff]
    %v387 = vld [vmem:[#allocation4 + $0x650] sm:$0xff]
    %v388 = vld [vmem:[#allocation4 + $0x658] sm:$0xff]
    %v389 = vld [vmem:[#allocation4 + $0x660] sm:$0xff]
    %v390 = vld [vmem:[#allocation4 + $0x668] sm:$0xff]
    %v391 = vld [vmem:[#allocation4 + $0x670] sm:$0xff]
    %v392 = vld [vmem:[#allocation4 + $0x678] sm:$0xff]
    %v393 = vld [vmem:[#allocation4 + $0x680] sm:$0xff]
    %v394 = vld [vmem:[#allocation4 + $0x688] sm:$0xff]
    %v395 = vld [vmem:[#allocation4 + $0x690] sm:$0xff]
    %v396 = vld [vmem:[#allocation4 + $0x698] sm:$0xff]
    %v397 = vld [vmem:[#allocation4 + $0x6a0] sm:$0xff]
    %v398 = vld [vmem:[#allocation4 + $0x6a8] sm:$0xff]
    %v399 = vld [vmem:[#allocation4 + $0x6b0] sm:$0xff]
    %v400 = vld [vmem:[#allocation4 + $0x6b8] sm:$0xff]
    %v401 = vld [vmem:[#allocation4 + $0x6c0] sm:$0xff]
    %v402 = vld [vmem:[#allocation4 + $0x6c8] sm:$0xff]
    %v403 = vld [vmem:[#allocation4 + $0x6d0] sm:$0xff]
    %v404 = vld [vmem:[#allocation4 + $0x6d8] sm:$0xff]
    %v405 = vld [vmem:[#allocation4 + $0x6e0] sm:$0xff]
    %v406 = vld [vmem:[#allocation4 + $0x6e8] sm:$0xff]
    %v407 = vld [vmem:[#allocation4 + $0x6f0] sm:$0xff]
    %v408 = vld [vmem:[#allocation4 + $0x6f8] sm:$0xff]
    %v409 = vld [vmem:[#allocation4 + $0x700] sm:$0xff]
    %v410 = vld [vmem:[#allocation4 + $0x708] sm:$0xff]
    %v411 = vld [vmem:[#allocation4 + $0x710] sm:$0xff]
    %v412 = vld [vmem:[#allocation4 + $0x718] sm:$0xff]
    %v413 = vld [vmem:[#allocation4 + $0x720] sm:$0xff]
    %v414 = vld [vmem:[#allocation4 + $0x728] sm:$0xff]
    %v415 = vld [vmem:[#allocation4 + $0x730] sm:$0xff]
    %v416 = vld [vmem:[#allocation4 + $0x738] sm:$0xff]
    %v417 = vld [vmem:[#allocation4 + $0x740] sm:$0xff]
    %v418 = vld [vmem:[#allocation4 + $0x748] sm:$0xff]
    %v419 = vld [vmem:[#allocation4 + $0x750] sm:$0xff]
    %v420 = vld [vmem:[#allocation4 + $0x758] sm:$0xff]
    %v421 = vld [vmem:[#allocation4 + $0x760] sm:$0xff]
    %v422 = vld [vmem:[#allocation4 + $0x768] sm:$0xff]
    %v423 = vld [vmem:[#allocation4 + $0x770] sm:$0xff]
    %v424 = vld [vmem:[#allocation4 + $0x778] sm:$0xff]
    %v425 = vld [vmem:[#allocation4 + $0x780] sm:$0xff]
    %v426 = vld [vmem:[#allocation4 + $0x788] sm:$0xff]
    %v427 = vld [vmem:[#allocation4 + $0x790] sm:$0xff]
    %v428 = vld [vmem:[#allocation4 + $0x798] sm:$0xff]
    %v429 = vld [vmem:[#allocation4 + $0x7a0] sm:$0xff]
    %v430 = vld [vmem:[#allocation4 + $0x7a8] sm:$0xff]
    %v431 = vld [vmem:[#allocation4 + $0x7b0] sm:$0xff]
    %v432 = vld [vmem:[#allocation4 + $0x7b8] sm:$0xff]
    %v433 = vld [vmem:[#allocation4 + $0x7c0] sm:$0xff]
    %v434 = vld [vmem:[#allocation4 + $0x7c8] sm:$0xff]
    %v435 = vld [vmem:[#allocation4 + $0x7d0] sm:$0xff]
    %v436 = vld [vmem:[#allocation4 + $0x7d8] sm:$0xff]
    %v437 = vld [vmem:[#allocation4 + $0x7e0] sm:$0xff]
    %v438 = vld [vmem:[#allocation4 + $0x7e8] sm:$0xff]
    %v439 = vld [vmem:[#allocation4 + $0x7f0] sm:$0xff]
    %v440 = vld [vmem:[#allocation4 + $0x7f8] sm:$0xff]
    %v441 = vld [vmem:[#allocation4 + $0x800] sm:$0xff]
    %v442 = vld [vmem:[#allocation4 + $0x808] sm:$0xff]
    %v443 = vld [vmem:[#allocation4 + $0x810] sm:$0xff]
    %v444 = vld [vmem:[#allocation4 + $0x818] sm:$0xff]
    %v445 = vld [vmem:[#allocation4 + $0x820] sm:$0xff]
    %v446 = vld [vmem:[#allocation4 + $0x828] sm:$0xff]
    %v447 = vld [vmem:[#allocation4 + $0x830] sm:$0xff]
    %v448 = vld [vmem:[#allocation4 + $0x838] sm:$0xff]
    %v449 = vld [vmem:[#allocation4 + $0x840] sm:$0xff]
    %v450 = vld [vmem:[#allocation4 + $0x848] sm:$0xff]
    %v451 = vld [vmem:[#allocation4 + $0x850] sm:$0xff]
    %v452 = vld [vmem:[#allocation4 + $0x858] sm:$0xff]
    %v453 = vld [vmem:[#allocation4 + $0x860] sm:$0xff]
    %v454 = vld [vmem:[#allocation4 + $0x868] sm:$0xff]
    %v455 = vld [vmem:[#allocation4 + $0x870] sm:$0xff]
    %v456 = vld [vmem:[#allocation4 + $0x878] sm:$0xff]
    %v457 = vld [vmem:[#allocation4 + $0x880] sm:$0xff]
    %v458 = vld [vmem:[#allocation4 + $0x888] sm:$0xff]
    %v459 = vld [vmem:[#allocation4 + $0x890] sm:$0xff]
    %v460 = vld [vmem:[#allocation4 + $0x898] sm:$0xff]
    %v461 = vld [vmem:[#allocation4 + $0x8a0] sm:$0xff]
    %v462 = vld [vmem:[#allocation4 + $0x8a8] sm:$0xff]
    %v463 = vld [vmem:[#allocation4 + $0x8b0] sm:$0xff]
    %v464 = vld [vmem:[#allocation4 + $0x8b8] sm:$0xff]
    %v465 = vld [vmem:[#allocation4 + $0x8c0] sm:$0xff]
    %v466 = vld [vmem:[#allocation4 + $0x8c8] sm:$0xff]
    %v467 = vld [vmem:[#allocation4 + $0x8d0] sm:$0xff]
    %v468 = vld [vmem:[#allocation4 + $0x8d8] sm:$0xff]
    %v469 = vld [vmem:[#allocation4 + $0x8e0] sm:$0xff]
    %v470 = vld [vmem:[#allocation4 + $0x8e8] sm:$0xff]
    %v471 = vld [vmem:[#allocation4 + $0x8f0] sm:$0xff]
    %v472 = vld [vmem:[#allocation4 + $0x8f8] sm:$0xff]
    %v473 = vld [vmem:[#allocation4 + $0x900] sm:$0xff]
    %v474 = vld [vmem:[#allocation4 + $0x908] sm:$0xff]
    %v475 = vld [vmem:[#allocation4 + $0x910] sm:$0xff]
    %v476 = vld [vmem:[#allocation4 + $0x918] sm:$0xff]
    %v477 = vld [vmem:[#allocation4 + $0x920] sm:$0xff]
    %v478 = vld [vmem:[#allocation4 + $0x928] sm:$0xff]
    %v479 = vld [vmem:[#allocation4 + $0x930] sm:$0xff]
    %v480 = vld [vmem:[#allocation4 + $0x938] sm:$0xff]
    %v481 = vld [vmem:[#allocation4 + $0x940] sm:$0xff]
    %v482 = vld [vmem:[#allocation4 + $0x948] sm:$0xff]
    %v483 = vld [vmem:[#allocation4 + $0x950] sm:$0xff]
    %v484 = vld [vmem:[#allocation4 + $0x958] sm:$0xff]
    %v485 = vld [vmem:[#allocation4 + $0x960] sm:$0xff]
    %v486 = vld [vmem:[#allocation4 + $0x968] sm:$0xff]
    %v487 = vld [vmem:[#allocation4 + $0x970] sm:$0xff]
    %v488 = vld [vmem:[#allocation4 + $0x978] sm:$0xff]
    %v489 = vld [vmem:[#allocation4 + $0x980] sm:$0xff]
    %v490 = vld [vmem:[#allocation4 + $0x988] sm:$0xff]
    %v491 = vld [vmem:[#allocation4 + $0x990] sm:$0xff]
    %v492 = vld [vmem:[#allocation4 + $0x998] sm:$0xff]
    %v493 = vld [vmem:[#allocation4 + $0x9a0] sm:$0xff]
    %v494 = vld [vmem:[#allocation4 + $0x9a8] sm:$0xff]
    %v495 = vld [vmem:[#allocation4 + $0x9b0] sm:$0xff]
    %v496 = vld [vmem:[#allocation4 + $0x9b8] sm:$0xff]
    %v497 = vld [vmem:[#allocation4 + $0x9c0] sm:$0xff]
    %v498 = vld [vmem:[#allocation4 + $0x9c8] sm:$0xff]
    %v499 = vld [vmem:[#allocation4 + $0x9d0] sm:$0xff]
    %v500 = vld [vmem:[#allocation4 + $0x9d8] sm:$0xff]
    %v501 = vld [vmem:[#allocation4 + $0x9e0] sm:$0xff]
    %v502 = vld [vmem:[#allocation4 + $0x9e8] sm:$0xff]
    %v503 = vld [vmem:[#allocation4 + $0x9f0] sm:$0xff]
    %v504 = vld [vmem:[#allocation4 + $0x9f8] sm:$0xff]
    %v505 = vld [vmem:[#allocation4 + $0xa00] sm:$0xff]
    %v506 = vld [vmem:[#allocation4 + $0xa08] sm:$0xff]
    %v507 = vld [vmem:[#allocation4 + $0xa10] sm:$0xff]
    %v508 = vld [vmem:[#allocation4 + $0xa18] sm:$0xff]
    %v509 = vld [vmem:[#allocation4 + $0xa20] sm:$0xff]
    %v510 = vld [vmem:[#allocation4 + $0xa28] sm:$0xff]
    %v511 = vld [vmem:[#allocation4 + $0xa30] sm:$0xff]
    %v512 = vld [vmem:[#allocation4 + $0xa38] sm:$0xff]
    %v513 = vld [vmem:[#allocation4 + $0xa40] sm:$0xff]
    %v514 = vld [vmem:[#allocation4 + $0xa48] sm:$0xff]
    %v515 = vld [vmem:[#allocation4 + $0xa50] sm:$0xff]
    %v516 = vld [vmem:[#allocation4 + $0xa58] sm:$0xff]
    %v517 = vld [vmem:[#allocation4 + $0xa60] sm:$0xff]
    %v518 = vld [vmem:[#allocation4 + $0xa68] sm:$0xff]
    %v519 = vld [vmem:[#allocation4 + $0xa70] sm:$0xff]
    %v520 = vld [vmem:[#allocation4 + $0xa78] sm:$0xff]
    %v521 = vld [vmem:[#allocation4 + $0xa80] sm:$0xff]
    %v522 = vld [vmem:[#allocation4 + $0xa88] sm:$0xff]
    %v523 = vld [vmem:[#allocation4 + $0xa90] sm:$0xff]
    %v524 = vld [vmem:[#allocation4 + $0xa98] sm:$0xff]
    %v525 = vld [vmem:[#allocation4 + $0xaa0] sm:$0xff]
    %v526 = vld [vmem:[#allocation4 + $0xaa8] sm:$0xff]
    %v527 = vld [vmem:[#allocation4 + $0xab0] sm:$0xff]
    %v528 = vld [vmem:[#allocation4 + $0xab8] sm:$0xff]
    %v529 = vld [vmem:[#allocation6] sm:$0xf]
    %v531 = vperm.slane %v529, 0
    %v532 = vperm.slane %v529, 1
    %v533 = vperm.slane %v529, 2
    %v534 = vperm.slane %v529, 3
    %v883 = vunpack.c.l.b16 %v185
    %v884 = vunpack.c.h.b16 %v185
    %v885 = vunpack.c.l.b16 %v186
    %v886 = vunpack.c.h.b16 %v186
    %v887 = vunpack.c.l.b16 %v187
    %v888 = vunpack.c.h.b16 %v187
    %v889 = vunpack.c.l.b16 %v188
    %v890 = vunpack.c.h.b16 %v188
    %v891 = vunpack.c.l.b16 %v189
    %v892 = vunpack.c.h.b16 %v189
    %v893 = vunpack.c.l.b16 %v190
    %v894 = vunpack.c.h.b16 %v190
    %v895 = vunpack.c.l.b16 %v191
    %v896 = vunpack.c.h.b16 %v191
    %v897 = vunpack.c.l.b16 %v192
    %v898 = vunpack.c.h.b16 %v192
    %v899 = vunpack.c.l.b16 %v193
    %v900 = vunpack.c.h.b16 %v193
    %v901 = vunpack.c.l.b16 %v194
    %v902 = vunpack.c.h.b16 %v194
    %v903 = vunpack.c.l.b16 %v195
    %v904 = vunpack.c.h.b16 %v195
    %v905 = vunpack.c.l.b16 %v196
    %v906 = vunpack.c.h.b16 %v196
    %v907 = vunpack.c.l.b16 %v197
    %v908 = vunpack.c.h.b16 %v197
    %v909 = vunpack.c.l.b16 %v198
    %v910 = vunpack.c.h.b16 %v198
    %v911 = vunpack.c.l.b16 %v199
    %v912 = vunpack.c.h.b16 %v199
    %v913 = vunpack.c.l.b16 %v200
    %v914 = vunpack.c.h.b16 %v200
    %v915 = vunpack.c.l.b16 %v201
    %v916 = vunpack.c.h.b16 %v201
    %v917 = vunpack.c.l.b16 %v202
    %v918 = vunpack.c.h.b16 %v202
    %v919 = vunpack.c.l.b16 %v203
    %v920 = vunpack.c.h.b16 %v203
    %v921 = vunpack.c.l.b16 %v204
    %v922 = vunpack.c.h.b16 %v204
    %v923 = vunpack.c.l.b16 %v205
    %v924 = vunpack.c.h.b16 %v205
    %v925 = vunpack.c.l.b16 %v206
    %v926 = vunpack.c.h.b16 %v206
    %v927 = vunpack.c.l.b16 %v207
    %v928 = vunpack.c.h.b16 %v207
    %v929 = vunpack.c.l.b16 %v208
    %v930 = vunpack.c.h.b16 %v208
    %v931 = vunpack.c.l.b16 %v209
    %v932 = vunpack.c.h.b16 %v209
    %v933 = vunpack.c.l.b16 %v210
    %v934 = vunpack.c.h.b16 %v210
    %v935 = vunpack.c.l.b16 %v211
    %v936 = vunpack.c.h.b16 %v211
    %v937 = vunpack.c.l.b16 %v212
    %v938 = vunpack.c.h.b16 %v212
    %v939 = vunpack.c.l.b16 %v213
    %v940 = vunpack.c.h.b16 %v213
    %v941 = vunpack.c.l.b16 %v214
    %v942 = vunpack.c.h.b16 %v214
    %v943 = vunpack.c.l.b16 %v215
    %v944 = vunpack.c.h.b16 %v215
    %v945 = vunpack.c.l.b16 %v216
    %v946 = vunpack.c.h.b16 %v216
    %v947 = vunpack.c.l.b16 %v217
    %v948 = vunpack.c.h.b16 %v217
    %v949 = vunpack.c.l.b16 %v218
    %v950 = vunpack.c.h.b16 %v218
    %v951 = vunpack.c.l.b16 %v219
    %v952 = vunpack.c.h.b16 %v219
    %v953 = vunpack.c.l.b16 %v220
    %v954 = vunpack.c.h.b16 %v220
    %v955 = vunpack.c.l.b16 %v221
    %v956 = vunpack.c.h.b16 %v221
    %v957 = vunpack.c.l.b16 %v222
    %v958 = vunpack.c.h.b16 %v222
    %v959 = vunpack.c.l.b16 %v223
    %v960 = vunpack.c.h.b16 %v223
    %v961 = vunpack.c.l.b16 %v224
    %v962 = vunpack.c.h.b16 %v224
    %v963 = vunpack.c.l.b16 %v225
    %v964 = vunpack.c.h.b16 %v225
    %v965 = vunpack.c.l.b16 %v226
    %v966 = vunpack.c.h.b16 %v226
    %v967 = vunpack.c.l.b16 %v227
    %v968 = vunpack.c.h.b16 %v227
    %v969 = vunpack.c.l.b16 %v228
    %v970 = vunpack.c.h.b16 %v228
    %v971 = vunpack.c.l.b16 %v229
    %v972 = vunpack.c.h.b16 %v229
    %v973 = vunpack.c.l.b16 %v230
    %v974 = vunpack.c.h.b16 %v230
    %v975 = vunpack.c.l.b16 %v231
    %v976 = vunpack.c.h.b16 %v231
    %v977 = vunpack.c.l.b16 %v232
    %v978 = vunpack.c.h.b16 %v232
    %v979 = vunpack.c.l.b16 %v233
    %v980 = vunpack.c.h.b16 %v233
    %v981 = vunpack.c.l.b16 %v234
    %v982 = vunpack.c.h.b16 %v234
    %v983 = vunpack.c.l.b16 %v235
    %v984 = vunpack.c.h.b16 %v235
    %v985 = vunpack.c.l.b16 %v236
    %v986 = vunpack.c.h.b16 %v236
    %v987 = vunpack.c.l.b16 %v237
    %v988 = vunpack.c.h.b16 %v237
    %v989 = vunpack.c.l.b16 %v238
    %v990 = vunpack.c.h.b16 %v238
    %v991 = vunpack.c.l.b16 %v239
    %v992 = vunpack.c.h.b16 %v239
    %v993 = vunpack.c.l.b16 %v240
    %v994 = vunpack.c.h.b16 %v240
    %v995 = vunpack.c.l.b16 %v241
    %v996 = vunpack.c.h.b16 %v241
    %v997 = vunpack.c.l.b16 %v242
    %v998 = vunpack.c.h.b16 %v242
    %v999 = vunpack.c.l.b16 %v243
    %v1000 = vunpack.c.h.b16 %v243
    %v1001 = vunpack.c.l.b16 %v244
    %v1002 = vunpack.c.h.b16 %v244
    %v1003 = vunpack.c.l.b16 %v245
    %v1004 = vunpack.c.h.b16 %v245
    %v1005 = vunpack.c.l.b16 %v246
    %v1006 = vunpack.c.h.b16 %v246
    %v1007 = vunpack.c.l.b16 %v247
    %v1008 = vunpack.c.h.b16 %v247
    %v1009 = vunpack.c.l.b16 %v248
    %v1010 = vunpack.c.h.b16 %v248
    %v1011 = vunpack.c.l.b16 %v249
    %v1012 = vunpack.c.h.b16 %v249
    %v1013 = vunpack.c.l.b16 %v250
    %v1014 = vunpack.c.h.b16 %v250
    %v1015 = vunpack.c.l.b16 %v251
    %v1016 = vunpack.c.h.b16 %v251
    %v1017 = vunpack.c.l.b16 %v252
    %v1018 = vunpack.c.h.b16 %v252
    %v1019 = vunpack.c.l.b16 %v253
    %v1020 = vunpack.c.h.b16 %v253
    %v1021 = vunpack.c.l.b16 %v254
    %v1022 = vunpack.c.h.b16 %v254
    %v1023 = vunpack.c.l.b16 %v255
    %v1024 = vunpack.c.h.b16 %v255
    %v1025 = vunpack.c.l.b16 %v256
    %v1026 = vunpack.c.h.b16 %v256
    %v1027 = vunpack.c.l.b16 %v257
    %v1028 = vunpack.c.h.b16 %v257
    %v1029 = vunpack.c.l.b16 %v258
    %v1030 = vunpack.c.h.b16 %v258
    %v1031 = vunpack.c.l.b16 %v259
    %v1032 = vunpack.c.h.b16 %v259
    %v1033 = vunpack.c.l.b16 %v260
    %v1034 = vunpack.c.h.b16 %v260
    %v1035 = vunpack.c.l.b16 %v261
    %v1036 = vunpack.c.h.b16 %v261
    %v1037 = vunpack.c.l.b16 %v262
    %v1038 = vunpack.c.h.b16 %v262
    %v1039 = vunpack.c.l.b16 %v263
    %v1040 = vunpack.c.h.b16 %v263
    %v1041 = vunpack.c.l.b16 %v264
    %v1042 = vunpack.c.h.b16 %v264
    %v1043 = vunpack.c.l.b16 %v265
    %v1044 = vunpack.c.h.b16 %v265
    %v1045 = vunpack.c.l.b16 %v266
    %v1046 = vunpack.c.h.b16 %v266
    %v1047 = vunpack.c.l.b16 %v267
    %v1048 = vunpack.c.h.b16 %v267
    %v1049 = vunpack.c.l.b16 %v268
    %v1050 = vunpack.c.h.b16 %v268
    %v1051 = vunpack.c.l.b16 %v269
    %v1052 = vunpack.c.h.b16 %v269
    %v1053 = vunpack.c.l.b16 %v270
    %v1054 = vunpack.c.h.b16 %v270
    %v1055 = vunpack.c.l.b16 %v271
    %v1056 = vunpack.c.h.b16 %v271
    %v1057 = vunpack.c.l.b16 %v272
    %v1058 = vunpack.c.h.b16 %v272
    %v1059 = vunpack.c.l.b16 %v273
    %v1060 = vunpack.c.h.b16 %v273
    %v1061 = vunpack.c.l.b16 %v274
    %v1062 = vunpack.c.h.b16 %v274
    %v1063 = vunpack.c.l.b16 %v275
    %v1064 = vunpack.c.h.b16 %v275
    %v1065 = vunpack.c.l.b16 %v276
    %v1066 = vunpack.c.h.b16 %v276
    %v1067 = vunpack.c.l.b16 %v277
    %v1068 = vunpack.c.h.b16 %v277
    %v1069 = vunpack.c.l.b16 %v278
    %v1070 = vunpack.c.h.b16 %v278
    %v1071 = vunpack.c.l.b16 %v279
    %v1072 = vunpack.c.h.b16 %v279
    %v1073 = vunpack.c.l.b16 %v280
    %v1074 = vunpack.c.h.b16 %v280
    %v1075 = vunpack.c.l.b16 %v281
    %v1076 = vunpack.c.h.b16 %v281
    %v1077 = vunpack.c.l.b16 %v282
    %v1078 = vunpack.c.h.b16 %v282
    %v1079 = vunpack.c.l.b16 %v283
    %v1080 = vunpack.c.h.b16 %v283
    %v1081 = vunpack.c.l.b16 %v284
    %v1082 = vunpack.c.h.b16 %v284
    %v1083 = vunpack.c.l.b16 %v285
    %v1084 = vunpack.c.h.b16 %v285
    %v1085 = vunpack.c.l.b16 %v286
    %v1086 = vunpack.c.h.b16 %v286
    %v1087 = vunpack.c.l.b16 %v287
    %v1088 = vunpack.c.h.b16 %v287
    %v1089 = vunpack.c.l.b16 %v288
    %v1090 = vunpack.c.h.b16 %v288
    %v1091 = vunpack.c.l.b16 %v289
    %v1092 = vunpack.c.h.b16 %v289
    %v1093 = vunpack.c.l.b16 %v290
    %v1094 = vunpack.c.h.b16 %v290
    %v1095 = vunpack.c.l.b16 %v291
    %v1096 = vunpack.c.h.b16 %v291
    %v1097 = vunpack.c.l.b16 %v292
    %v1098 = vunpack.c.h.b16 %v292
    %v1099 = vunpack.c.l.b16 %v293
    %v1100 = vunpack.c.h.b16 %v293
    %v1101 = vunpack.c.l.b16 %v294
    %v1102 = vunpack.c.h.b16 %v294
    %v1103 = vunpack.c.l.b16 %v295
    %v1104 = vunpack.c.h.b16 %v295
    %v1105 = vunpack.c.l.b16 %v296
    %v1106 = vunpack.c.h.b16 %v296
    %v1107 = vunpack.c.l.b16 %v297
    %v1108 = vunpack.c.h.b16 %v297
    %v1109 = vunpack.c.l.b16 %v298
    %v1110 = vunpack.c.h.b16 %v298
    %v1111 = vunpack.c.l.b16 %v299
    %v1112 = vunpack.c.h.b16 %v299
    %v1113 = vunpack.c.l.b16 %v300
    %v1114 = vunpack.c.h.b16 %v300
    %v1115 = vunpack.c.l.b16 %v301
    %v1116 = vunpack.c.h.b16 %v301
    %v1117 = vunpack.c.l.b16 %v302
    %v1118 = vunpack.c.h.b16 %v302
    %v1119 = vunpack.c.l.b16 %v303
    %v1120 = vunpack.c.h.b16 %v303
    %v1121 = vunpack.c.l.b16 %v304
    %v1122 = vunpack.c.h.b16 %v304
    %v1123 = vunpack.c.l.b16 %v305
    %v1124 = vunpack.c.h.b16 %v305
    %v1125 = vunpack.c.l.b16 %v306
    %v1126 = vunpack.c.h.b16 %v306
    %v1127 = vunpack.c.l.b16 %v307
    %v1128 = vunpack.c.h.b16 %v307
    %v1129 = vunpack.c.l.b16 %v308
    %v1130 = vunpack.c.h.b16 %v308
    %v1131 = vunpack.c.l.b16 %v309
    %v1132 = vunpack.c.h.b16 %v309
    %v1133 = vunpack.c.l.b16 %v310
    %v1134 = vunpack.c.h.b16 %v310
    %v1135 = vunpack.c.l.b16 %v311
    %v1136 = vunpack.c.h.b16 %v311
    %v1137 = vunpack.c.l.b16 %v312
    %v1138 = vunpack.c.h.b16 %v312
    %v1139 = vunpack.c.l.b16 %v313
    %v1140 = vunpack.c.h.b16 %v313
    %v1141 = vunpack.c.l.b16 %v314
    %v1142 = vunpack.c.h.b16 %v314
    %v1143 = vunpack.c.l.b16 %v315
    %v1144 = vunpack.c.h.b16 %v315
    %v1145 = vunpack.c.l.b16 %v316
    %v1146 = vunpack.c.h.b16 %v316
    %v1147 = vunpack.c.l.b16 %v317
    %v1148 = vunpack.c.h.b16 %v317
    %v1149 = vunpack.c.l.b16 %v318
    %v1150 = vunpack.c.h.b16 %v318
    %v1151 = vunpack.c.l.b16 %v319
    %v1152 = vunpack.c.h.b16 %v319
    %v1153 = vunpack.c.l.b16 %v320
    %v1154 = vunpack.c.h.b16 %v320
    %v1155 = vunpack.c.l.b16 %v321
    %v1156 = vunpack.c.h.b16 %v321
    %v1157 = vunpack.c.l.b16 %v322
    %v1158 = vunpack.c.h.b16 %v322
    %v1159 = vunpack.c.l.b16 %v323
    %v1160 = vunpack.c.h.b16 %v323
    %v1161 = vunpack.c.l.b16 %v324
    %v1162 = vunpack.c.h.b16 %v324
    %v1163 = vunpack.c.l.b16 %v325
    %v1164 = vunpack.c.h.b16 %v325
    %v1165 = vunpack.c.l.b16 %v326
    %v1166 = vunpack.c.h.b16 %v326
    %v1167 = vunpack.c.l.b16 %v327
    %v1168 = vunpack.c.h.b16 %v327
    %v1169 = vunpack.c.l.b16 %v328
    %v1170 = vunpack.c.h.b16 %v328
    %v1171 = vunpack.c.l.b16 %v329
    %v1172 = vunpack.c.h.b16 %v329
    %v1173 = vunpack.c.l.b16 %v330
    %v1174 = vunpack.c.h.b16 %v330
    %v1175 = vunpack.c.l.b16 %v331
    %v1176 = vunpack.c.h.b16 %v331
    %v1177 = vunpack.c.l.b16 %v332
    %v1178 = vunpack.c.h.b16 %v332
    %v1179 = vunpack.c.l.b16 %v333
    %v1180 = vunpack.c.h.b16 %v333
    %v1181 = vunpack.c.l.b16 %v334
    %v1182 = vunpack.c.h.b16 %v334
    %v1183 = vunpack.c.l.b16 %v335
    %v1184 = vunpack.c.h.b16 %v335
    %v1185 = vunpack.c.l.b16 %v336
    %v1186 = vunpack.c.h.b16 %v336
    %v1187 = vunpack.c.l.b16 %v337
    %v1188 = vunpack.c.h.b16 %v337
    %v1189 = vunpack.c.l.b16 %v338
    %v1190 = vunpack.c.h.b16 %v338
    %v1191 = vunpack.c.l.b16 %v339
    %v1192 = vunpack.c.h.b16 %v339
    %v1193 = vunpack.c.l.b16 %v340
    %v1194 = vunpack.c.h.b16 %v340
    %v1195 = vunpack.c.l.b16 %v341
    %v1196 = vunpack.c.h.b16 %v341
    %v1197 = vunpack.c.l.b16 %v342
    %v1198 = vunpack.c.h.b16 %v342
    %v1199 = vunpack.c.l.b16 %v343
    %v1200 = vunpack.c.h.b16 %v343
    %v1201 = vunpack.c.l.b16 %v344
    %v1202 = vunpack.c.h.b16 %v344
    %v1203 = vunpack.c.l.b16 %v345
    %v1204 = vunpack.c.h.b16 %v345
    %v1205 = vunpack.c.l.b16 %v346
    %v1206 = vunpack.c.h.b16 %v346
    %v1207 = vunpack.c.l.b16 %v347
    %v1208 = vunpack.c.h.b16 %v347
    %v1209 = vunpack.c.l.b16 %v348
    %v1210 = vunpack.c.h.b16 %v348
    %v1211 = vunpack.c.l.b16 %v349
    %v1212 = vunpack.c.h.b16 %v349
    %v1213 = vunpack.c.l.b16 %v350
    %v1214 = vunpack.c.h.b16 %v350
    %v1215 = vunpack.c.l.b16 %v351
    %v1216 = vunpack.c.h.b16 %v351
    %v1217 = vunpack.c.l.b16 %v352
    %v1218 = vunpack.c.h.b16 %v352
    %v1219 = vunpack.c.l.b16 %v353
    %v1220 = vunpack.c.h.b16 %v353
    %v1221 = vunpack.c.l.b16 %v354
    %v1222 = vunpack.c.h.b16 %v354
    %v1223 = vunpack.c.l.b16 %v355
    %v1224 = vunpack.c.h.b16 %v355
    %v1225 = vunpack.c.l.b16 %v356
    %v1226 = vunpack.c.h.b16 %v356
    %v1227 = vunpack.c.l.b16 %v357
    %v1228 = vunpack.c.h.b16 %v357
    %v1229 = vunpack.c.l.b16 %v358
    %v1230 = vunpack.c.h.b16 %v358
    %v1231 = vunpack.c.l.b16 %v359
    %v1232 = vunpack.c.h.b16 %v359
    %v1233 = vunpack.c.l.b16 %v360
    %v1234 = vunpack.c.h.b16 %v360
    %v1235 = vunpack.c.l.b16 %v361
    %v1236 = vunpack.c.h.b16 %v361
    %v1237 = vunpack.c.l.b16 %v362
    %v1238 = vunpack.c.h.b16 %v362
    %v1239 = vunpack.c.l.b16 %v363
    %v1240 = vunpack.c.h.b16 %v363
    %v1241 = vunpack.c.l.b16 %v364
    %v1242 = vunpack.c.h.b16 %v364
    %v1243 = vunpack.c.l.b16 %v365
    %v1244 = vunpack.c.h.b16 %v365
    %v1245 = vunpack.c.l.b16 %v366
    %v1246 = vunpack.c.h.b16 %v366
    %v1247 = vunpack.c.l.b16 %v367
    %v1248 = vunpack.c.h.b16 %v367
    %v1249 = vunpack.c.l.b16 %v368
    %v1250 = vunpack.c.h.b16 %v368
    %v1251 = vunpack.c.l.b16 %v369
    %v1252 = vunpack.c.h.b16 %v369
    %v1253 = vunpack.c.l.b16 %v370
    %v1254 = vunpack.c.h.b16 %v370
    %v1255 = vunpack.c.l.b16 %v371
    %v1256 = vunpack.c.h.b16 %v371
    %v1257 = vunpack.c.l.b16 %v372
    %v1258 = vunpack.c.h.b16 %v372
    %v1259 = vunpack.c.l.b16 %v373
    %v1260 = vunpack.c.h.b16 %v373
    %v1261 = vunpack.c.l.b16 %v374
    %v1262 = vunpack.c.h.b16 %v374
    %v1263 = vunpack.c.l.b16 %v375
    %v1264 = vunpack.c.h.b16 %v375
    %v1265 = vunpack.c.l.b16 %v376
    %v1266 = vunpack.c.h.b16 %v376
    %v1267 = vunpack.c.l.b16 %v377
    %v1268 = vunpack.c.h.b16 %v377
    %v1269 = vunpack.c.l.b16 %v378
    %v1270 = vunpack.c.h.b16 %v378
    %v1271 = vunpack.c.l.b16 %v379
    %v1272 = vunpack.c.h.b16 %v379
    %v1273 = vunpack.c.l.b16 %v380
    %v1274 = vunpack.c.h.b16 %v380
    %v1275 = vunpack.c.l.b16 %v381
    %v1276 = vunpack.c.h.b16 %v381
    %v1277 = vunpack.c.l.b16 %v382
    %v1278 = vunpack.c.h.b16 %v382
    %v1279 = vunpack.c.l.b16 %v383
    %v1280 = vunpack.c.h.b16 %v383
    %v1281 = vunpack.c.l.b16 %v384
    %v1282 = vunpack.c.h.b16 %v384
    %v1283 = vunpack.c.l.b16 %v385
    %v1284 = vunpack.c.h.b16 %v385
    %v1285 = vunpack.c.l.b16 %v386
    %v1286 = vunpack.c.h.b16 %v386
    %v1287 = vunpack.c.l.b16 %v387
    %v1288 = vunpack.c.h.b16 %v387
    %v1289 = vunpack.c.l.b16 %v388
    %v1290 = vunpack.c.h.b16 %v388
    %v1291 = vunpack.c.l.b16 %v389
    %v1292 = vunpack.c.h.b16 %v389
    %v1293 = vunpack.c.l.b16 %v390
    %v1294 = vunpack.c.h.b16 %v390
    %v1295 = vunpack.c.l.b16 %v391
    %v1296 = vunpack.c.h.b16 %v391
    %v1297 = vunpack.c.l.b16 %v392
    %v1298 = vunpack.c.h.b16 %v392
    %v1299 = vunpack.c.l.b16 %v393
    %v1300 = vunpack.c.h.b16 %v393
    %v1301 = vunpack.c.l.b16 %v394
    %v1302 = vunpack.c.h.b16 %v394
    %v1303 = vunpack.c.l.b16 %v395
    %v1304 = vunpack.c.h.b16 %v395
    %v1305 = vunpack.c.l.b16 %v396
    %v1306 = vunpack.c.h.b16 %v396
    %v1307 = vunpack.c.l.b16 %v397
    %v1308 = vunpack.c.h.b16 %v397
    %v1309 = vunpack.c.l.b16 %v398
    %v1310 = vunpack.c.h.b16 %v398
    %v1311 = vunpack.c.l.b16 %v399
    %v1312 = vunpack.c.h.b16 %v399
    %v1313 = vunpack.c.l.b16 %v400
    %v1314 = vunpack.c.h.b16 %v400
    %v1315 = vunpack.c.l.b16 %v401
    %v1316 = vunpack.c.h.b16 %v401
    %v1317 = vunpack.c.l.b16 %v402
    %v1318 = vunpack.c.h.b16 %v402
    %v1319 = vunpack.c.l.b16 %v403
    %v1320 = vunpack.c.h.b16 %v403
    %v1321 = vunpack.c.l.b16 %v404
    %v1322 = vunpack.c.h.b16 %v404
    %v1323 = vunpack.c.l.b16 %v405
    %v1324 = vunpack.c.h.b16 %v405
    %v1325 = vunpack.c.l.b16 %v406
    %v1326 = vunpack.c.h.b16 %v406
    %v1327 = vunpack.c.l.b16 %v407
    %v1328 = vunpack.c.h.b16 %v407
    %v1329 = vunpack.c.l.b16 %v408
    %v1330 = vunpack.c.h.b16 %v408
    %v1331 = vunpack.c.l.b16 %v409
    %v1332 = vunpack.c.h.b16 %v409
    %v1333 = vunpack.c.l.b16 %v410
    %v1334 = vunpack.c.h.b16 %v410
    %v1335 = vunpack.c.l.b16 %v411
    %v1336 = vunpack.c.h.b16 %v411
    %v1337 = vunpack.c.l.b16 %v412
    %v1338 = vunpack.c.h.b16 %v412
    %v1339 = vunpack.c.l.b16 %v413
    %v1340 = vunpack.c.h.b16 %v413
    %v1341 = vunpack.c.l.b16 %v414
    %v1342 = vunpack.c.h.b16 %v414
    %v1343 = vunpack.c.l.b16 %v415
    %v1344 = vunpack.c.h.b16 %v415
    %v1345 = vunpack.c.l.b16 %v416
    %v1346 = vunpack.c.h.b16 %v416
    %v1347 = vunpack.c.l.b16 %v417
    %v1348 = vunpack.c.h.b16 %v417
    %v1349 = vunpack.c.l.b16 %v418
    %v1350 = vunpack.c.h.b16 %v418
    %v1351 = vunpack.c.l.b16 %v419
    %v1352 = vunpack.c.h.b16 %v419
    %v1353 = vunpack.c.l.b16 %v420
    %v1354 = vunpack.c.h.b16 %v420
    %v1355 = vunpack.c.l.b16 %v421
    %v1356 = vunpack.c.h.b16 %v421
    %v1357 = vunpack.c.l.b16 %v422
    %v1358 = vunpack.c.h.b16 %v422
    %v1359 = vunpack.c.l.b16 %v423
    %v1360 = vunpack.c.h.b16 %v423
    %v1361 = vunpack.c.l.b16 %v424
    %v1362 = vunpack.c.h.b16 %v424
    %v1363 = vunpack.c.l.b16 %v425
    %v1364 = vunpack.c.h.b16 %v425
    %v1365 = vunpack.c.l.b16 %v426
    %v1366 = vunpack.c.h.b16 %v426
    %v1367 = vunpack.c.l.b16 %v427
    %v1368 = vunpack.c.h.b16 %v427
    %v1369 = vunpack.c.l.b16 %v428
    %v1370 = vunpack.c.h.b16 %v428
    %v1371 = vunpack.c.l.b16 %v429
    %v1372 = vunpack.c.h.b16 %v429
    %v1373 = vunpack.c.l.b16 %v430
    %v1374 = vunpack.c.h.b16 %v430
    %v1375 = vunpack.c.l.b16 %v431
    %v1376 = vunpack.c.h.b16 %v431
    %v1377 = vunpack.c.l.b16 %v432
    %v1378 = vunpack.c.h.b16 %v432
    %v1379 = vunpack.c.l.b16 %v433
    %v1380 = vunpack.c.h.b16 %v433
    %v1381 = vunpack.c.l.b16 %v434
    %v1382 = vunpack.c.h.b16 %v434
    %v1383 = vunpack.c.l.b16 %v435
    %v1384 = vunpack.c.h.b16 %v435
    %v1385 = vunpack.c.l.b16 %v436
    %v1386 = vunpack.c.h.b16 %v436
    %v1387 = vunpack.c.l.b16 %v437
    %v1388 = vunpack.c.h.b16 %v437
    %v1389 = vunpack.c.l.b16 %v438
    %v1390 = vunpack.c.h.b16 %v438
    %v1391 = vunpack.c.l.b16 %v439
    %v1392 = vunpack.c.h.b16 %v439
    %v1393 = vunpack.c.l.b16 %v440
    %v1394 = vunpack.c.h.b16 %v440
    %v1395 = vunpack.c.l.b16 %v441
    %v1396 = vunpack.c.h.b16 %v441
    %v1397 = vunpack.c.l.b16 %v442
    %v1398 = vunpack.c.h.b16 %v442
    %v1399 = vunpack.c.l.b16 %v443
    %v1400 = vunpack.c.h.b16 %v443
    %v1401 = vunpack.c.l.b16 %v444
    %v1402 = vunpack.c.h.b16 %v444
    %v1403 = vunpack.c.l.b16 %v445
    %v1404 = vunpack.c.h.b16 %v445
    %v1405 = vunpack.c.l.b16 %v446
    %v1406 = vunpack.c.h.b16 %v446
    %v1407 = vunpack.c.l.b16 %v447
    %v1408 = vunpack.c.h.b16 %v447
    %v1409 = vunpack.c.l.b16 %v448
    %v1410 = vunpack.c.h.b16 %v448
    %v1411 = vunpack.c.l.b16 %v449
    %v1412 = vunpack.c.h.b16 %v449
    %v1413 = vunpack.c.l.b16 %v450
    %v1414 = vunpack.c.h.b16 %v450
    %v1415 = vunpack.c.l.b16 %v451
    %v1416 = vunpack.c.h.b16 %v451
    %v1417 = vunpack.c.l.b16 %v452
    %v1418 = vunpack.c.h.b16 %v452
    %v1419 = vunpack.c.l.b16 %v453
    %v1420 = vunpack.c.h.b16 %v453
    %v1421 = vunpack.c.l.b16 %v454
    %v1422 = vunpack.c.h.b16 %v454
    %v1423 = vunpack.c.l.b16 %v455
    %v1424 = vunpack.c.h.b16 %v455
    %v1425 = vunpack.c.l.b16 %v456
    %v1426 = vunpack.c.h.b16 %v456
    %v1427 = vunpack.c.l.b16 %v457
    %v1428 = vunpack.c.h.b16 %v457
    %v1429 = vunpack.c.l.b16 %v458
    %v1430 = vunpack.c.h.b16 %v458
    %v1431 = vunpack.c.l.b16 %v459
    %v1432 = vunpack.c.h.b16 %v459
    %v1433 = vunpack.c.l.b16 %v460
    %v1434 = vunpack.c.h.b16 %v460
    %v1435 = vunpack.c.l.b16 %v461
    %v1436 = vunpack.c.h.b16 %v461
    %v1437 = vunpack.c.l.b16 %v462
    %v1438 = vunpack.c.h.b16 %v462
    %v1439 = vunpack.c.l.b16 %v463
    %v1440 = vunpack.c.h.b16 %v463
    %v1441 = vunpack.c.l.b16 %v464
    %v1442 = vunpack.c.h.b16 %v464
    %v1443 = vunpack.c.l.b16 %v465
    %v1444 = vunpack.c.h.b16 %v465
    %v1445 = vunpack.c.l.b16 %v466
    %v1446 = vunpack.c.h.b16 %v466
    %v1447 = vunpack.c.l.b16 %v467
    %v1448 = vunpack.c.h.b16 %v467
    %v1449 = vunpack.c.l.b16 %v468
    %v1450 = vunpack.c.h.b16 %v468
    %v1451 = vunpack.c.l.b16 %v469
    %v1452 = vunpack.c.h.b16 %v469
    %v1453 = vunpack.c.l.b16 %v470
    %v1454 = vunpack.c.h.b16 %v470
    %v1455 = vunpack.c.l.b16 %v471
    %v1456 = vunpack.c.h.b16 %v471
    %v1457 = vunpack.c.l.b16 %v472
    %v1458 = vunpack.c.h.b16 %v472
    %v1459 = vunpack.c.l.b16 %v473
    %v1460 = vunpack.c.h.b16 %v473
    %v1461 = vunpack.c.l.b16 %v474
    %v1462 = vunpack.c.h.b16 %v474
    %v1463 = vunpack.c.l.b16 %v475
    %v1464 = vunpack.c.h.b16 %v475
    %v1465 = vunpack.c.l.b16 %v476
    %v1466 = vunpack.c.h.b16 %v476
    %v1467 = vunpack.c.l.b16 %v477
    %v1468 = vunpack.c.h.b16 %v477
    %v1469 = vunpack.c.l.b16 %v478
    %v1470 = vunpack.c.h.b16 %v478
    %v1471 = vunpack.c.l.b16 %v479
    %v1472 = vunpack.c.h.b16 %v479
    %v1473 = vunpack.c.l.b16 %v480
    %v1474 = vunpack.c.h.b16 %v480
    %v1475 = vunpack.c.l.b16 %v481
    %v1476 = vunpack.c.h.b16 %v481
    %v1477 = vunpack.c.l.b16 %v482
    %v1478 = vunpack.c.h.b16 %v482
    %v1479 = vunpack.c.l.b16 %v483
    %v1480 = vunpack.c.h.b16 %v483
    %v1481 = vunpack.c.l.b16 %v484
    %v1482 = vunpack.c.h.b16 %v484
    %v1483 = vunpack.c.l.b16 %v485
    %v1484 = vunpack.c.h.b16 %v485
    %v1485 = vunpack.c.l.b16 %v486
    %v1486 = vunpack.c.h.b16 %v486
    %v1487 = vunpack.c.l.b16 %v487
    %v1488 = vunpack.c.h.b16 %v487
    %v1489 = vunpack.c.l.b16 %v488
    %v1490 = vunpack.c.h.b16 %v488
    %v1491 = vunpack.c.l.b16 %v489
    %v1492 = vunpack.c.h.b16 %v489
    %v1493 = vunpack.c.l.b16 %v490
    %v1494 = vunpack.c.h.b16 %v490
    %v1495 = vunpack.c.l.b16 %v491
    %v1496 = vunpack.c.h.b16 %v491
    %v1497 = vunpack.c.l.b16 %v492
    %v1498 = vunpack.c.h.b16 %v492
    %v1499 = vunpack.c.l.b16 %v493
    %v1500 = vunpack.c.h.b16 %v493
    %v1501 = vunpack.c.l.b16 %v494
    %v1502 = vunpack.c.h.b16 %v494
    %v1503 = vunpack.c.l.b16 %v495
    %v1504 = vunpack.c.h.b16 %v495
    %v1505 = vunpack.c.l.b16 %v496
    %v1506 = vunpack.c.h.b16 %v496
    %v1507 = vunpack.c.l.b16 %v497
    %v1508 = vunpack.c.h.b16 %v497
    %v1509 = vunpack.c.l.b16 %v498
    %v1510 = vunpack.c.h.b16 %v498
    %v1511 = vunpack.c.l.b16 %v499
    %v1512 = vunpack.c.h.b16 %v499
    %v1513 = vunpack.c.l.b16 %v500
    %v1514 = vunpack.c.h.b16 %v500
    %v1515 = vunpack.c.l.b16 %v501
    %v1516 = vunpack.c.h.b16 %v501
    %v1517 = vunpack.c.l.b16 %v502
    %v1518 = vunpack.c.h.b16 %v502
    %v1519 = vunpack.c.l.b16 %v503
    %v1520 = vunpack.c.h.b16 %v503
    %v1521 = vunpack.c.l.b16 %v504
    %v1522 = vunpack.c.h.b16 %v504
    %v1523 = vunpack.c.l.b16 %v505
    %v1524 = vunpack.c.h.b16 %v505
    %v1525 = vunpack.c.l.b16 %v506
    %v1526 = vunpack.c.h.b16 %v506
    %v1527 = vunpack.c.l.b16 %v507
    %v1528 = vunpack.c.h.b16 %v507
    %v1529 = vunpack.c.l.b16 %v508
    %v1530 = vunpack.c.h.b16 %v508
    %v1531 = vunpack.c.l.b16 %v509
    %v1532 = vunpack.c.h.b16 %v509
    %v1533 = vunpack.c.l.b16 %v510
    %v1534 = vunpack.c.h.b16 %v510
    %v1535 = vunpack.c.l.b16 %v511
    %v1536 = vunpack.c.h.b16 %v511
    %v1537 = vunpack.c.l.b16 %v512
    %v1538 = vunpack.c.h.b16 %v512
    %v1539 = vunpack.c.l.b16 %v513
    %v1540 = vunpack.c.h.b16 %v513
    %v1541 = vunpack.c.l.b16 %v514
    %v1542 = vunpack.c.h.b16 %v514
    %v1543 = vunpack.c.l.b16 %v515
    %v1544 = vunpack.c.h.b16 %v515
    %v1545 = vunpack.c.l.b16 %v516
    %v1546 = vunpack.c.h.b16 %v516
    %v1547 = vunpack.c.l.b16 %v517
    %v1548 = vunpack.c.h.b16 %v517
    %v1549 = vunpack.c.l.b16 %v518
    %v1550 = vunpack.c.h.b16 %v518
    %v1551 = vunpack.c.l.b16 %v519
    %v1552 = vunpack.c.h.b16 %v519
    %v1553 = vunpack.c.l.b16 %v520
    %v1554 = vunpack.c.h.b16 %v520
    %v1555 = vunpack.c.l.b16 %v521
    %v1556 = vunpack.c.h.b16 %v521
    %v1557 = vunpack.c.l.b16 %v522
    %v1558 = vunpack.c.h.b16 %v522
    %v1559 = vunpack.c.l.b16 %v523
    %v1560 = vunpack.c.h.b16 %v523
    %v1561 = vunpack.c.l.b16 %v524
    %v1562 = vunpack.c.h.b16 %v524
    %v1563 = vunpack.c.l.b16 %v525
    %v1564 = vunpack.c.h.b16 %v525
    %v1565 = vunpack.c.l.b16 %v526
    %v1566 = vunpack.c.h.b16 %v526
    %v1567 = vunpack.c.l.b16 %v527
    %v1568 = vunpack.c.h.b16 %v527
    %v1569 = vunpack.c.l.b16 %v528
    %v1570 = vunpack.c.h.b16 %v528
    %v1571 = vpack.c.b16 %v887, %v883
    %v1572 = vpack.c.b16 %v888, %v884
    %v1573 = vpack.c.b16 %v889, %v885
    %v1574 = vpack.c.b16 %v890, %v886
    %v1575 = vpack.c.b16 %v895, %v891
    %v1576 = vpack.c.b16 %v896, %v892
    %v1577 = vpack.c.b16 %v897, %v893
    %v1578 = vpack.c.b16 %v898, %v894
    %v1579 = vpack.c.b16 %v903, %v899
    %v1580 = vpack.c.b16 %v904, %v900
    %v1581 = vpack.c.b16 %v905, %v901
    %v1582 = vpack.c.b16 %v906, %v902
    %v1583 = vpack.c.b16 %v911, %v907
    %v1584 = vpack.c.b16 %v912, %v908
    %v1585 = vpack.c.b16 %v913, %v909
    %v1586 = vpack.c.b16 %v914, %v910
    %v1587 = vpack.c.b16 %v919, %v915
    %v1588 = vpack.c.b16 %v920, %v916
    %v1589 = vpack.c.b16 %v921, %v917
    %v1590 = vpack.c.b16 %v922, %v918
    %v1591 = vpack.c.b16 %v927, %v923
    %v1592 = vpack.c.b16 %v928, %v924
    %v1593 = vpack.c.b16 %v929, %v925
    %v1594 = vpack.c.b16 %v930, %v926
    %v1595 = vpack.c.b16 %v935, %v931
    %v1596 = vpack.c.b16 %v936, %v932
    %v1597 = vpack.c.b16 %v937, %v933
    %v1598 = vpack.c.b16 %v938, %v934
    %v1599 = vpack.c.b16 %v943, %v939
    %v1600 = vpack.c.b16 %v944, %v940
    %v1601 = vpack.c.b16 %v945, %v941
    %v1602 = vpack.c.b16 %v946, %v942
    %v1603 = vpack.c.b16 %v951, %v947
    %v1604 = vpack.c.b16 %v952, %v948
    %v1605 = vpack.c.b16 %v953, %v949
    %v1606 = vpack.c.b16 %v954, %v950
    %v1607 = vpack.c.b16 %v959, %v955
    %v1608 = vpack.c.b16 %v960, %v956
    %v1609 = vpack.c.b16 %v961, %v957
    %v1610 = vpack.c.b16 %v962, %v958
    %v1611 = vpack.c.b16 %v967, %v963
    %v1612 = vpack.c.b16 %v968, %v964
    %v1613 = vpack.c.b16 %v969, %v965
    %v1614 = vpack.c.b16 %v970, %v966
    %v1615 = vpack.c.b16 %v975, %v971
    %v1616 = vpack.c.b16 %v976, %v972
    %v1617 = vpack.c.b16 %v977, %v973
    %v1618 = vpack.c.b16 %v978, %v974
    %v1619 = vpack.c.b16 %v983, %v979
    %v1620 = vpack.c.b16 %v984, %v980
    %v1621 = vpack.c.b16 %v985, %v981
    %v1622 = vpack.c.b16 %v986, %v982
    %v1623 = vpack.c.b16 %v991, %v987
    %v1624 = vpack.c.b16 %v992, %v988
    %v1625 = vpack.c.b16 %v993, %v989
    %v1626 = vpack.c.b16 %v994, %v990
    %v1627 = vpack.c.b16 %v999, %v995
    %v1628 = vpack.c.b16 %v1000, %v996
    %v1629 = vpack.c.b16 %v1001, %v997
    %v1630 = vpack.c.b16 %v1002, %v998
    %v1631 = vpack.c.b16 %v1007, %v1003
    %v1632 = vpack.c.b16 %v1008, %v1004
    %v1633 = vpack.c.b16 %v1009, %v1005
    %v1634 = vpack.c.b16 %v1010, %v1006
    %v1635 = vpack.c.b16 %v1015, %v1011
    %v1636 = vpack.c.b16 %v1016, %v1012
    %v1637 = vpack.c.b16 %v1017, %v1013
    %v1638 = vpack.c.b16 %v1018, %v1014
    %v1639 = vpack.c.b16 %v1023, %v1019
    %v1640 = vpack.c.b16 %v1024, %v1020
    %v1641 = vpack.c.b16 %v1025, %v1021
    %v1642 = vpack.c.b16 %v1026, %v1022
    %v1643 = vpack.c.b16 %v1031, %v1027
    %v1644 = vpack.c.b16 %v1032, %v1028
    %v1645 = vpack.c.b16 %v1033, %v1029
    %v1646 = vpack.c.b16 %v1034, %v1030
    %v1647 = vpack.c.b16 %v1039, %v1035
    %v1648 = vpack.c.b16 %v1040, %v1036
    %v1649 = vpack.c.b16 %v1041, %v1037
    %v1650 = vpack.c.b16 %v1042, %v1038
    %v1651 = vpack.c.b16 %v1047, %v1043
    %v1652 = vpack.c.b16 %v1048, %v1044
    %v1653 = vpack.c.b16 %v1049, %v1045
    %v1654 = vpack.c.b16 %v1050, %v1046
    %v1655 = vpack.c.b16 %v1055, %v1051
    %v1656 = vpack.c.b16 %v1056, %v1052
    %v1657 = vpack.c.b16 %v1057, %v1053
    %v1658 = vpack.c.b16 %v1058, %v1054
    %v1659 = vpack.c.b16 %v1063, %v1059
    %v1660 = vpack.c.b16 %v1064, %v1060
    %v1661 = vpack.c.b16 %v1065, %v1061
    %v1662 = vpack.c.b16 %v1066, %v1062
    %v1663 = vpack.c.b16 %v1071, %v1067
    %v1664 = vpack.c.b16 %v1072, %v1068
    %v1665 = vpack.c.b16 %v1073, %v1069
    %v1666 = vpack.c.b16 %v1074, %v1070
    %v1667 = vpack.c.b16 %v1079, %v1075
    %v1668 = vpack.c.b16 %v1080, %v1076
    %v1669 = vpack.c.b16 %v1081, %v1077
    %v1670 = vpack.c.b16 %v1082, %v1078
    %v1671 = vpack.c.b16 %v1087, %v1083
    %v1672 = vpack.c.b16 %v1088, %v1084
    %v1673 = vpack.c.b16 %v1089, %v1085
    %v1674 = vpack.c.b16 %v1090, %v1086
    %v1675 = vpack.c.b16 %v1095, %v1091
    %v1676 = vpack.c.b16 %v1096, %v1092
    %v1677 = vpack.c.b16 %v1097, %v1093
    %v1678 = vpack.c.b16 %v1098, %v1094
    %v1679 = vpack.c.b16 %v1103, %v1099
    %v1680 = vpack.c.b16 %v1104, %v1100
    %v1681 = vpack.c.b16 %v1105, %v1101
    %v1682 = vpack.c.b16 %v1106, %v1102
    %v1683 = vpack.c.b16 %v1111, %v1107
    %v1684 = vpack.c.b16 %v1112, %v1108
    %v1685 = vpack.c.b16 %v1113, %v1109
    %v1686 = vpack.c.b16 %v1114, %v1110
    %v1687 = vpack.c.b16 %v1119, %v1115
    %v1688 = vpack.c.b16 %v1120, %v1116
    %v1689 = vpack.c.b16 %v1121, %v1117
    %v1690 = vpack.c.b16 %v1122, %v1118
    %v1691 = vpack.c.b16 %v1127, %v1123
    %v1692 = vpack.c.b16 %v1128, %v1124
    %v1693 = vpack.c.b16 %v1129, %v1125
    %v1694 = vpack.c.b16 %v1130, %v1126
    %v1695 = vpack.c.b16 %v1135, %v1131
    %v1696 = vpack.c.b16 %v1136, %v1132
    %v1697 = vpack.c.b16 %v1137, %v1133
    %v1698 = vpack.c.b16 %v1138, %v1134
    %v1699 = vpack.c.b16 %v1143, %v1139
    %v1700 = vpack.c.b16 %v1144, %v1140
    %v1701 = vpack.c.b16 %v1145, %v1141
    %v1702 = vpack.c.b16 %v1146, %v1142
    %v1703 = vpack.c.b16 %v1151, %v1147
    %v1704 = vpack.c.b16 %v1152, %v1148
    %v1705 = vpack.c.b16 %v1153, %v1149
    %v1706 = vpack.c.b16 %v1154, %v1150
    %v1707 = vpack.c.b16 %v1159, %v1155
    %v1708 = vpack.c.b16 %v1160, %v1156
    %v1709 = vpack.c.b16 %v1161, %v1157
    %v1710 = vpack.c.b16 %v1162, %v1158
    %v1711 = vpack.c.b16 %v1167, %v1163
    %v1712 = vpack.c.b16 %v1168, %v1164
    %v1713 = vpack.c.b16 %v1169, %v1165
    %v1714 = vpack.c.b16 %v1170, %v1166
    %v1715 = vpack.c.b16 %v1175, %v1171
    %v1716 = vpack.c.b16 %v1176, %v1172
    %v1717 = vpack.c.b16 %v1177, %v1173
    %v1718 = vpack.c.b16 %v1178, %v1174
    %v1719 = vpack.c.b16 %v1183, %v1179
    %v1720 = vpack.c.b16 %v1184, %v1180
    %v1721 = vpack.c.b16 %v1185, %v1181
    %v1722 = vpack.c.b16 %v1186, %v1182
    %v1723 = vpack.c.b16 %v1191, %v1187
    %v1724 = vpack.c.b16 %v1192, %v1188
    %v1725 = vpack.c.b16 %v1193, %v1189
    %v1726 = vpack.c.b16 %v1194, %v1190
    %v1727 = vpack.c.b16 %v1199, %v1195
    %v1728 = vpack.c.b16 %v1200, %v1196
    %v1729 = vpack.c.b16 %v1201, %v1197
    %v1730 = vpack.c.b16 %v1202, %v1198
    %v1731 = vpack.c.b16 %v1207, %v1203
    %v1732 = vpack.c.b16 %v1208, %v1204
    %v1733 = vpack.c.b16 %v1209, %v1205
    %v1734 = vpack.c.b16 %v1210, %v1206
    %v1735 = vpack.c.b16 %v1215, %v1211
    %v1736 = vpack.c.b16 %v1216, %v1212
    %v1737 = vpack.c.b16 %v1217, %v1213
    %v1738 = vpack.c.b16 %v1218, %v1214
    %v1739 = vpack.c.b16 %v1223, %v1219
    %v1740 = vpack.c.b16 %v1224, %v1220
    %v1741 = vpack.c.b16 %v1225, %v1221
    %v1742 = vpack.c.b16 %v1226, %v1222
    %v1743 = vpack.c.b16 %v1231, %v1227
    %v1744 = vpack.c.b16 %v1232, %v1228
    %v1745 = vpack.c.b16 %v1233, %v1229
    %v1746 = vpack.c.b16 %v1234, %v1230
    %v1747 = vpack.c.b16 %v1239, %v1235
    %v1748 = vpack.c.b16 %v1240, %v1236
    %v1749 = vpack.c.b16 %v1241, %v1237
    %v1750 = vpack.c.b16 %v1242, %v1238
    %v1751 = vpack.c.b16 %v1247, %v1243
    %v1752 = vpack.c.b16 %v1248, %v1244
    %v1753 = vpack.c.b16 %v1249, %v1245
    %v1754 = vpack.c.b16 %v1250, %v1246
    %v1755 = vpack.c.b16 %v1255, %v1251
    %v1756 = vpack.c.b16 %v1256, %v1252
    %v1757 = vpack.c.b16 %v1257, %v1253
    %v1758 = vpack.c.b16 %v1258, %v1254
    %v1759 = vpack.c.b16 %v1263, %v1259
    %v1760 = vpack.c.b16 %v1264, %v1260
    %v1761 = vpack.c.b16 %v1265, %v1261
    %v1762 = vpack.c.b16 %v1266, %v1262
    %v1763 = vpack.c.b16 %v1271, %v1267
    %v1764 = vpack.c.b16 %v1272, %v1268
    %v1765 = vpack.c.b16 %v1273, %v1269
    %v1766 = vpack.c.b16 %v1274, %v1270
    %v1767 = vpack.c.b16 %v1279, %v1275
    %v1768 = vpack.c.b16 %v1280, %v1276
    %v1769 = vpack.c.b16 %v1281, %v1277
    %v1770 = vpack.c.b16 %v1282, %v1278
    %v1771 = vpack.c.b16 %v1287, %v1283
    %v1772 = vpack.c.b16 %v1288, %v1284
    %v1773 = vpack.c.b16 %v1289, %v1285
    %v1774 = vpack.c.b16 %v1290, %v1286
    %v1775 = vpack.c.b16 %v1295, %v1291
    %v1776 = vpack.c.b16 %v1296, %v1292
    %v1777 = vpack.c.b16 %v1297, %v1293
    %v1778 = vpack.c.b16 %v1298, %v1294
    %v1779 = vpack.c.b16 %v1303, %v1299
    %v1780 = vpack.c.b16 %v1304, %v1300
    %v1781 = vpack.c.b16 %v1305, %v1301
    %v1782 = vpack.c.b16 %v1306, %v1302
    %v1783 = vpack.c.b16 %v1311, %v1307
    %v1784 = vpack.c.b16 %v1312, %v1308
    %v1785 = vpack.c.b16 %v1313, %v1309
    %v1786 = vpack.c.b16 %v1314, %v1310
    %v1787 = vpack.c.b16 %v1319, %v1315
    %v1788 = vpack.c.b16 %v1320, %v1316
    %v1789 = vpack.c.b16 %v1321, %v1317
    %v1790 = vpack.c.b16 %v1322, %v1318
    %v1791 = vpack.c.b16 %v1327, %v1323
    %v1792 = vpack.c.b16 %v1328, %v1324
    %v1793 = vpack.c.b16 %v1329, %v1325
    %v1794 = vpack.c.b16 %v1330, %v1326
    %v1795 = vpack.c.b16 %v1335, %v1331
    %v1796 = vpack.c.b16 %v1336, %v1332
    %v1797 = vpack.c.b16 %v1337, %v1333
    %v1798 = vpack.c.b16 %v1338, %v1334
    %v1799 = vpack.c.b16 %v1343, %v1339
    %v1800 = vpack.c.b16 %v1344, %v1340
    %v1801 = vpack.c.b16 %v1345, %v1341
    %v1802 = vpack.c.b16 %v1346, %v1342
    %v1803 = vpack.c.b16 %v1351, %v1347
    %v1804 = vpack.c.b16 %v1352, %v1348
    %v1805 = vpack.c.b16 %v1353, %v1349
    %v1806 = vpack.c.b16 %v1354, %v1350
    %v1807 = vpack.c.b16 %v1359, %v1355
    %v1808 = vpack.c.b16 %v1360, %v1356
    %v1809 = vpack.c.b16 %v1361, %v1357
    %v1810 = vpack.c.b16 %v1362, %v1358
    %v1811 = vpack.c.b16 %v1367, %v1363
    %v1812 = vpack.c.b16 %v1368, %v1364
    %v1813 = vpack.c.b16 %v1369, %v1365
    %v1814 = vpack.c.b16 %v1370, %v1366
    %v1815 = vpack.c.b16 %v1375, %v1371
    %v1816 = vpack.c.b16 %v1376, %v1372
    %v1817 = vpack.c.b16 %v1377, %v1373
    %v1818 = vpack.c.b16 %v1378, %v1374
    %v1819 = vpack.c.b16 %v1383, %v1379
    %v1820 = vpack.c.b16 %v1384, %v1380
    %v1821 = vpack.c.b16 %v1385, %v1381
    %v1822 = vpack.c.b16 %v1386, %v1382
    %v1823 = vpack.c.b16 %v1391, %v1387
    %v1824 = vpack.c.b16 %v1392, %v1388
    %v1825 = vpack.c.b16 %v1393, %v1389
    %v1826 = vpack.c.b16 %v1394, %v1390
    %v1827 = vpack.c.b16 %v1399, %v1395
    %v1828 = vpack.c.b16 %v1400, %v1396
    %v1829 = vpack.c.b16 %v1401, %v1397
    %v1830 = vpack.c.b16 %v1402, %v1398
    %v1831 = vpack.c.b16 %v1407, %v1403
    %v1832 = vpack.c.b16 %v1408, %v1404
    %v1833 = vpack.c.b16 %v1409, %v1405
    %v1834 = vpack.c.b16 %v1410, %v1406
    %v1835 = vpack.c.b16 %v1415, %v1411
    %v1836 = vpack.c.b16 %v1416, %v1412
    %v1837 = vpack.c.b16 %v1417, %v1413
    %v1838 = vpack.c.b16 %v1418, %v1414
    %v1839 = vpack.c.b16 %v1423, %v1419
    %v1840 = vpack.c.b16 %v1424, %v1420
    %v1841 = vpack.c.b16 %v1425, %v1421
    %v1842 = vpack.c.b16 %v1426, %v1422
    %v1843 = vpack.c.b16 %v1431, %v1427
    %v1844 = vpack.c.b16 %v1432, %v1428
    %v1845 = vpack.c.b16 %v1433, %v1429
    %v1846 = vpack.c.b16 %v1434, %v1430
    %v1847 = vpack.c.b16 %v1439, %v1435
    %v1848 = vpack.c.b16 %v1440, %v1436
    %v1849 = vpack.c.b16 %v1441, %v1437
    %v1850 = vpack.c.b16 %v1442, %v1438
    %v1851 = vpack.c.b16 %v1447, %v1443
    %v1852 = vpack.c.b16 %v1448, %v1444
    %v1853 = vpack.c.b16 %v1449, %v1445
    %v1854 = vpack.c.b16 %v1450, %v1446
    %v1855 = vpack.c.b16 %v1455, %v1451
    %v1856 = vpack.c.b16 %v1456, %v1452
    %v1857 = vpack.c.b16 %v1457, %v1453
    %v1858 = vpack.c.b16 %v1458, %v1454
    %v1859 = vpack.c.b16 %v1463, %v1459
    %v1860 = vpack.c.b16 %v1464, %v1460
    %v1861 = vpack.c.b16 %v1465, %v1461
    %v1862 = vpack.c.b16 %v1466, %v1462
    %v1863 = vpack.c.b16 %v1471, %v1467
    %v1864 = vpack.c.b16 %v1472, %v1468
    %v1865 = vpack.c.b16 %v1473, %v1469
    %v1866 = vpack.c.b16 %v1474, %v1470
    %v1867 = vpack.c.b16 %v1479, %v1475
    %v1868 = vpack.c.b16 %v1480, %v1476
    %v1869 = vpack.c.b16 %v1481, %v1477
    %v1870 = vpack.c.b16 %v1482, %v1478
    %v1871 = vpack.c.b16 %v1487, %v1483
    %v1872 = vpack.c.b16 %v1488, %v1484
    %v1873 = vpack.c.b16 %v1489, %v1485
    %v1874 = vpack.c.b16 %v1490, %v1486
    %v1875 = vpack.c.b16 %v1495, %v1491
    %v1876 = vpack.c.b16 %v1496, %v1492
    %v1877 = vpack.c.b16 %v1497, %v1493
    %v1878 = vpack.c.b16 %v1498, %v1494
    %v1879 = vpack.c.b16 %v1503, %v1499
    %v1880 = vpack.c.b16 %v1504, %v1500
    %v1881 = vpack.c.b16 %v1505, %v1501
    %v1882 = vpack.c.b16 %v1506, %v1502
    %v1883 = vpack.c.b16 %v1511, %v1507
    %v1884 = vpack.c.b16 %v1512, %v1508
    %v1885 = vpack.c.b16 %v1513, %v1509
    %v1886 = vpack.c.b16 %v1514, %v1510
    %v1887 = vpack.c.b16 %v1519, %v1515
    %v1888 = vpack.c.b16 %v1520, %v1516
    %v1889 = vpack.c.b16 %v1521, %v1517
    %v1890 = vpack.c.b16 %v1522, %v1518
    %v1891 = vpack.c.b16 %v1527, %v1523
    %v1892 = vpack.c.b16 %v1528, %v1524
    %v1893 = vpack.c.b16 %v1529, %v1525
    %v1894 = vpack.c.b16 %v1530, %v1526
    %v1895 = vpack.c.b16 %v1535, %v1531
    %v1896 = vpack.c.b16 %v1536, %v1532
    %v1897 = vpack.c.b16 %v1537, %v1533
    %v1898 = vpack.c.b16 %v1538, %v1534
    %v1899 = vpack.c.b16 %v1543, %v1539
    %v1900 = vpack.c.b16 %v1544, %v1540
    %v1901 = vpack.c.b16 %v1545, %v1541
    %v1902 = vpack.c.b16 %v1546, %v1542
    %v1903 = vpack.c.b16 %v1551, %v1547
    %v1904 = vpack.c.b16 %v1552, %v1548
    %v1905 = vpack.c.b16 %v1553, %v1549
    %v1906 = vpack.c.b16 %v1554, %v1550
    %v1907 = vpack.c.b16 %v1559, %v1555
    %v1908 = vpack.c.b16 %v1560, %v1556
    %v1909 = vpack.c.b16 %v1561, %v1557
    %v1910 = vpack.c.b16 %v1562, %v1558
    %v1911 = vpack.c.b16 %v1567, %v1563
    %v1912 = vpack.c.b16 %v1568, %v1564
    %v1913 = vpack.c.b16 %v1569, %v1565
    %v1914 = vpack.c.b16 %v1570, %v1566
    %vm2259 = vcmask 785408
    %v2261 = vsel %vm2259, %v184, 0
    %2263 = vmatpush.bf16.msra.mxu0 %v1599
    %2264 = vmatpush.bf16.msra.mxu0 %v1595
    %2265 = vmatpush.bf16.msra.mxu0 %v1591
    %2266 = vmatpush.bf16.msra.mxu0 %v1587
    %2267 = vmatpush.bf16.msra.mxu0 %v1583
    %2268 = vmatpush.bf16.msra.mxu0 %v1579
    %2269 = vmatpush.bf16.msra.mxu0 %v1575
    %2270 = vmatpush.bf16.msra.mxu0 %v1571
    %2271 = vmatmul.bf16.gmra.mxu0 %v174
    %v2272 = vpop.f32.mrf.mxu0
    %v2273 = vadd.f32 %v531, %v2272
    %v2274 = vpop.f32.mrf.mxu0
    %2275 = vdwg.mxu0
    %2276 = vmatpush.bf16.msra.mxu0 %v1631
    %2277 = vmatpush.bf16.msra.mxu0 %v1627
    %2278 = vmatpush.bf16.msra.mxu0 %v1623
    %2279 = vmatpush.bf16.msra.mxu0 %v1619
    %2280 = vmatpush.bf16.msra.mxu0 %v1615
    %2281 = vmatpush.bf16.msra.mxu0 %v1611
    %2282 = vmatpush.bf16.msra.mxu0 %v1607
    %2283 = vmatpush.bf16.msra.mxu0 %v1603
    %2284 = vmatmul.bf16.gmra.mxu0 %v175
    %v2285 = vpop.f32.mrf.mxu0
    %v2286 = vadd.f32 %v2273, %v2285
    %v2287 = vpop.f32.mrf.mxu0
    %2288 = vdwg.mxu0
    %2289 = vmatpush.bf16.msra.mxu0 %v1663
    %2290 = vmatpush.bf16.msra.mxu0 %v1659
    %2291 = vmatpush.bf16.msra.mxu0 %v1655
    %2292 = vmatpush.bf16.msra.mxu0 %v1651
    %2293 = vmatpush.bf16.msra.mxu0 %v1647
    %2294 = vmatpush.bf16.msra.mxu0 %v1643
    %2295 = vmatpush.bf16.msra.mxu0 %v1639
    %2296 = vmatpush.bf16.msra.mxu0 %v1635
    %2297 = vmatmul.bf16.gmra.mxu0 %v176
    %v2298 = vpop.f32.mrf.mxu0
    %v2299 = vadd.f32 %v2286, %v2298
    %v2300 = vpop.f32.mrf.mxu0
    %2301 = vdwg.mxu0
    %2302 = vmatpush.bf16.msra.mxu0 %v1695
    %2303 = vmatpush.bf16.msra.mxu0 %v1691
    %2304 = vmatpush.bf16.msra.mxu0 %v1687
    %2305 = vmatpush.bf16.msra.mxu0 %v1683
    %2306 = vmatpush.bf16.msra.mxu0 %v1679
    %2307 = vmatpush.bf16.msra.mxu0 %v1675
    %2308 = vmatpush.bf16.msra.mxu0 %v1671
    %2309 = vmatpush.bf16.msra.mxu0 %v1667
    %2310 = vmatmul.bf16.gmra.mxu0 %v177
    %v2311 = vpop.f32.mrf.mxu0
    %v2312 = vadd.f32 %v2299, %v2311
    %v2313 = vpop.f32.mrf.mxu0
    %2314 = vdwg.mxu0
    %2315 = vmatpush.bf16.msra.mxu0 %v1727
    %2316 = vmatpush.bf16.msra.mxu0 %v1723
    %2317 = vmatpush.bf16.msra.mxu0 %v1719
    %2318 = vmatpush.bf16.msra.mxu0 %v1715
    %2319 = vmatpush.bf16.msra.mxu0 %v1711
    %2320 = vmatpush.bf16.msra.mxu0 %v1707
    %2321 = vmatpush.bf16.msra.mxu0 %v1703
    %2322 = vmatpush.bf16.msra.mxu0 %v1699
    %2323 = vmatmul.bf16.gmra.mxu0 %v178
    %v2324 = vpop.f32.mrf.mxu0
    %v2325 = vadd.f32 %v2312, %v2324
    %v2326 = vpop.f32.mrf.mxu0
    %2327 = vdwg.mxu0
    %2328 = vmatpush.bf16.msra.mxu0 %v1759
    %2329 = vmatpush.bf16.msra.mxu0 %v1755
    %2330 = vmatpush.bf16.msra.mxu0 %v1751
    %2331 = vmatpush.bf16.msra.mxu0 %v1747
    %2332 = vmatpush.bf16.msra.mxu0 %v1743
    %2333 = vmatpush.bf16.msra.mxu0 %v1739
    %2334 = vmatpush.bf16.msra.mxu0 %v1735
    %2335 = vmatpush.bf16.msra.mxu0 %v1731
    %2336 = vmatmul.bf16.gmra.mxu0 %v179
    %v2337 = vpop.f32.mrf.mxu0
    %v2338 = vadd.f32 %v2325, %v2337
    %v2339 = vpop.f32.mrf.mxu0
    %2340 = vdwg.mxu0
    %2341 = vmatpush.bf16.msra.mxu0 %v1791
    %2342 = vmatpush.bf16.msra.mxu0 %v1787
    %2343 = vmatpush.bf16.msra.mxu0 %v1783
    %2344 = vmatpush.bf16.msra.mxu0 %v1779
    %2345 = vmatpush.bf16.msra.mxu0 %v1775
    %2346 = vmatpush.bf16.msra.mxu0 %v1771
    %2347 = vmatpush.bf16.msra.mxu0 %v1767
    %2348 = vmatpush.bf16.msra.mxu0 %v1763
    %2349 = vmatmul.bf16.gmra.mxu0 %v180
    %v2350 = vpop.f32.mrf.mxu0
    %v2351 = vadd.f32 %v2338, %v2350
    %v2352 = vpop.f32.mrf.mxu0
    %2353 = vdwg.mxu0
    %2354 = vmatpush.bf16.msra.mxu0 %v1823
    %2355 = vmatpush.bf16.msra.mxu0 %v1819
    %2356 = vmatpush.bf16.msra.mxu0 %v1815
    %2357 = vmatpush.bf16.msra.mxu0 %v1811
    %2358 = vmatpush.bf16.msra.mxu0 %v1807
    %2359 = vmatpush.bf16.msra.mxu0 %v1803
    %2360 = vmatpush.bf16.msra.mxu0 %v1799
    %2361 = vmatpush.bf16.msra.mxu0 %v1795
    %2362 = vmatmul.bf16.gmra.mxu0 %v181
    %v2363 = vpop.f32.mrf.mxu0
    %v2364 = vadd.f32 %v2351, %v2363
    %v2365 = vpop.f32.mrf.mxu0
    %2366 = vdwg.mxu0
    %2367 = vmatpush.bf16.msra.mxu0 %v1855
    %2368 = vmatpush.bf16.msra.mxu0 %v1851
    %2369 = vmatpush.bf16.msra.mxu0 %v1847
    %2370 = vmatpush.bf16.msra.mxu0 %v1843
    %2371 = vmatpush.bf16.msra.mxu0 %v1839
    %2372 = vmatpush.bf16.msra.mxu0 %v1835
    %2373 = vmatpush.bf16.msra.mxu0 %v1831
    %2374 = vmatpush.bf16.msra.mxu0 %v1827
    %2375 = vmatmul.bf16.gmra.mxu0 %v182
    %v2376 = vpop.f32.mrf.mxu0
    %v2377 = vadd.f32 %v2364, %v2376
    %v2378 = vpop.f32.mrf.mxu0
    %2379 = vdwg.mxu0
    %2380 = vmatpush.bf16.msra.mxu0 %v1887
    %2381 = vmatpush.bf16.msra.mxu0 %v1883
    %2382 = vmatpush.bf16.msra.mxu0 %v1879
    %2383 = vmatpush.bf16.msra.mxu0 %v1875
    %2384 = vmatpush.bf16.msra.mxu0 %v1871
    %2385 = vmatpush.bf16.msra.mxu0 %v1867
    %2386 = vmatpush.bf16.msra.mxu0 %v1863
    %2387 = vmatpush.bf16.msra.mxu0 %v1859
    %2388 = vmatmul.bf16.gmra.mxu0 %v183
    %v2389 = vpop.f32.mrf.mxu0
    %v2390 = vadd.f32 %v2377, %v2389
    %v2391 = vpop.f32.mrf.mxu0
    %2392 = vdwg.mxu0
    %2393 = vmatpush.bf16.msra.mxu0 0
    %2394 = vmatpush.bf16.msra.mxu0 0
    %2395 = vmatpush.bf16.msra.mxu0 %v1911
    %2396 = vmatpush.bf16.msra.mxu0 %v1907
    %2397 = vmatpush.bf16.msra.mxu0 %v1903
    %2398 = vmatpush.bf16.msra.mxu0 %v1899
    %2399 = vmatpush.bf16.msra.mxu0 %v1895
    %2400 = vmatpush.bf16.msra.mxu0 %v1891
    %2401 = vmatmul.bf16.gmra.mxu0 %v2261
    %v2402 = vpop.f32.mrf.mxu0
    %v2403 = vadd.f32 %v2390, %v2402
    %v2404 = vpop.f32.mrf.mxu0
    %2405 = vdwg.mxu0
    %2406 = vmatpush.bf16.msra.mxu0 %v1600
    %2407 = vmatpush.bf16.msra.mxu0 %v1596
    %2408 = vmatpush.bf16.msra.mxu0 %v1592
    %2409 = vmatpush.bf16.msra.mxu0 %v1588
    %2410 = vmatpush.bf16.msra.mxu0 %v1584
    %2411 = vmatpush.bf16.msra.mxu0 %v1580
    %2412 = vmatpush.bf16.msra.mxu0 %v1576
    %2413 = vmatpush.bf16.msra.mxu0 %v1572
    %2414 = vmatmul.bf16.gmra.mxu0 %v174
    %v2415 = vpop.f32.mrf.mxu0
    %v2416 = vadd.f32 %v532, %v2415
    %v2417 = vpop.f32.mrf.mxu0
    %2418 = vdwg.mxu0
    %2419 = vmatpush.bf16.msra.mxu0 %v1632
    %2420 = vmatpush.bf16.msra.mxu0 %v1628
    %2421 = vmatpush.bf16.msra.mxu0 %v1624
    %2422 = vmatpush.bf16.msra.mxu0 %v1620
    %2423 = vmatpush.bf16.msra.mxu0 %v1616
    %2424 = vmatpush.bf16.msra.mxu0 %v1612
    %2425 = vmatpush.bf16.msra.mxu0 %v1608
    %2426 = vmatpush.bf16.msra.mxu0 %v1604
    %2427 = vmatmul.bf16.gmra.mxu0 %v175
    %v2428 = vpop.f32.mrf.mxu0
    %v2429 = vadd.f32 %v2416, %v2428
    %v2430 = vpop.f32.mrf.mxu0
    %2431 = vdwg.mxu0
    %2432 = vmatpush.bf16.msra.mxu0 %v1664
    %2433 = vmatpush.bf16.msra.mxu0 %v1660
    %2434 = vmatpush.bf16.msra.mxu0 %v1656
    %2435 = vmatpush.bf16.msra.mxu0 %v1652
    %2436 = vmatpush.bf16.msra.mxu0 %v1648
    %2437 = vmatpush.bf16.msra.mxu0 %v1644
    %2438 = vmatpush.bf16.msra.mxu0 %v1640
    %2439 = vmatpush.bf16.msra.mxu0 %v1636
    %2440 = vmatmul.bf16.gmra.mxu0 %v176
    %v2441 = vpop.f32.mrf.mxu0
    %v2442 = vadd.f32 %v2429, %v2441
    %v2443 = vpop.f32.mrf.mxu0
    %2444 = vdwg.mxu0
    %2445 = vmatpush.bf16.msra.mxu0 %v1696
    %2446 = vmatpush.bf16.msra.mxu0 %v1692
    %2447 = vmatpush.bf16.msra.mxu0 %v1688
    %2448 = vmatpush.bf16.msra.mxu0 %v1684
    %2449 = vmatpush.bf16.msra.mxu0 %v1680
    %2450 = vmatpush.bf16.msra.mxu0 %v1676
    %2451 = vmatpush.bf16.msra.mxu0 %v1672
    %2452 = vmatpush.bf16.msra.mxu0 %v1668
    %2453 = vmatmul.bf16.gmra.mxu0 %v177
    %v2454 = vpop.f32.mrf.mxu0
    %v2455 = vadd.f32 %v2442, %v2454
    %v2456 = vpop.f32.mrf.mxu0
    %2457 = vdwg.mxu0
    %2458 = vmatpush.bf16.msra.mxu0 %v1728
    %2459 = vmatpush.bf16.msra.mxu0 %v1724
    %2460 = vmatpush.bf16.msra.mxu0 %v1720
    %2461 = vmatpush.bf16.msra.mxu0 %v1716
    %2462 = vmatpush.bf16.msra.mxu0 %v1712
    %2463 = vmatpush.bf16.msra.mxu0 %v1708
    %2464 = vmatpush.bf16.msra.mxu0 %v1704
    %2465 = vmatpush.bf16.msra.mxu0 %v1700
    %2466 = vmatmul.bf16.gmra.mxu0 %v178
    %v2467 = vpop.f32.mrf.mxu0
    %v2468 = vadd.f32 %v2455, %v2467
    %v2469 = vpop.f32.mrf.mxu0
    %2470 = vdwg.mxu0
    %2471 = vmatpush.bf16.msra.mxu0 %v1760
    %2472 = vmatpush.bf16.msra.mxu0 %v1756
    %2473 = vmatpush.bf16.msra.mxu0 %v1752
    %2474 = vmatpush.bf16.msra.mxu0 %v1748
    %2475 = vmatpush.bf16.msra.mxu0 %v1744
    %2476 = vmatpush.bf16.msra.mxu0 %v1740
    %2477 = vmatpush.bf16.msra.mxu0 %v1736
    %2478 = vmatpush.bf16.msra.mxu0 %v1732
    %2479 = vmatmul.bf16.gmra.mxu0 %v179
    %v2480 = vpop.f32.mrf.mxu0
    %v2481 = vadd.f32 %v2468, %v2480
    %v2482 = vpop.f32.mrf.mxu0
    %2483 = vdwg.mxu0
    %2484 = vmatpush.bf16.msra.mxu0 %v1792
    %2485 = vmatpush.bf16.msra.mxu0 %v1788
    %2486 = vmatpush.bf16.msra.mxu0 %v1784
    %2487 = vmatpush.bf16.msra.mxu0 %v1780
    %2488 = vmatpush.bf16.msra.mxu0 %v1776
    %2489 = vmatpush.bf16.msra.mxu0 %v1772
    %2490 = vmatpush.bf16.msra.mxu0 %v1768
    %2491 = vmatpush.bf16.msra.mxu0 %v1764
    %2492 = vmatmul.bf16.gmra.mxu0 %v180
    %v2493 = vpop.f32.mrf.mxu0
    %v2494 = vadd.f32 %v2481, %v2493
    %v2495 = vpop.f32.mrf.mxu0
    %2496 = vdwg.mxu0
    %2497 = vmatpush.bf16.msra.mxu0 %v1824
    %2498 = vmatpush.bf16.msra.mxu0 %v1820
    %2499 = vmatpush.bf16.msra.mxu0 %v1816
    %2500 = vmatpush.bf16.msra.mxu0 %v1812
    %2501 = vmatpush.bf16.msra.mxu0 %v1808
    %2502 = vmatpush.bf16.msra.mxu0 %v1804
    %2503 = vmatpush.bf16.msra.mxu0 %v1800
    %2504 = vmatpush.bf16.msra.mxu0 %v1796
    %2505 = vmatmul.bf16.gmra.mxu0 %v181
    %v2506 = vpop.f32.mrf.mxu0
    %v2507 = vadd.f32 %v2494, %v2506
    %v2508 = vpop.f32.mrf.mxu0
    %2509 = vdwg.mxu0
    %2510 = vmatpush.bf16.msra.mxu0 %v1856
    %2511 = vmatpush.bf16.msra.mxu0 %v1852
    %2512 = vmatpush.bf16.msra.mxu0 %v1848
    %2513 = vmatpush.bf16.msra.mxu0 %v1844
    %2514 = vmatpush.bf16.msra.mxu0 %v1840
    %2515 = vmatpush.bf16.msra.mxu0 %v1836
    %2516 = vmatpush.bf16.msra.mxu0 %v1832
    %2517 = vmatpush.bf16.msra.mxu0 %v1828
    %2518 = vmatmul.bf16.gmra.mxu0 %v182
    %v2519 = vpop.f32.mrf.mxu0
    %v2520 = vadd.f32 %v2507, %v2519
    %v2521 = vpop.f32.mrf.mxu0
    %2522 = vdwg.mxu0
    %2523 = vmatpush.bf16.msra.mxu0 %v1888
    %2524 = vmatpush.bf16.msra.mxu0 %v1884
    %2525 = vmatpush.bf16.msra.mxu0 %v1880
    %2526 = vmatpush.bf16.msra.mxu0 %v1876
    %2527 = vmatpush.bf16.msra.mxu0 %v1872
    %2528 = vmatpush.bf16.msra.mxu0 %v1868
    %2529 = vmatpush.bf16.msra.mxu0 %v1864
    %2530 = vmatpush.bf16.msra.mxu0 %v1860
    %2531 = vmatmul.bf16.gmra.mxu0 %v183
    %v2532 = vpop.f32.mrf.mxu0
    %v2533 = vadd.f32 %v2520, %v2532
    %v2534 = vpop.f32.mrf.mxu0
    %2535 = vdwg.mxu0
    %2536 = vmatpush.bf16.msra.mxu0 0
    %2537 = vmatpush.bf16.msra.mxu0 0
    %2538 = vmatpush.bf16.msra.mxu0 %v1912
    %2539 = vmatpush.bf16.msra.mxu0 %v1908
    %2540 = vmatpush.bf16.msra.mxu0 %v1904
    %2541 = vmatpush.bf16.msra.mxu0 %v1900
    %2542 = vmatpush.bf16.msra.mxu0 %v1896
    %2543 = vmatpush.bf16.msra.mxu0 %v1892
    %2544 = vmatmul.bf16.gmra.mxu0 %v2261
    %v2545 = vpop.f32.mrf.mxu0
    %v2546 = vadd.f32 %v2533, %v2545
    %v2547 = vpop.f32.mrf.mxu0
    %2548 = vdwg.mxu0
    %2549 = vmatpush.bf16.msra.mxu0 %v1601
    %2550 = vmatpush.bf16.msra.mxu0 %v1597
    %2551 = vmatpush.bf16.msra.mxu0 %v1593
    %2552 = vmatpush.bf16.msra.mxu0 %v1589
    %2553 = vmatpush.bf16.msra.mxu0 %v1585
    %2554 = vmatpush.bf16.msra.mxu0 %v1581
    %2555 = vmatpush.bf16.msra.mxu0 %v1577
    %2556 = vmatpush.bf16.msra.mxu0 %v1573
    %2557 = vmatmul.bf16.gmra.mxu0 %v174
    %v2558 = vpop.f32.mrf.mxu0
    %v2559 = vadd.f32 %v533, %v2558
    %v2560 = vpop.f32.mrf.mxu0
    %2561 = vdwg.mxu0
    %2562 = vmatpush.bf16.msra.mxu0 %v1633
    %2563 = vmatpush.bf16.msra.mxu0 %v1629
    %2564 = vmatpush.bf16.msra.mxu0 %v1625
    %2565 = vmatpush.bf16.msra.mxu0 %v1621
    %2566 = vmatpush.bf16.msra.mxu0 %v1617
    %2567 = vmatpush.bf16.msra.mxu0 %v1613
    %2568 = vmatpush.bf16.msra.mxu0 %v1609
    %2569 = vmatpush.bf16.msra.mxu0 %v1605
    %2570 = vmatmul.bf16.gmra.mxu0 %v175
    %v2571 = vpop.f32.mrf.mxu0
    %v2572 = vadd.f32 %v2559, %v2571
    %v2573 = vpop.f32.mrf.mxu0
    %2574 = vdwg.mxu0
    %2575 = vmatpush.bf16.msra.mxu0 %v1665
    %2576 = vmatpush.bf16.msra.mxu0 %v1661
    %2577 = vmatpush.bf16.msra.mxu0 %v1657
    %2578 = vmatpush.bf16.msra.mxu0 %v1653
    %2579 = vmatpush.bf16.msra.mxu0 %v1649
    %2580 = vmatpush.bf16.msra.mxu0 %v1645
    %2581 = vmatpush.bf16.msra.mxu0 %v1641
    %2582 = vmatpush.bf16.msra.mxu0 %v1637
    %2583 = vmatmul.bf16.gmra.mxu0 %v176
    %v2584 = vpop.f32.mrf.mxu0
    %v2585 = vadd.f32 %v2572, %v2584
    %v2586 = vpop.f32.mrf.mxu0
    %2587 = vdwg.mxu0
    %2588 = vmatpush.bf16.msra.mxu0 %v1697
    %2589 = vmatpush.bf16.msra.mxu0 %v1693
    %2590 = vmatpush.bf16.msra.mxu0 %v1689
    %2591 = vmatpush.bf16.msra.mxu0 %v1685
    %2592 = vmatpush.bf16.msra.mxu0 %v1681
    %2593 = vmatpush.bf16.msra.mxu0 %v1677
    %2594 = vmatpush.bf16.msra.mxu0 %v1673
    %2595 = vmatpush.bf16.msra.mxu0 %v1669
    %2596 = vmatmul.bf16.gmra.mxu0 %v177
    %v2597 = vpop.f32.mrf.mxu0
    %v2598 = vadd.f32 %v2585, %v2597
    %v2599 = vpop.f32.mrf.mxu0
    %2600 = vdwg.mxu0
    %2601 = vmatpush.bf16.msra.mxu0 %v1729
    %2602 = vmatpush.bf16.msra.mxu0 %v1725
    %2603 = vmatpush.bf16.msra.mxu0 %v1721
    %2604 = vmatpush.bf16.msra.mxu0 %v1717
    %2605 = vmatpush.bf16.msra.mxu0 %v1713
    %2606 = vmatpush.bf16.msra.mxu0 %v1709
    %2607 = vmatpush.bf16.msra.mxu0 %v1705
    %2608 = vmatpush.bf16.msra.mxu0 %v1701
    %2609 = vmatmul.bf16.gmra.mxu0 %v178
    %v2610 = vpop.f32.mrf.mxu0
    %v2611 = vadd.f32 %v2598, %v2610
    %v2612 = vpop.f32.mrf.mxu0
    %2613 = vdwg.mxu0
    %2614 = vmatpush.bf16.msra.mxu0 %v1761
    %2615 = vmatpush.bf16.msra.mxu0 %v1757
    %2616 = vmatpush.bf16.msra.mxu0 %v1753
    %2617 = vmatpush.bf16.msra.mxu0 %v1749
    %2618 = vmatpush.bf16.msra.mxu0 %v1745
    %2619 = vmatpush.bf16.msra.mxu0 %v1741
    %2620 = vmatpush.bf16.msra.mxu0 %v1737
    %2621 = vmatpush.bf16.msra.mxu0 %v1733
    %2622 = vmatmul.bf16.gmra.mxu0 %v179
    %v2623 = vpop.f32.mrf.mxu0
    %v2624 = vadd.f32 %v2611, %v2623
    %v2625 = vpop.f32.mrf.mxu0
    %2626 = vdwg.mxu0
    %2627 = vmatpush.bf16.msra.mxu0 %v1793
    %2628 = vmatpush.bf16.msra.mxu0 %v1789
    %2629 = vmatpush.bf16.msra.mxu0 %v1785
    %2630 = vmatpush.bf16.msra.mxu0 %v1781
    %2631 = vmatpush.bf16.msra.mxu0 %v1777
    %2632 = vmatpush.bf16.msra.mxu0 %v1773
    %2633 = vmatpush.bf16.msra.mxu0 %v1769
    %2634 = vmatpush.bf16.msra.mxu0 %v1765
    %2635 = vmatmul.bf16.gmra.mxu0 %v180
    %v2636 = vpop.f32.mrf.mxu0
    %v2637 = vadd.f32 %v2624, %v2636
    %v2638 = vpop.f32.mrf.mxu0
    %2639 = vdwg.mxu0
    %2640 = vmatpush.bf16.msra.mxu0 %v1825
    %2641 = vmatpush.bf16.msra.mxu0 %v1821
    %2642 = vmatpush.bf16.msra.mxu0 %v1817
    %2643 = vmatpush.bf16.msra.mxu0 %v1813
    %2644 = vmatpush.bf16.msra.mxu0 %v1809
    %2645 = vmatpush.bf16.msra.mxu0 %v1805
    %2646 = vmatpush.bf16.msra.mxu0 %v1801
    %2647 = vmatpush.bf16.msra.mxu0 %v1797
    %2648 = vmatmul.bf16.gmra.mxu0 %v181
    %v2649 = vpop.f32.mrf.mxu0
    %v2650 = vadd.f32 %v2637, %v2649
    %v2651 = vpop.f32.mrf.mxu0
    %2652 = vdwg.mxu0
    %2653 = vmatpush.bf16.msra.mxu0 %v1857
    %2654 = vmatpush.bf16.msra.mxu0 %v1853
    %2655 = vmatpush.bf16.msra.mxu0 %v1849
    %2656 = vmatpush.bf16.msra.mxu0 %v1845
    %2657 = vmatpush.bf16.msra.mxu0 %v1841
    %2658 = vmatpush.bf16.msra.mxu0 %v1837
    %2659 = vmatpush.bf16.msra.mxu0 %v1833
    %2660 = vmatpush.bf16.msra.mxu0 %v1829
    %2661 = vmatmul.bf16.gmra.mxu0 %v182
    %v2662 = vpop.f32.mrf.mxu0
    %v2663 = vadd.f32 %v2650, %v2662
    %v2664 = vpop.f32.mrf.mxu0
    %2665 = vdwg.mxu0
    %2666 = vmatpush.bf16.msra.mxu0 %v1889
    %2667 = vmatpush.bf16.msra.mxu0 %v1885
    %2668 = vmatpush.bf16.msra.mxu0 %v1881
    %2669 = vmatpush.bf16.msra.mxu0 %v1877
    %2670 = vmatpush.bf16.msra.mxu0 %v1873
    %2671 = vmatpush.bf16.msra.mxu0 %v1869
    %2672 = vmatpush.bf16.msra.mxu0 %v1865
    %2673 = vmatpush.bf16.msra.mxu0 %v1861
    %2674 = vmatmul.bf16.gmra.mxu0 %v183
    %v2675 = vpop.f32.mrf.mxu0
    %v2676 = vadd.f32 %v2663, %v2675
    %v2677 = vpop.f32.mrf.mxu0
    %2678 = vdwg.mxu0
    %2679 = vmatpush.bf16.msra.mxu0 0
    %2680 = vmatpush.bf16.msra.mxu0 0
    %2681 = vmatpush.bf16.msra.mxu0 %v1913
    %2682 = vmatpush.bf16.msra.mxu0 %v1909
    %2683 = vmatpush.bf16.msra.mxu0 %v1905
    %2684 = vmatpush.bf16.msra.mxu0 %v1901
    %2685 = vmatpush.bf16.msra.mxu0 %v1897
    %2686 = vmatpush.bf16.msra.mxu0 %v1893
    %2687 = vmatmul.bf16.gmra.mxu0 %v2261
    %v2688 = vpop.f32.mrf.mxu0
    %v2689 = vadd.f32 %v2676, %v2688
    %v2690 = vpop.f32.mrf.mxu0
    %2691 = vdwg.mxu0
    %2692 = vmatpush.bf16.msra.mxu0 %v1602
    %2693 = vmatpush.bf16.msra.mxu0 %v1598
    %2694 = vmatpush.bf16.msra.mxu0 %v1594
    %2695 = vmatpush.bf16.msra.mxu0 %v1590
    %2696 = vmatpush.bf16.msra.mxu0 %v1586
    %2697 = vmatpush.bf16.msra.mxu0 %v1582
    %2698 = vmatpush.bf16.msra.mxu0 %v1578
    %2699 = vmatpush.bf16.msra.mxu0 %v1574
    %2700 = vmatmul.bf16.gmra.mxu0 %v174
    %v2701 = vpop.f32.mrf.mxu0
    %v2702 = vadd.f32 %v534, %v2701
    %v2703 = vpop.f32.mrf.mxu0
    %2704 = vdwg.mxu0
    %2705 = vmatpush.bf16.msra.mxu0 %v1634
    %2706 = vmatpush.bf16.msra.mxu0 %v1630
    %2707 = vmatpush.bf16.msra.mxu0 %v1626
    %2708 = vmatpush.bf16.msra.mxu0 %v1622
    %2709 = vmatpush.bf16.msra.mxu0 %v1618
    %2710 = vmatpush.bf16.msra.mxu0 %v1614
    %2711 = vmatpush.bf16.msra.mxu0 %v1610
    %2712 = vmatpush.bf16.msra.mxu0 %v1606
    %2713 = vmatmul.bf16.gmra.mxu0 %v175
    %v2714 = vpop.f32.mrf.mxu0
    %v2715 = vadd.f32 %v2702, %v2714
    %v2716 = vpop.f32.mrf.mxu0
    %2717 = vdwg.mxu0
    %2718 = vmatpush.bf16.msra.mxu0 %v1666
    %2719 = vmatpush.bf16.msra.mxu0 %v1662
    %2720 = vmatpush.bf16.msra.mxu0 %v1658
    %2721 = vmatpush.bf16.msra.mxu0 %v1654
    %2722 = vmatpush.bf16.msra.mxu0 %v1650
    %2723 = vmatpush.bf16.msra.mxu0 %v1646
    %2724 = vmatpush.bf16.msra.mxu0 %v1642
    %2725 = vmatpush.bf16.msra.mxu0 %v1638
    %2726 = vmatmul.bf16.gmra.mxu0 %v176
    %v2727 = vpop.f32.mrf.mxu0
    %v2728 = vadd.f32 %v2715, %v2727
    %v2729 = vpop.f32.mrf.mxu0
    %2730 = vdwg.mxu0
    %2731 = vmatpush.bf16.msra.mxu0 %v1698
    %2732 = vmatpush.bf16.msra.mxu0 %v1694
    %2733 = vmatpush.bf16.msra.mxu0 %v1690
    %2734 = vmatpush.bf16.msra.mxu0 %v1686
    %2735 = vmatpush.bf16.msra.mxu0 %v1682
    %2736 = vmatpush.bf16.msra.mxu0 %v1678
    %2737 = vmatpush.bf16.msra.mxu0 %v1674
    %2738 = vmatpush.bf16.msra.mxu0 %v1670
    %2739 = vmatmul.bf16.gmra.mxu0 %v177
    %v2740 = vpop.f32.mrf.mxu0
    %v2741 = vadd.f32 %v2728, %v2740
    %v2742 = vpop.f32.mrf.mxu0
    %2743 = vdwg.mxu0
    %2744 = vmatpush.bf16.msra.mxu0 %v1730
    %2745 = vmatpush.bf16.msra.mxu0 %v1726
    %2746 = vmatpush.bf16.msra.mxu0 %v1722
    %2747 = vmatpush.bf16.msra.mxu0 %v1718
    %2748 = vmatpush.bf16.msra.mxu0 %v1714
    %2749 = vmatpush.bf16.msra.mxu0 %v1710
    %2750 = vmatpush.bf16.msra.mxu0 %v1706
    %2751 = vmatpush.bf16.msra.mxu0 %v1702
    %2752 = vmatmul.bf16.gmra.mxu0 %v178
    %v2753 = vpop.f32.mrf.mxu0
    %v2754 = vadd.f32 %v2741, %v2753
    %v2755 = vpop.f32.mrf.mxu0
    %2756 = vdwg.mxu0
    %2757 = vmatpush.bf16.msra.mxu0 %v1762
    %2758 = vmatpush.bf16.msra.mxu0 %v1758
    %2759 = vmatpush.bf16.msra.mxu0 %v1754
    %2760 = vmatpush.bf16.msra.mxu0 %v1750
    %2761 = vmatpush.bf16.msra.mxu0 %v1746
    %2762 = vmatpush.bf16.msra.mxu0 %v1742
    %2763 = vmatpush.bf16.msra.mxu0 %v1738
    %2764 = vmatpush.bf16.msra.mxu0 %v1734
    %2765 = vmatmul.bf16.gmra.mxu0 %v179
    %v2766 = vpop.f32.mrf.mxu0
    %v2767 = vadd.f32 %v2754, %v2766
    %v2768 = vpop.f32.mrf.mxu0
    %2769 = vdwg.mxu0
    %2770 = vmatpush.bf16.msra.mxu0 %v1794
    %2771 = vmatpush.bf16.msra.mxu0 %v1790
    %2772 = vmatpush.bf16.msra.mxu0 %v1786
    %2773 = vmatpush.bf16.msra.mxu0 %v1782
    %2774 = vmatpush.bf16.msra.mxu0 %v1778
    %2775 = vmatpush.bf16.msra.mxu0 %v1774
    %2776 = vmatpush.bf16.msra.mxu0 %v1770
    %2777 = vmatpush.bf16.msra.mxu0 %v1766
    %2778 = vmatmul.bf16.gmra.mxu0 %v180
    %v2779 = vpop.f32.mrf.mxu0
    %v2780 = vadd.f32 %v2767, %v2779
    %v2781 = vpop.f32.mrf.mxu0
    %2782 = vdwg.mxu0
    %2783 = vmatpush.bf16.msra.mxu0 %v1826
    %2784 = vmatpush.bf16.msra.mxu0 %v1822
    %2785 = vmatpush.bf16.msra.mxu0 %v1818
    %2786 = vmatpush.bf16.msra.mxu0 %v1814
    %2787 = vmatpush.bf16.msra.mxu0 %v1810
    %2788 = vmatpush.bf16.msra.mxu0 %v1806
    %2789 = vmatpush.bf16.msra.mxu0 %v1802
    %2790 = vmatpush.bf16.msra.mxu0 %v1798
    %2791 = vmatmul.bf16.gmra.mxu0 %v181
    %v2792 = vpop.f32.mrf.mxu0
    %v2793 = vadd.f32 %v2780, %v2792
    %v2794 = vpop.f32.mrf.mxu0
    %2795 = vdwg.mxu0
    %2796 = vmatpush.bf16.msra.mxu0 %v1858
    %2797 = vmatpush.bf16.msra.mxu0 %v1854
    %2798 = vmatpush.bf16.msra.mxu0 %v1850
    %2799 = vmatpush.bf16.msra.mxu0 %v1846
    %2800 = vmatpush.bf16.msra.mxu0 %v1842
    %2801 = vmatpush.bf16.msra.mxu0 %v1838
    %2802 = vmatpush.bf16.msra.mxu0 %v1834
    %2803 = vmatpush.bf16.msra.mxu0 %v1830
    %2804 = vmatmul.bf16.gmra.mxu0 %v182
    %v2805 = vpop.f32.mrf.mxu0
    %v2806 = vadd.f32 %v2793, %v2805
    %v2807 = vpop.f32.mrf.mxu0
    %2808 = vdwg.mxu0
    %2809 = vmatpush.bf16.msra.mxu0 %v1890
    %2810 = vmatpush.bf16.msra.mxu0 %v1886
    %2811 = vmatpush.bf16.msra.mxu0 %v1882
    %2812 = vmatpush.bf16.msra.mxu0 %v1878
    %2813 = vmatpush.bf16.msra.mxu0 %v1874
    %2814 = vmatpush.bf16.msra.mxu0 %v1870
    %2815 = vmatpush.bf16.msra.mxu0 %v1866
    %2816 = vmatpush.bf16.msra.mxu0 %v1862
    %2817 = vmatmul.bf16.gmra.mxu0 %v183
    %v2818 = vpop.f32.mrf.mxu0
    %v2819 = vadd.f32 %v2806, %v2818
    %v2820 = vpop.f32.mrf.mxu0
    %2821 = vdwg.mxu0
    %2822 = vmatpush.bf16.msra.mxu0 0
    %2823 = vmatpush.bf16.msra.mxu0 0
    %2824 = vmatpush.bf16.msra.mxu0 %v1914
    %2825 = vmatpush.bf16.msra.mxu0 %v1910
    %2826 = vmatpush.bf16.msra.mxu0 %v1906
    %2827 = vmatpush.bf16.msra.mxu0 %v1902
    %2828 = vmatpush.bf16.msra.mxu0 %v1898
    %2829 = vmatpush.bf16.msra.mxu0 %v1894
    %2830 = vmatmul.bf16.gmra.mxu0 %v2261
    %v2831 = vpop.f32.mrf.mxu0
    %v2832 = vadd.f32 %v2819, %v2831
    %v2833 = vpop.f32.mrf.mxu0
    %2834 = vdwg.mxu0
    %v2835 = vmax.f32 %v2403, 0.0
    %v2836 = vmax.f32 %v2546, 0.0
    %v2837 = vmax.f32 %v2689, 0.0
    %v2838 = vmax.f32 %v2832, 0.0
    %v2839 = vpack.c.bf16 %v2835, %v2835
    %v2840 = vpack.c.bf16 %v2836, %v2836
    %v2841 = vpack.c.bf16 %v2837, %v2837
    %v2842 = vpack.c.bf16 %v2838, %v2838
    %v2843 = vld [vmem:[#allocation7] sm:$0xff]
    %v2844 = vld [vmem:[#allocation7 + $0x8] sm:$0xf]
    %v2845 = vld [vmem:[#allocation7 + $0xc] sm:$0xff]
    %v2846 = vld [vmem:[#allocation7 + $0x14] sm:$0xf]
    %v2847 = vld [vmem:[#allocation7 + $0x18] sm:$0xff]
    %v2848 = vld [vmem:[#allocation7 + $0x20] sm:$0xf]
    %v2849 = vld [vmem:[#allocation7 + $0x24] sm:$0xff]
    %v2850 = vld [vmem:[#allocation7 + $0x2c] sm:$0xf]
    %v2851 = vld [vmem:[#allocation7 + $0x30] sm:$0xff]
    %v2852 = vld [vmem:[#allocation7 + $0x38] sm:$0xf]
    %v2853 = vld [vmem:[#allocation7 + $0x3c] sm:$0xff]
    %v2854 = vld [vmem:[#allocation7 + $0x44] sm:$0xf]
    %v2855 = vld [vmem:[#allocation7 + $0x48] sm:$0xff]
    %v2856 = vld [vmem:[#allocation7 + $0x50] sm:$0xf]
    %v2857 = vld [vmem:[#allocation7 + $0x54] sm:$0xff]
    %v2858 = vld [vmem:[#allocation7 + $0x5c] sm:$0xf]
    %v2859 = vld [vmem:[#allocation7 + $0x60] sm:$0xff]
    %v2860 = vld [vmem:[#allocation7 + $0x68] sm:$0xf]
    %v2861 = vld [vmem:[#allocation7 + $0x6c] sm:$0xff]
    %v2862 = vld [vmem:[#allocation7 + $0x74] sm:$0xf]
    %v2863 = vld [vmem:[#allocation7 + $0x78] sm:$0xff]
    %v2864 = vld [vmem:[#allocation7 + $0x80] sm:$0xf]
    %v2865 = vld [vmem:[#allocation7 + $0x84] sm:$0xff]
    %v2866 = vld [vmem:[#allocation7 + $0x8c] sm:$0xf]
    %v2867 = vld [vmem:[#allocation7 + $0x90] sm:$0xff]
    %v2868 = vld [vmem:[#allocation7 + $0x98] sm:$0xf]
    %v2869 = vld [vmem:[#allocation7 + $0x9c] sm:$0xff]
    %v2870 = vld [vmem:[#allocation7 + $0xa4] sm:$0xf]
    %v2871 = vld [vmem:[#allocation7 + $0xa8] sm:$0xff]
    %v2872 = vld [vmem:[#allocation7 + $0xb0] sm:$0xf]
    %v2873 = vld [vmem:[#allocation7 + $0xb4] sm:$0xff]
    %v2874 = vld [vmem:[#allocation7 + $0xbc] sm:$0xf]
    %v2875 = vld [vmem:[#allocation7 + $0xc0] sm:$0xff]
    %v2876 = vld [vmem:[#allocation7 + $0xc8] sm:$0xf]
    %v2877 = vld [vmem:[#allocation7 + $0xcc] sm:$0xff]
    %v2878 = vld [vmem:[#allocation7 + $0xd4] sm:$0xf]
    %v2879 = vld [vmem:[#allocation7 + $0xd8] sm:$0xff]
    %v2880 = vld [vmem:[#allocation7 + $0xe0] sm:$0xf]
    %v2881 = vld [vmem:[#allocation7 + $0xe4] sm:$0xff]
    %v2882 = vld [vmem:[#allocation7 + $0xec] sm:$0xf]
    %v2883 = vld [vmem:[#allocation7 + $0xf0] sm:$0xff]
    %v2884 = vld [vmem:[#allocation7 + $0xf8] sm:$0xf]
    %v2885 = vld [vmem:[#allocation7 + $0xfc] sm:$0xff]
    %v2886 = vld [vmem:[#allocation7 + $0x104] sm:$0xf]
    %v2887 = vld [vmem:[#allocation7 + $0x108] sm:$0xff]
    %v2888 = vld [vmem:[#allocation7 + $0x110] sm:$0xf]
    %v2889 = vld [vmem:[#allocation7 + $0x114] sm:$0xff]
    %v2890 = vld [vmem:[#allocation7 + $0x11c] sm:$0xf]
    %v2891 = vld [vmem:[#allocation7 + $0x120] sm:$0xff]
    %v2892 = vld [vmem:[#allocation7 + $0x128] sm:$0xf]
    %v2893 = vld [vmem:[#allocation7 + $0x12c] sm:$0xff]
    %v2894 = vld [vmem:[#allocation7 + $0x134] sm:$0xf]
    %v2895 = vld [vmem:[#allocation7 + $0x138] sm:$0xff]
    %v2896 = vld [vmem:[#allocation7 + $0x140] sm:$0xf]
    %v2897 = vld [vmem:[#allocation7 + $0x144] sm:$0xff]
    %v2898 = vld [vmem:[#allocation7 + $0x14c] sm:$0xf]
    %v2899 = vld [vmem:[#allocation7 + $0x150] sm:$0xff]
    %v2900 = vld [vmem:[#allocation7 + $0x158] sm:$0xf]
    %v2901 = vld [vmem:[#allocation7 + $0x15c] sm:$0xff]
    %v2902 = vld [vmem:[#allocation7 + $0x164] sm:$0xf]
    %v2903 = vld [vmem:[#allocation7 + $0x168] sm:$0xff]
    %v2904 = vld [vmem:[#allocation7 + $0x170] sm:$0xf]
    %v2905 = vld [vmem:[#allocation7 + $0x174] sm:$0xff]
    %v2906 = vld [vmem:[#allocation7 + $0x17c] sm:$0xf]
    %v2907 = vld [vmem:[#allocation7 + $0x180] sm:$0xff]
    %v2908 = vld [vmem:[#allocation7 + $0x188] sm:$0xf]
    %v2909 = vld [vmem:[#allocation7 + $0x18c] sm:$0xff]
    %v2910 = vld [vmem:[#allocation7 + $0x194] sm:$0xf]
    %v2911 = vld [vmem:[#allocation7 + $0x198] sm:$0xff]
    %v2912 = vld [vmem:[#allocation7 + $0x1a0] sm:$0xf]
    %v2913 = vld [vmem:[#allocation7 + $0x1a4] sm:$0xff]
    %v2914 = vld [vmem:[#allocation7 + $0x1ac] sm:$0xf]
    %v2915 = vld [vmem:[#allocation7 + $0x1b0] sm:$0xff]
    %v2916 = vld [vmem:[#allocation7 + $0x1b8] sm:$0xf]
    %v2917 = vld [vmem:[#allocation7 + $0x1bc] sm:$0xff]
    %v2918 = vld [vmem:[#allocation7 + $0x1c4] sm:$0xf]
    %v2919 = vld [vmem:[#allocation7 + $0x1c8] sm:$0xff]
    %v2920 = vld [vmem:[#allocation7 + $0x1d0] sm:$0xf]
    %v2921 = vld [vmem:[#allocation7 + $0x1d4] sm:$0xff]
    %v2922 = vld [vmem:[#allocation7 + $0x1dc] sm:$0xf]
    %v2923 = vld [vmem:[#allocation7 + $0x1e0] sm:$0xff]
    %v2924 = vld [vmem:[#allocation7 + $0x1e8] sm:$0xf]
    %v2925 = vld [vmem:[#allocation7 + $0x1ec] sm:$0xff]
    %v2926 = vld [vmem:[#allocation7 + $0x1f4] sm:$0xf]
    %v2927 = vld [vmem:[#allocation7 + $0x1f8] sm:$0xff]
    %v2928 = vld [vmem:[#allocation7 + $0x200] sm:$0xf]
    %v2929 = vld [vmem:[#allocation7 + $0x204] sm:$0xff]
    %v2930 = vld [vmem:[#allocation7 + $0x20c] sm:$0xf]
    %v2931 = vld [vmem:[#allocation7 + $0x210] sm:$0xff]
    %v2932 = vld [vmem:[#allocation7 + $0x218] sm:$0xf]
    %v2933 = vld [vmem:[#allocation7 + $0x21c] sm:$0xff]
    %v2934 = vld [vmem:[#allocation7 + $0x224] sm:$0xf]
    %v2935 = vld [vmem:[#allocation7 + $0x228] sm:$0xff]
    %v2936 = vld [vmem:[#allocation7 + $0x230] sm:$0xf]
    %v2937 = vld [vmem:[#allocation7 + $0x234] sm:$0xff]
    %v2938 = vld [vmem:[#allocation7 + $0x23c] sm:$0xf]
    %v2939 = vld [vmem:[#allocation7 + $0x240] sm:$0xff]
    %v2940 = vld [vmem:[#allocation7 + $0x248] sm:$0xf]
    %v2941 = vld [vmem:[#allocation7 + $0x24c] sm:$0xff]
    %v2942 = vld [vmem:[#allocation7 + $0x254] sm:$0xf]
    %v2943 = vld [vmem:[#allocation7 + $0x258] sm:$0xff]
    %v2944 = vld [vmem:[#allocation7 + $0x260] sm:$0xf]
    %v2945 = vld [vmem:[#allocation7 + $0x264] sm:$0xff]
    %v2946 = vld [vmem:[#allocation7 + $0x26c] sm:$0xf]
    %v2947 = vld [vmem:[#allocation7 + $0x270] sm:$0xff]
    %v2948 = vld [vmem:[#allocation7 + $0x278] sm:$0xf]
    %v2949 = vld [vmem:[#allocation7 + $0x27c] sm:$0xff]
    %v2950 = vld [vmem:[#allocation7 + $0x284] sm:$0xf]
    %v2951 = vld [vmem:[#allocation7 + $0x288] sm:$0xff]
    %v2952 = vld [vmem:[#allocation7 + $0x290] sm:$0xf]
    %v2953 = vld [vmem:[#allocation7 + $0x294] sm:$0xff]
    %v2954 = vld [vmem:[#allocation7 + $0x29c] sm:$0xf]
    %v2955 = vld [vmem:[#allocation7 + $0x2a0] sm:$0xff]
    %v2956 = vld [vmem:[#allocation7 + $0x2a8] sm:$0xf]
    %v2957 = vld [vmem:[#allocation7 + $0x2ac] sm:$0xff]
    %v2958 = vld [vmem:[#allocation7 + $0x2b4] sm:$0xf]
    %v2959 = vld [vmem:[#allocation7 + $0x2b8] sm:$0xff]
    %v2960 = vld [vmem:[#allocation7 + $0x2c0] sm:$0xf]
    %v2961 = vld [vmem:[#allocation7 + $0x2c4] sm:$0xff]
    %v2962 = vld [vmem:[#allocation7 + $0x2cc] sm:$0xf]
    %v2963 = vld [vmem:[#allocation7 + $0x2d0] sm:$0xff]
    %v2964 = vld [vmem:[#allocation7 + $0x2d8] sm:$0xf]
    %v2965 = vld [vmem:[#allocation7 + $0x2dc] sm:$0xff]
    %v2966 = vld [vmem:[#allocation7 + $0x2e4] sm:$0xf]
    %v2967 = vld [vmem:[#allocation7 + $0x2e8] sm:$0xff]
    %v2968 = vld [vmem:[#allocation7 + $0x2f0] sm:$0xf]
    %v2969 = vld [vmem:[#allocation7 + $0x2f4] sm:$0xff]
    %v2970 = vld [vmem:[#allocation7 + $0x2fc] sm:$0xf]
    %v2971 = vld [vmem:[#allocation9] sm:$0x7]
    %v2973 = vperm.slane %v2971, 0
    %v2974 = vperm.slane %v2971, 1
    %v2975 = vperm.slane %v2971, 2
    %v3107 = vunpack.c.l.b16 %v2843
    %v3108 = vunpack.c.h.b16 %v2843
    %v3109 = vunpack.c.l.b16 %v2844
    %v3110 = vunpack.c.l.b16 %v2845
    %v3111 = vunpack.c.h.b16 %v2845
    %v3112 = vunpack.c.l.b16 %v2846
    %v3113 = vunpack.c.l.b16 %v2847
    %v3114 = vunpack.c.h.b16 %v2847
    %v3115 = vunpack.c.l.b16 %v2848
    %v3116 = vunpack.c.l.b16 %v2849
    %v3117 = vunpack.c.h.b16 %v2849
    %v3118 = vunpack.c.l.b16 %v2850
    %v3119 = vunpack.c.l.b16 %v2851
    %v3120 = vunpack.c.h.b16 %v2851
    %v3121 = vunpack.c.l.b16 %v2852
    %v3122 = vunpack.c.l.b16 %v2853
    %v3123 = vunpack.c.h.b16 %v2853
    %v3124 = vunpack.c.l.b16 %v2854
    %v3125 = vunpack.c.l.b16 %v2855
    %v3126 = vunpack.c.h.b16 %v2855
    %v3127 = vunpack.c.l.b16 %v2856
    %v3128 = vunpack.c.l.b16 %v2857
    %v3129 = vunpack.c.h.b16 %v2857
    %v3130 = vunpack.c.l.b16 %v2858
    %v3131 = vunpack.c.l.b16 %v2859
    %v3132 = vunpack.c.h.b16 %v2859
    %v3133 = vunpack.c.l.b16 %v2860
    %v3134 = vunpack.c.l.b16 %v2861
    %v3135 = vunpack.c.h.b16 %v2861
    %v3136 = vunpack.c.l.b16 %v2862
    %v3137 = vunpack.c.l.b16 %v2863
    %v3138 = vunpack.c.h.b16 %v2863
    %v3139 = vunpack.c.l.b16 %v2864
    %v3140 = vunpack.c.l.b16 %v2865
    %v3141 = vunpack.c.h.b16 %v2865
    %v3142 = vunpack.c.l.b16 %v2866
    %v3143 = vunpack.c.l.b16 %v2867
    %v3144 = vunpack.c.h.b16 %v2867
    %v3145 = vunpack.c.l.b16 %v2868
    %v3146 = vunpack.c.l.b16 %v2869
    %v3147 = vunpack.c.h.b16 %v2869
    %v3148 = vunpack.c.l.b16 %v2870
    %v3149 = vunpack.c.l.b16 %v2871
    %v3150 = vunpack.c.h.b16 %v2871
    %v3151 = vunpack.c.l.b16 %v2872
    %v3152 = vunpack.c.l.b16 %v2873
    %v3153 = vunpack.c.h.b16 %v2873
    %v3154 = vunpack.c.l.b16 %v2874
    %v3155 = vunpack.c.l.b16 %v2875
    %v3156 = vunpack.c.h.b16 %v2875
    %v3157 = vunpack.c.l.b16 %v2876
    %v3158 = vunpack.c.l.b16 %v2877
    %v3159 = vunpack.c.h.b16 %v2877
    %v3160 = vunpack.c.l.b16 %v2878
    %v3161 = vunpack.c.l.b16 %v2879
    %v3162 = vunpack.c.h.b16 %v2879
    %v3163 = vunpack.c.l.b16 %v2880
    %v3164 = vunpack.c.l.b16 %v2881
    %v3165 = vunpack.c.h.b16 %v2881
    %v3166 = vunpack.c.l.b16 %v2882
    %v3167 = vunpack.c.l.b16 %v2883
    %v3168 = vunpack.c.h.b16 %v2883
    %v3169 = vunpack.c.l.b16 %v2884
    %v3170 = vunpack.c.l.b16 %v2885
    %v3171 = vunpack.c.h.b16 %v2885
    %v3172 = vunpack.c.l.b16 %v2886
    %v3173 = vunpack.c.l.b16 %v2887
    %v3174 = vunpack.c.h.b16 %v2887
    %v3175 = vunpack.c.l.b16 %v2888
    %v3176 = vunpack.c.l.b16 %v2889
    %v3177 = vunpack.c.h.b16 %v2889
    %v3178 = vunpack.c.l.b16 %v2890
    %v3179 = vunpack.c.l.b16 %v2891
    %v3180 = vunpack.c.h.b16 %v2891
    %v3181 = vunpack.c.l.b16 %v2892
    %v3182 = vunpack.c.l.b16 %v2893
    %v3183 = vunpack.c.h.b16 %v2893
    %v3184 = vunpack.c.l.b16 %v2894
    %v3185 = vunpack.c.l.b16 %v2895
    %v3186 = vunpack.c.h.b16 %v2895
    %v3187 = vunpack.c.l.b16 %v2896
    %v3188 = vunpack.c.l.b16 %v2897
    %v3189 = vunpack.c.h.b16 %v2897
    %v3190 = vunpack.c.l.b16 %v2898
    %v3191 = vunpack.c.l.b16 %v2899
    %v3192 = vunpack.c.h.b16 %v2899
    %v3193 = vunpack.c.l.b16 %v2900
    %v3194 = vunpack.c.l.b16 %v2901
    %v3195 = vunpack.c.h.b16 %v2901
    %v3196 = vunpack.c.l.b16 %v2902
    %v3197 = vunpack.c.l.b16 %v2903
    %v3198 = vunpack.c.h.b16 %v2903
    %v3199 = vunpack.c.l.b16 %v2904
    %v3200 = vunpack.c.l.b16 %v2905
    %v3201 = vunpack.c.h.b16 %v2905
    %v3202 = vunpack.c.l.b16 %v2906
    %v3203 = vunpack.c.l.b16 %v2907
    %v3204 = vunpack.c.h.b16 %v2907
    %v3205 = vunpack.c.l.b16 %v2908
    %v3206 = vunpack.c.l.b16 %v2909
    %v3207 = vunpack.c.h.b16 %v2909
    %v3208 = vunpack.c.l.b16 %v2910
    %v3209 = vunpack.c.l.b16 %v2911
    %v3210 = vunpack.c.h.b16 %v2911
    %v3211 = vunpack.c.l.b16 %v2912
    %v3212 = vunpack.c.l.b16 %v2913
    %v3213 = vunpack.c.h.b16 %v2913
    %v3214 = vunpack.c.l.b16 %v2914
    %v3215 = vunpack.c.l.b16 %v2915
    %v3216 = vunpack.c.h.b16 %v2915
    %v3217 = vunpack.c.l.b16 %v2916
    %v3218 = vunpack.c.l.b16 %v2917
    %v3219 = vunpack.c.h.b16 %v2917
    %v3220 = vunpack.c.l.b16 %v2918
    %v3221 = vunpack.c.l.b16 %v2919
    %v3222 = vunpack.c.h.b16 %v2919
    %v3223 = vunpack.c.l.b16 %v2920
    %v3224 = vunpack.c.l.b16 %v2921
    %v3225 = vunpack.c.h.b16 %v2921
    %v3226 = vunpack.c.l.b16 %v2922
    %v3227 = vunpack.c.l.b16 %v2923
    %v3228 = vunpack.c.h.b16 %v2923
    %v3229 = vunpack.c.l.b16 %v2924
    %v3230 = vunpack.c.l.b16 %v2925
    %v3231 = vunpack.c.h.b16 %v2925
    %v3232 = vunpack.c.l.b16 %v2926
    %v3233 = vunpack.c.l.b16 %v2927
    %v3234 = vunpack.c.h.b16 %v2927
    %v3235 = vunpack.c.l.b16 %v2928
    %v3236 = vunpack.c.l.b16 %v2929
    %v3237 = vunpack.c.h.b16 %v2929
    %v3238 = vunpack.c.l.b16 %v2930
    %v3239 = vunpack.c.l.b16 %v2931
    %v3240 = vunpack.c.h.b16 %v2931
    %v3241 = vunpack.c.l.b16 %v2932
    %v3242 = vunpack.c.l.b16 %v2933
    %v3243 = vunpack.c.h.b16 %v2933
    %v3244 = vunpack.c.l.b16 %v2934
    %v3245 = vunpack.c.l.b16 %v2935
    %v3246 = vunpack.c.h.b16 %v2935
    %v3247 = vunpack.c.l.b16 %v2936
    %v3248 = vunpack.c.l.b16 %v2937
    %v3249 = vunpack.c.h.b16 %v2937
    %v3250 = vunpack.c.l.b16 %v2938
    %v3251 = vunpack.c.l.b16 %v2939
    %v3252 = vunpack.c.h.b16 %v2939
    %v3253 = vunpack.c.l.b16 %v2940
    %v3254 = vunpack.c.l.b16 %v2941
    %v3255 = vunpack.c.h.b16 %v2941
    %v3256 = vunpack.c.l.b16 %v2942
    %v3257 = vunpack.c.l.b16 %v2943
    %v3258 = vunpack.c.h.b16 %v2943
    %v3259 = vunpack.c.l.b16 %v2944
    %v3260 = vunpack.c.l.b16 %v2945
    %v3261 = vunpack.c.h.b16 %v2945
    %v3262 = vunpack.c.l.b16 %v2946
    %v3263 = vunpack.c.l.b16 %v2947
    %v3264 = vunpack.c.h.b16 %v2947
    %v3265 = vunpack.c.l.b16 %v2948
    %v3266 = vunpack.c.l.b16 %v2949
    %v3267 = vunpack.c.h.b16 %v2949
    %v3268 = vunpack.c.l.b16 %v2950
    %v3269 = vunpack.c.l.b16 %v2951
    %v3270 = vunpack.c.h.b16 %v2951
    %v3271 = vunpack.c.l.b16 %v2952
    %v3272 = vunpack.c.l.b16 %v2953
    %v3273 = vunpack.c.h.b16 %v2953
    %v3274 = vunpack.c.l.b16 %v2954
    %v3275 = vunpack.c.l.b16 %v2955
    %v3276 = vunpack.c.h.b16 %v2955
    %v3277 = vunpack.c.l.b16 %v2956
    %v3278 = vunpack.c.l.b16 %v2957
    %v3279 = vunpack.c.h.b16 %v2957
    %v3280 = vunpack.c.l.b16 %v2958
    %v3281 = vunpack.c.l.b16 %v2959
    %v3282 = vunpack.c.h.b16 %v2959
    %v3283 = vunpack.c.l.b16 %v2960
    %v3284 = vunpack.c.l.b16 %v2961
    %v3285 = vunpack.c.h.b16 %v2961
    %v3286 = vunpack.c.l.b16 %v2962
    %v3287 = vunpack.c.l.b16 %v2963
    %v3288 = vunpack.c.h.b16 %v2963
    %v3289 = vunpack.c.l.b16 %v2964
    %v3290 = vunpack.c.l.b16 %v2965
    %v3291 = vunpack.c.h.b16 %v2965
    %v3292 = vunpack.c.l.b16 %v2966
    %v3293 = vunpack.c.l.b16 %v2967
    %v3294 = vunpack.c.h.b16 %v2967
    %v3295 = vunpack.c.l.b16 %v2968
    %v3296 = vunpack.c.l.b16 %v2969
    %v3297 = vunpack.c.h.b16 %v2969
    %v3298 = vunpack.c.l.b16 %v2970
    %v3299 = vpack.c.b16 %v3110, %v3107
    %v3300 = vpack.c.b16 %v3111, %v3108
    %v3301 = vpack.c.b16 %v3112, %v3109
    %v3302 = vpack.c.b16 %v3116, %v3113
    %v3303 = vpack.c.b16 %v3117, %v3114
    %v3304 = vpack.c.b16 %v3118, %v3115
    %v3305 = vpack.c.b16 %v3122, %v3119
    %v3306 = vpack.c.b16 %v3123, %v3120
    %v3307 = vpack.c.b16 %v3124, %v3121
    %v3308 = vpack.c.b16 %v3128, %v3125
    %v3309 = vpack.c.b16 %v3129, %v3126
    %v3310 = vpack.c.b16 %v3130, %v3127
    %v3311 = vpack.c.b16 %v3134, %v3131
    %v3312 = vpack.c.b16 %v3135, %v3132
    %v3313 = vpack.c.b16 %v3136, %v3133
    %v3314 = vpack.c.b16 %v3140, %v3137
    %v3315 = vpack.c.b16 %v3141, %v3138
    %v3316 = vpack.c.b16 %v3142, %v3139
    %v3317 = vpack.c.b16 %v3146, %v3143
    %v3318 = vpack.c.b16 %v3147, %v3144
    %v3319 = vpack.c.b16 %v3148, %v3145
    %v3320 = vpack.c.b16 %v3152, %v3149
    %v3321 = vpack.c.b16 %v3153, %v3150
    %v3322 = vpack.c.b16 %v3154, %v3151
    %v3323 = vpack.c.b16 %v3158, %v3155
    %v3324 = vpack.c.b16 %v3159, %v3156
    %v3325 = vpack.c.b16 %v3160, %v3157
    %v3326 = vpack.c.b16 %v3164, %v3161
    %v3327 = vpack.c.b16 %v3165, %v3162
    %v3328 = vpack.c.b16 %v3166, %v3163
    %v3329 = vpack.c.b16 %v3170, %v3167
    %v3330 = vpack.c.b16 %v3171, %v3168
    %v3331 = vpack.c.b16 %v3172, %v3169
    %v3332 = vpack.c.b16 %v3176, %v3173
    %v3333 = vpack.c.b16 %v3177, %v3174
    %v3334 = vpack.c.b16 %v3178, %v3175
    %v3335 = vpack.c.b16 %v3182, %v3179
    %v3336 = vpack.c.b16 %v3183, %v3180
    %v3337 = vpack.c.b16 %v3184, %v3181
    %v3338 = vpack.c.b16 %v3188, %v3185
    %v3339 = vpack.c.b16 %v3189, %v3186
    %v3340 = vpack.c.b16 %v3190, %v3187
    %v3341 = vpack.c.b16 %v3194, %v3191
    %v3342 = vpack.c.b16 %v3195, %v3192
    %v3343 = vpack.c.b16 %v3196, %v3193
    %v3344 = vpack.c.b16 %v3200, %v3197
    %v3345 = vpack.c.b16 %v3201, %v3198
    %v3346 = vpack.c.b16 %v3202, %v3199
    %v3347 = vpack.c.b16 %v3206, %v3203
    %v3348 = vpack.c.b16 %v3207, %v3204
    %v3349 = vpack.c.b16 %v3208, %v3205
    %v3350 = vpack.c.b16 %v3212, %v3209
    %v3351 = vpack.c.b16 %v3213, %v3210
    %v3352 = vpack.c.b16 %v3214, %v3211
    %v3353 = vpack.c.b16 %v3218, %v3215
    %v3354 = vpack.c.b16 %v3219, %v3216
    %v3355 = vpack.c.b16 %v3220, %v3217
    %v3356 = vpack.c.b16 %v3224, %v3221
    %v3357 = vpack.c.b16 %v3225, %v3222
    %v3358 = vpack.c.b16 %v3226, %v3223
    %v3359 = vpack.c.b16 %v3230, %v3227
    %v3360 = vpack.c.b16 %v3231, %v3228
    %v3361 = vpack.c.b16 %v3232, %v3229
    %v3362 = vpack.c.b16 %v3236, %v3233
    %v3363 = vpack.c.b16 %v3237, %v3234
    %v3364 = vpack.c.b16 %v3238, %v3235
    %v3365 = vpack.c.b16 %v3242, %v3239
    %v3366 = vpack.c.b16 %v3243, %v3240
    %v3367 = vpack.c.b16 %v3244, %v3241
    %v3368 = vpack.c.b16 %v3248, %v3245
    %v3369 = vpack.c.b16 %v3249, %v3246
    %v3370 = vpack.c.b16 %v3250, %v3247
    %v3371 = vpack.c.b16 %v3254, %v3251
    %v3372 = vpack.c.b16 %v3255, %v3252
    %v3373 = vpack.c.b16 %v3256, %v3253
    %v3374 = vpack.c.b16 %v3260, %v3257
    %v3375 = vpack.c.b16 %v3261, %v3258
    %v3376 = vpack.c.b16 %v3262, %v3259
    %v3377 = vpack.c.b16 %v3266, %v3263
    %v3378 = vpack.c.b16 %v3267, %v3264
    %v3379 = vpack.c.b16 %v3268, %v3265
    %v3380 = vpack.c.b16 %v3272, %v3269
    %v3381 = vpack.c.b16 %v3273, %v3270
    %v3382 = vpack.c.b16 %v3274, %v3271
    %v3383 = vpack.c.b16 %v3278, %v3275
    %v3384 = vpack.c.b16 %v3279, %v3276
    %v3385 = vpack.c.b16 %v3280, %v3277
    %v3386 = vpack.c.b16 %v3284, %v3281
    %v3387 = vpack.c.b16 %v3285, %v3282
    %v3388 = vpack.c.b16 %v3286, %v3283
    %v3389 = vpack.c.b16 %v3290, %v3287
    %v3390 = vpack.c.b16 %v3291, %v3288
    %v3391 = vpack.c.b16 %v3292, %v3289
    %v3392 = vpack.c.b16 %v3296, %v3293
    %v3393 = vpack.c.b16 %v3297, %v3294
    %v3394 = vpack.c.b16 %v3298, %v3295
    %3491 = vmatpush.bf16.msra.mxu0 %v3320
    %3492 = vmatpush.bf16.msra.mxu0 %v3317
    %3493 = vmatpush.bf16.msra.mxu0 %v3314
    %3494 = vmatpush.bf16.msra.mxu0 %v3311
    %3495 = vmatpush.bf16.msra.mxu0 %v3308
    %3496 = vmatpush.bf16.msra.mxu0 %v3305
    %3497 = vmatpush.bf16.msra.mxu0 %v3302
    %3498 = vmatpush.bf16.msra.mxu0 %v3299
    %3499 = vmatmul.bf16.gmra.mxu0 %v2839
    %v3500 = vpop.f32.mrf.mxu0
    %v3501 = vadd.f32 %v2973, %v3500
    %v3502 = vpop.f32.mrf.mxu0
    %3503 = vdwg.mxu0
    %3504 = vmatpush.bf16.msra.mxu0 %v3344
    %3505 = vmatpush.bf16.msra.mxu0 %v3341
    %3506 = vmatpush.bf16.msra.mxu0 %v3338
    %3507 = vmatpush.bf16.msra.mxu0 %v3335
    %3508 = vmatpush.bf16.msra.mxu0 %v3332
    %3509 = vmatpush.bf16.msra.mxu0 %v3329
    %3510 = vmatpush.bf16.msra.mxu0 %v3326
    %3511 = vmatpush.bf16.msra.mxu0 %v3323
    %3512 = vmatmul.bf16.gmra.mxu0 %v2840
    %v3513 = vpop.f32.mrf.mxu0
    %v3514 = vadd.f32 %v3501, %v3513
    %v3515 = vpop.f32.mrf.mxu0
    %3516 = vdwg.mxu0
    %3517 = vmatpush.bf16.msra.mxu0 %v3368
    %3518 = vmatpush.bf16.msra.mxu0 %v3365
    %3519 = vmatpush.bf16.msra.mxu0 %v3362
    %3520 = vmatpush.bf16.msra.mxu0 %v3359
    %3521 = vmatpush.bf16.msra.mxu0 %v3356
    %3522 = vmatpush.bf16.msra.mxu0 %v3353
    %3523 = vmatpush.bf16.msra.mxu0 %v3350
    %3524 = vmatpush.bf16.msra.mxu0 %v3347
    %3525 = vmatmul.bf16.gmra.mxu0 %v2841
    %v3526 = vpop.f32.mrf.mxu0
    %v3527 = vadd.f32 %v3514, %v3526
    %v3528 = vpop.f32.mrf.mxu0
    %3529 = vdwg.mxu0
    %3530 = vmatpush.bf16.msra.mxu0 %v3392
    %3531 = vmatpush.bf16.msra.mxu0 %v3389
    %3532 = vmatpush.bf16.msra.mxu0 %v3386
    %3533 = vmatpush.bf16.msra.mxu0 %v3383
    %3534 = vmatpush.bf16.msra.mxu0 %v3380
    %3535 = vmatpush.bf16.msra.mxu0 %v3377
    %3536 = vmatpush.bf16.msra.mxu0 %v3374
    %3537 = vmatpush.bf16.msra.mxu0 %v3371
    %3538 = vmatmul.bf16.gmra.mxu0 %v2842
    %v3539 = vpop.f32.mrf.mxu0
    %v3540 = vadd.f32 %v3527, %v3539
    %v3541 = vpop.f32.mrf.mxu0
    %3542 = vdwg.mxu0
    %3543 = vmatpush.bf16.msra.mxu0 %v3321
    %3544 = vmatpush.bf16.msra.mxu0 %v3318
    %3545 = vmatpush.bf16.msra.mxu0 %v3315
    %3546 = vmatpush.bf16.msra.mxu0 %v3312
    %3547 = vmatpush.bf16.msra.mxu0 %v3309
    %3548 = vmatpush.bf16.msra.mxu0 %v3306
    %3549 = vmatpush.bf16.msra.mxu0 %v3303
    %3550 = vmatpush.bf16.msra.mxu0 %v3300
    %3551 = vmatmul.bf16.gmra.mxu0 %v2839
    %v3552 = vpop.f32.mrf.mxu0
    %v3553 = vadd.f32 %v2974, %v3552
    %v3554 = vpop.f32.mrf.mxu0
    %3555 = vdwg.mxu0
    %3556 = vmatpush.bf16.msra.mxu0 %v3345
    %3557 = vmatpush.bf16.msra.mxu0 %v3342
    %3558 = vmatpush.bf16.msra.mxu0 %v3339
    %3559 = vmatpush.bf16.msra.mxu0 %v3336
    %3560 = vmatpush.bf16.msra.mxu0 %v3333
    %3561 = vmatpush.bf16.msra.mxu0 %v3330
    %3562 = vmatpush.bf16.msra.mxu0 %v3327
    %3563 = vmatpush.bf16.msra.mxu0 %v3324
    %3564 = vmatmul.bf16.gmra.mxu0 %v2840
    %v3565 = vpop.f32.mrf.mxu0
    %v3566 = vadd.f32 %v3553, %v3565
    %v3567 = vpop.f32.mrf.mxu0
    %3568 = vdwg.mxu0
    %3569 = vmatpush.bf16.msra.mxu0 %v3369
    %3570 = vmatpush.bf16.msra.mxu0 %v3366
    %3571 = vmatpush.bf16.msra.mxu0 %v3363
    %3572 = vmatpush.bf16.msra.mxu0 %v3360
    %3573 = vmatpush.bf16.msra.mxu0 %v3357
    %3574 = vmatpush.bf16.msra.mxu0 %v3354
    %3575 = vmatpush.bf16.msra.mxu0 %v3351
    %3576 = vmatpush.bf16.msra.mxu0 %v3348
    %3577 = vmatmul.bf16.gmra.mxu0 %v2841
    %v3578 = vpop.f32.mrf.mxu0
    %v3579 = vadd.f32 %v3566, %v3578
    %v3580 = vpop.f32.mrf.mxu0
    %3581 = vdwg.mxu0
    %3582 = vmatpush.bf16.msra.mxu0 %v3393
    %3583 = vmatpush.bf16.msra.mxu0 %v3390
    %3584 = vmatpush.bf16.msra.mxu0 %v3387
    %3585 = vmatpush.bf16.msra.mxu0 %v3384
    %3586 = vmatpush.bf16.msra.mxu0 %v3381
    %3587 = vmatpush.bf16.msra.mxu0 %v3378
    %3588 = vmatpush.bf16.msra.mxu0 %v3375
    %3589 = vmatpush.bf16.msra.mxu0 %v3372
    %3590 = vmatmul.bf16.gmra.mxu0 %v2842
    %v3591 = vpop.f32.mrf.mxu0
    %v3592 = vadd.f32 %v3579, %v3591
    %v3593 = vpop.f32.mrf.mxu0
    %3594 = vdwg.mxu0
    %3595 = vmatpush.bf16.msra.mxu0 %v3322
    %3596 = vmatpush.bf16.msra.mxu0 %v3319
    %3597 = vmatpush.bf16.msra.mxu0 %v3316
    %3598 = vmatpush.bf16.msra.mxu0 %v3313
    %3599 = vmatpush.bf16.msra.mxu0 %v3310
    %3600 = vmatpush.bf16.msra.mxu0 %v3307
    %3601 = vmatpush.bf16.msra.mxu0 %v3304
    %3602 = vmatpush.bf16.msra.mxu0 %v3301
    %3603 = vmatmul.bf16.gmra.mxu0 %v2839
    %v3604 = vpop.f32.mrf.mxu0
    %v3605 = vadd.f32 %v2975, %v3604
    %v3606 = vpop.f32.mrf.mxu0
    %3607 = vdwg.mxu0
    %3608 = vmatpush.bf16.msra.mxu0 %v3346
    %3609 = vmatpush.bf16.msra.mxu0 %v3343
    %3610 = vmatpush.bf16.msra.mxu0 %v3340
    %3611 = vmatpush.bf16.msra.mxu0 %v3337
    %3612 = vmatpush.bf16.msra.mxu0 %v3334
    %3613 = vmatpush.bf16.msra.mxu0 %v3331
    %3614 = vmatpush.bf16.msra.mxu0 %v3328
    %3615 = vmatpush.bf16.msra.mxu0 %v3325
    %3616 = vmatmul.bf16.gmra.mxu0 %v2840
    %v3617 = vpop.f32.mrf.mxu0
    %v3618 = vadd.f32 %v3605, %v3617
    %v3619 = vpop.f32.mrf.mxu0
    %3620 = vdwg.mxu0
    %3621 = vmatpush.bf16.msra.mxu0 %v3370
    %3622 = vmatpush.bf16.msra.mxu0 %v3367
    %3623 = vmatpush.bf16.msra.mxu0 %v3364
    %3624 = vmatpush.bf16.msra.mxu0 %v3361
    %3625 = vmatpush.bf16.msra.mxu0 %v3358
    %3626 = vmatpush.bf16.msra.mxu0 %v3355
    %3627 = vmatpush.bf16.msra.mxu0 %v3352
    %3628 = vmatpush.bf16.msra.mxu0 %v3349
    %3629 = vmatmul.bf16.gmra.mxu0 %v2841
    %v3630 = vpop.f32.mrf.mxu0
    %v3631 = vadd.f32 %v3618, %v3630
    %v3632 = vpop.f32.mrf.mxu0
    %3633 = vdwg.mxu0
    %3634 = vmatpush.bf16.msra.mxu0 %v3394
    %3635 = vmatpush.bf16.msra.mxu0 %v3391
    %3636 = vmatpush.bf16.msra.mxu0 %v3388
    %3637 = vmatpush.bf16.msra.mxu0 %v3385
    %3638 = vmatpush.bf16.msra.mxu0 %v3382
    %3639 = vmatpush.bf16.msra.mxu0 %v3379
    %3640 = vmatpush.bf16.msra.mxu0 %v3376
    %3641 = vmatpush.bf16.msra.mxu0 %v3373
    %3642 = vmatmul.bf16.gmra.mxu0 %v2842
    %v3643 = vpop.f32.mrf.mxu0
    %v3644 = vadd.f32 %v3631, %v3643
    %v3645 = vpop.f32.mrf.mxu0
    %3646 = vdwg.mxu0
    %v3647 = vmax.f32 %v3540, 0.0
    %v3648 = vmax.f32 %v3592, 0.0
    %v3649 = vmax.f32 %v3644, 0.0
    %v3650 = vpack.c.bf16 %v3647, %v3647
    %v3651 = vpack.c.bf16 %v3648, %v3648
    %v3652 = vpack.c.bf16 %v3649, %v3649
    %v3653 = vld [vmem:[#allocation10] sm:$0xff]
    %v3654 = vld [vmem:[#allocation10 + $0x8] sm:$0xff]
    %v3655 = vld [vmem:[#allocation10 + $0x10] sm:$0xff]
    %v3656 = vld [vmem:[#allocation10 + $0x18] sm:$0xff]
    %v3657 = vld [vmem:[#allocation10 + $0x20] sm:$0xff]
    %v3658 = vld [vmem:[#allocation10 + $0x28] sm:$0xff]
    %v3659 = vld [vmem:[#allocation10 + $0x30] sm:$0xff]
    %v3660 = vld [vmem:[#allocation10 + $0x38] sm:$0xff]
    %v3661 = vld [vmem:[#allocation10 + $0x40] sm:$0xff]
    %v3662 = vld [vmem:[#allocation10 + $0x48] sm:$0xff]
    %v3663 = vld [vmem:[#allocation10 + $0x50] sm:$0xff]
    %v3664 = vld [vmem:[#allocation10 + $0x58] sm:$0xff]
    %v3665 = vld [vmem:[#allocation10 + $0x60] sm:$0xff]
    %v3666 = vld [vmem:[#allocation10 + $0x68] sm:$0xff]
    %v3667 = vld [vmem:[#allocation10 + $0x70] sm:$0xff]
    %v3668 = vld [vmem:[#allocation10 + $0x78] sm:$0xff]
    %v3669 = vld [vmem:[#allocation10 + $0x80] sm:$0xff]
    %v3670 = vld [vmem:[#allocation10 + $0x88] sm:$0xff]
    %v3671 = vld [vmem:[#allocation10 + $0x90] sm:$0xff]
    %v3672 = vld [vmem:[#allocation10 + $0x98] sm:$0xff]
    %v3673 = vld [vmem:[#allocation10 + $0xa0] sm:$0xff]
    %v3674 = vld [vmem:[#allocation10 + $0xa8] sm:$0xff]
    %v3675 = vld [vmem:[#allocation10 + $0xb0] sm:$0xff]
    %v3676 = vld [vmem:[#allocation10 + $0xb8] sm:$0xff]
    %v3677 = vld [vmem:[#allocation10 + $0xc0] sm:$0xff]
    %v3678 = vld [vmem:[#allocation10 + $0xc8] sm:$0xff]
    %v3679 = vld [vmem:[#allocation10 + $0xd0] sm:$0xff]
    %v3680 = vld [vmem:[#allocation10 + $0xd8] sm:$0xff]
    %v3681 = vld [vmem:[#allocation10 + $0xe0] sm:$0xff]
    %v3682 = vld [vmem:[#allocation10 + $0xe8] sm:$0xff]
    %v3683 = vld [vmem:[#allocation10 + $0xf0] sm:$0xff]
    %v3684 = vld [vmem:[#allocation10 + $0xf8] sm:$0xff]
    %v3685 = vld [vmem:[#allocation10 + $0x100] sm:$0xff]
    %v3686 = vld [vmem:[#allocation10 + $0x108] sm:$0xff]
    %v3687 = vld [vmem:[#allocation10 + $0x110] sm:$0xff]
    %v3688 = vld [vmem:[#allocation10 + $0x118] sm:$0xff]
    %v3689 = vld [vmem:[#allocation10 + $0x120] sm:$0xff]
    %v3690 = vld [vmem:[#allocation10 + $0x128] sm:$0xff]
    %v3691 = vld [vmem:[#allocation10 + $0x130] sm:$0xff]
    %v3692 = vld [vmem:[#allocation10 + $0x138] sm:$0xff]
    %v3693 = vld [vmem:[#allocation10 + $0x140] sm:$0xff]
    %v3694 = vld [vmem:[#allocation10 + $0x148] sm:$0xff]
    %v3695 = vld [vmem:[#allocation10 + $0x150] sm:$0xff]
    %v3696 = vld [vmem:[#allocation10 + $0x158] sm:$0xff]
    %v3697 = vld [vmem:[#allocation10 + $0x160] sm:$0xff]
    %v3698 = vld [vmem:[#allocation10 + $0x168] sm:$0xff]
    %v3699 = vld [vmem:[#allocation10 + $0x170] sm:$0xff]
    %v3700 = vld [vmem:[#allocation10 + $0x178] sm:$0xff]
    %v3701 = vld [vmem:[#allocation12] sm:$0x3]
    %v3703 = vperm.slane %v3701, 0
    %v3704 = vperm.slane %v3701, 1
    %v3755 = vunpack.c.l.b16 %v3653
    %v3756 = vunpack.c.h.b16 %v3653
    %v3757 = vunpack.c.l.b16 %v3654
    %v3758 = vunpack.c.h.b16 %v3654
    %v3759 = vunpack.c.l.b16 %v3655
    %v3760 = vunpack.c.h.b16 %v3655
    %v3761 = vunpack.c.l.b16 %v3656
    %v3762 = vunpack.c.h.b16 %v3656
    %v3763 = vunpack.c.l.b16 %v3657
    %v3764 = vunpack.c.h.b16 %v3657
    %v3765 = vunpack.c.l.b16 %v3658
    %v3766 = vunpack.c.h.b16 %v3658
    %v3767 = vunpack.c.l.b16 %v3659
    %v3768 = vunpack.c.h.b16 %v3659
    %v3769 = vunpack.c.l.b16 %v3660
    %v3770 = vunpack.c.h.b16 %v3660
    %v3771 = vunpack.c.l.b16 %v3661
    %v3772 = vunpack.c.h.b16 %v3661
    %v3773 = vunpack.c.l.b16 %v3662
    %v3774 = vunpack.c.h.b16 %v3662
    %v3775 = vunpack.c.l.b16 %v3663
    %v3776 = vunpack.c.h.b16 %v3663
    %v3777 = vunpack.c.l.b16 %v3664
    %v3778 = vunpack.c.h.b16 %v3664
    %v3779 = vunpack.c.l.b16 %v3665
    %v3780 = vunpack.c.h.b16 %v3665
    %v3781 = vunpack.c.l.b16 %v3666
    %v3782 = vunpack.c.h.b16 %v3666
    %v3783 = vunpack.c.l.b16 %v3667
    %v3784 = vunpack.c.h.b16 %v3667
    %v3785 = vunpack.c.l.b16 %v3668
    %v3786 = vunpack.c.h.b16 %v3668
    %v3787 = vunpack.c.l.b16 %v3669
    %v3788 = vunpack.c.h.b16 %v3669
    %v3789 = vunpack.c.l.b16 %v3670
    %v3790 = vunpack.c.h.b16 %v3670
    %v3791 = vunpack.c.l.b16 %v3671
    %v3792 = vunpack.c.h.b16 %v3671
    %v3793 = vunpack.c.l.b16 %v3672
    %v3794 = vunpack.c.h.b16 %v3672
    %v3795 = vunpack.c.l.b16 %v3673
    %v3796 = vunpack.c.h.b16 %v3673
    %v3797 = vunpack.c.l.b16 %v3674
    %v3798 = vunpack.c.h.b16 %v3674
    %v3799 = vunpack.c.l.b16 %v3675
    %v3800 = vunpack.c.h.b16 %v3675
    %v3801 = vunpack.c.l.b16 %v3676
    %v3802 = vunpack.c.h.b16 %v3676
    %v3803 = vunpack.c.l.b16 %v3677
    %v3804 = vunpack.c.h.b16 %v3677
    %v3805 = vunpack.c.l.b16 %v3678
    %v3806 = vunpack.c.h.b16 %v3678
    %v3807 = vunpack.c.l.b16 %v3679
    %v3808 = vunpack.c.h.b16 %v3679
    %v3809 = vunpack.c.l.b16 %v3680
    %v3810 = vunpack.c.h.b16 %v3680
    %v3811 = vunpack.c.l.b16 %v3681
    %v3812 = vunpack.c.h.b16 %v3681
    %v3813 = vunpack.c.l.b16 %v3682
    %v3814 = vunpack.c.h.b16 %v3682
    %v3815 = vunpack.c.l.b16 %v3683
    %v3816 = vunpack.c.h.b16 %v3683
    %v3817 = vunpack.c.l.b16 %v3684
    %v3818 = vunpack.c.h.b16 %v3684
    %v3819 = vunpack.c.l.b16 %v3685
    %v3820 = vunpack.c.h.b16 %v3685
    %v3821 = vunpack.c.l.b16 %v3686
    %v3822 = vunpack.c.h.b16 %v3686
    %v3823 = vunpack.c.l.b16 %v3687
    %v3824 = vunpack.c.h.b16 %v3687
    %v3825 = vunpack.c.l.b16 %v3688
    %v3826 = vunpack.c.h.b16 %v3688
    %v3827 = vunpack.c.l.b16 %v3689
    %v3828 = vunpack.c.h.b16 %v3689
    %v3829 = vunpack.c.l.b16 %v3690
    %v3830 = vunpack.c.h.b16 %v3690
    %v3831 = vunpack.c.l.b16 %v3691
    %v3832 = vunpack.c.h.b16 %v3691
    %v3833 = vunpack.c.l.b16 %v3692
    %v3834 = vunpack.c.h.b16 %v3692
    %v3835 = vunpack.c.l.b16 %v3693
    %v3836 = vunpack.c.h.b16 %v3693
    %v3837 = vunpack.c.l.b16 %v3694
    %v3838 = vunpack.c.h.b16 %v3694
    %v3839 = vunpack.c.l.b16 %v3695
    %v3840 = vunpack.c.h.b16 %v3695
    %v3841 = vunpack.c.l.b16 %v3696
    %v3842 = vunpack.c.h.b16 %v3696
    %v3843 = vunpack.c.l.b16 %v3697
    %v3844 = vunpack.c.h.b16 %v3697
    %v3845 = vunpack.c.l.b16 %v3698
    %v3846 = vunpack.c.h.b16 %v3698
    %v3847 = vunpack.c.l.b16 %v3699
    %v3848 = vunpack.c.h.b16 %v3699
    %v3849 = vunpack.c.l.b16 %v3700
    %v3850 = vunpack.c.h.b16 %v3700
    %v3851 = vpack.c.b16 %v3757, %v3755
    %v3852 = vpack.c.b16 %v3758, %v3756
    %v3853 = vpack.c.b16 %v3761, %v3759
    %v3854 = vpack.c.b16 %v3762, %v3760
    %v3855 = vpack.c.b16 %v3765, %v3763
    %v3856 = vpack.c.b16 %v3766, %v3764
    %v3857 = vpack.c.b16 %v3769, %v3767
    %v3858 = vpack.c.b16 %v3770, %v3768
    %v3859 = vpack.c.b16 %v3773, %v3771
    %v3860 = vpack.c.b16 %v3774, %v3772
    %v3861 = vpack.c.b16 %v3777, %v3775
    %v3862 = vpack.c.b16 %v3778, %v3776
    %v3863 = vpack.c.b16 %v3781, %v3779
    %v3864 = vpack.c.b16 %v3782, %v3780
    %v3865 = vpack.c.b16 %v3785, %v3783
    %v3866 = vpack.c.b16 %v3786, %v3784
    %v3867 = vpack.c.b16 %v3789, %v3787
    %v3868 = vpack.c.b16 %v3790, %v3788
    %v3869 = vpack.c.b16 %v3793, %v3791
    %v3870 = vpack.c.b16 %v3794, %v3792
    %v3871 = vpack.c.b16 %v3797, %v3795
    %v3872 = vpack.c.b16 %v3798, %v3796
    %v3873 = vpack.c.b16 %v3801, %v3799
    %v3874 = vpack.c.b16 %v3802, %v3800
    %v3875 = vpack.c.b16 %v3805, %v3803
    %v3876 = vpack.c.b16 %v3806, %v3804
    %v3877 = vpack.c.b16 %v3809, %v3807
    %v3878 = vpack.c.b16 %v3810, %v3808
    %v3879 = vpack.c.b16 %v3813, %v3811
    %v3880 = vpack.c.b16 %v3814, %v3812
    %v3881 = vpack.c.b16 %v3817, %v3815
    %v3882 = vpack.c.b16 %v3818, %v3816
    %v3883 = vpack.c.b16 %v3821, %v3819
    %v3884 = vpack.c.b16 %v3822, %v3820
    %v3885 = vpack.c.b16 %v3825, %v3823
    %v3886 = vpack.c.b16 %v3826, %v3824
    %v3887 = vpack.c.b16 %v3829, %v3827
    %v3888 = vpack.c.b16 %v3830, %v3828
    %v3889 = vpack.c.b16 %v3833, %v3831
    %v3890 = vpack.c.b16 %v3834, %v3832
    %v3891 = vpack.c.b16 %v3837, %v3835
    %v3892 = vpack.c.b16 %v3838, %v3836
    %v3893 = vpack.c.b16 %v3841, %v3839
    %v3894 = vpack.c.b16 %v3842, %v3840
    %v3895 = vpack.c.b16 %v3845, %v3843
    %v3896 = vpack.c.b16 %v3846, %v3844
    %v3897 = vpack.c.b16 %v3849, %v3847
    %v3898 = vpack.c.b16 %v3850, %v3848
    %3947 = vmatpush.bf16.msra.mxu0 %v3865
    %3948 = vmatpush.bf16.msra.mxu0 %v3863
    %3949 = vmatpush.bf16.msra.mxu0 %v3861
    %3950 = vmatpush.bf16.msra.mxu0 %v3859
    %3951 = vmatpush.bf16.msra.mxu0 %v3857
    %3952 = vmatpush.bf16.msra.mxu0 %v3855
    %3953 = vmatpush.bf16.msra.mxu0 %v3853
    %3954 = vmatpush.bf16.msra.mxu0 %v3851
    %3955 = vmatmul.bf16.gmra.mxu0 %v3650
    %v3956 = vpop.f32.mrf.mxu0
    %v3957 = vadd.f32 %v3703, %v3956
    %v3958 = vpop.f32.mrf.mxu0
    %3959 = vdwg.mxu0
    %3960 = vmatpush.bf16.msra.mxu0 %v3881
    %3961 = vmatpush.bf16.msra.mxu0 %v3879
    %3962 = vmatpush.bf16.msra.mxu0 %v3877
    %3963 = vmatpush.bf16.msra.mxu0 %v3875
    %3964 = vmatpush.bf16.msra.mxu0 %v3873
    %3965 = vmatpush.bf16.msra.mxu0 %v3871
    %3966 = vmatpush.bf16.msra.mxu0 %v3869
    %3967 = vmatpush.bf16.msra.mxu0 %v3867
    %3968 = vmatmul.bf16.gmra.mxu0 %v3651
    %v3969 = vpop.f32.mrf.mxu0
    %v3970 = vadd.f32 %v3957, %v3969
    %v3971 = vpop.f32.mrf.mxu0
    %3972 = vdwg.mxu0
    %3973 = vmatpush.bf16.msra.mxu0 %v3897
    %3974 = vmatpush.bf16.msra.mxu0 %v3895
    %3975 = vmatpush.bf16.msra.mxu0 %v3893
    %3976 = vmatpush.bf16.msra.mxu0 %v3891
    %3977 = vmatpush.bf16.msra.mxu0 %v3889
    %3978 = vmatpush.bf16.msra.mxu0 %v3887
    %3979 = vmatpush.bf16.msra.mxu0 %v3885
    %3980 = vmatpush.bf16.msra.mxu0 %v3883
    %3981 = vmatmul.bf16.gmra.mxu0 %v3652
    %v3982 = vpop.f32.mrf.mxu0
    %v3983 = vadd.f32 %v3970, %v3982
    %v3984 = vpop.f32.mrf.mxu0
    %3985 = vdwg.mxu0
    %3986 = vmatpush.bf16.msra.mxu0 %v3866
    %3987 = vmatpush.bf16.msra.mxu0 %v3864
    %3988 = vmatpush.bf16.msra.mxu0 %v3862
    %3989 = vmatpush.bf16.msra.mxu0 %v3860
    %3990 = vmatpush.bf16.msra.mxu0 %v3858
    %3991 = vmatpush.bf16.msra.mxu0 %v3856
    %3992 = vmatpush.bf16.msra.mxu0 %v3854
    %3993 = vmatpush.bf16.msra.mxu0 %v3852
    %3994 = vmatmul.bf16.gmra.mxu0 %v3650
    %v3995 = vpop.f32.mrf.mxu0
    %v3996 = vadd.f32 %v3704, %v3995
    %v3997 = vpop.f32.mrf.mxu0
    %3998 = vdwg.mxu0
    %3999 = vmatpush.bf16.msra.mxu0 %v3882
    %4000 = vmatpush.bf16.msra.mxu0 %v3880
    %4001 = vmatpush.bf16.msra.mxu0 %v3878
    %4002 = vmatpush.bf16.msra.mxu0 %v3876
    %4003 = vmatpush.bf16.msra.mxu0 %v3874
    %4004 = vmatpush.bf16.msra.mxu0 %v3872
    %4005 = vmatpush.bf16.msra.mxu0 %v3870
    %4006 = vmatpush.bf16.msra.mxu0 %v3868
    %4007 = vmatmul.bf16.gmra.mxu0 %v3651
    %v4008 = vpop.f32.mrf.mxu0
    %v4009 = vadd.f32 %v3996, %v4008
    %v4010 = vpop.f32.mrf.mxu0
    %4011 = vdwg.mxu0
    %4012 = vmatpush.bf16.msra.mxu0 %v3898
    %4013 = vmatpush.bf16.msra.mxu0 %v3896
    %4014 = vmatpush.bf16.msra.mxu0 %v3894
    %4015 = vmatpush.bf16.msra.mxu0 %v3892
    %4016 = vmatpush.bf16.msra.mxu0 %v3890
    %4017 = vmatpush.bf16.msra.mxu0 %v3888
    %4018 = vmatpush.bf16.msra.mxu0 %v3886
    %4019 = vmatpush.bf16.msra.mxu0 %v3884
    %4020 = vmatmul.bf16.gmra.mxu0 %v3652
    %v4021 = vpop.f32.mrf.mxu0
    %v4022 = vadd.f32 %v4009, %v4021
    %v4023 = vpop.f32.mrf.mxu0
    %4024 = vdwg.mxu0
    %v4025 = vmax.f32 %v3983, 0.0
    %v4026 = vmax.f32 %v4022, 0.0
    %v4027 = vpack.c.bf16 %v4025, %v4025
    %v4028 = vpack.c.bf16 %v4026, %v4026
    %v4029 = vld [vmem:[#allocation13] sm:$0xf]
    %v4030 = vld [vmem:[#allocation13 + $0x4] sm:$0xf]
    %v4031 = vld [vmem:[#allocation13 + $0x8] sm:$0xf]
    %v4032 = vld [vmem:[#allocation13 + $0xc] sm:$0xf]
    %v4033 = vld [vmem:[#allocation13 + $0x10] sm:$0xf]
    %v4034 = vld [vmem:[#allocation13 + $0x14] sm:$0xf]
    %v4035 = vld [vmem:[#allocation13 + $0x18] sm:$0xf]
    %v4036 = vld [vmem:[#allocation13 + $0x1c] sm:$0xf]
    %v4037 = vld [vmem:[#allocation13 + $0x20] sm:$0xf]
    %v4038 = vld [vmem:[#allocation13 + $0x24] sm:$0xf]
    %v4039 = vld [vmem:[#allocation13 + $0x28] sm:$0xf]
    %v4040 = vld [vmem:[#allocation13 + $0x2c] sm:$0xf]
    %v4041 = vld [vmem:[#allocation13 + $0x30] sm:$0xf]
    %v4042 = vld [vmem:[#allocation13 + $0x34] sm:$0xf]
    %v4043 = vld [vmem:[#allocation13 + $0x38] sm:$0xf]
    %v4044 = vld [vmem:[#allocation13 + $0x3c] sm:$0xf]
    %v4045 = vld [vmem:[#allocation13 + $0x40] sm:$0xf]
    %v4046 = vld [vmem:[#allocation13 + $0x44] sm:$0xf]
    %v4047 = vld [vmem:[#allocation13 + $0x48] sm:$0xf]
    %v4048 = vld [vmem:[#allocation13 + $0x4c] sm:$0xf]
    %v4049 = vld [vmem:[#allocation13 + $0x50] sm:$0xf]
    %v4050 = vld [vmem:[#allocation13 + $0x54] sm:$0xf]
    %v4051 = vld [vmem:[#allocation13 + $0x58] sm:$0xf]
    %v4052 = vld [vmem:[#allocation13 + $0x5c] sm:$0xf]
    %v4053 = vld [vmem:[#allocation13 + $0x60] sm:$0xf]
    %v4054 = vld [vmem:[#allocation13 + $0x64] sm:$0xf]
    %v4055 = vld [vmem:[#allocation13 + $0x68] sm:$0xf]
    %v4056 = vld [vmem:[#allocation13 + $0x6c] sm:$0xf]
    %v4057 = vld [vmem:[#allocation13 + $0x70] sm:$0xf]
    %v4058 = vld [vmem:[#allocation13 + $0x74] sm:$0xf]
    %v4059 = vld [vmem:[#allocation13 + $0x78] sm:$0xf]
    %v4060 = vld [vmem:[#allocation13 + $0x7c] sm:$0xf]
    %v4061 = vld [vmem:[#allocation15] sm:$0x1]
    %v4063 = vperm.slane %v4061, 0
    %v4097 = vunpack.c.l.b16 %v4029
    %v4098 = vunpack.c.l.b16 %v4030
    %v4099 = vunpack.c.l.b16 %v4031
    %v4100 = vunpack.c.l.b16 %v4032
    %v4101 = vunpack.c.l.b16 %v4033
    %v4102 = vunpack.c.l.b16 %v4034
    %v4103 = vunpack.c.l.b16 %v4035
    %v4104 = vunpack.c.l.b16 %v4036
    %v4105 = vunpack.c.l.b16 %v4037
    %v4106 = vunpack.c.l.b16 %v4038
    %v4107 = vunpack.c.l.b16 %v4039
    %v4108 = vunpack.c.l.b16 %v4040
    %v4109 = vunpack.c.l.b16 %v4041
    %v4110 = vunpack.c.l.b16 %v4042
    %v4111 = vunpack.c.l.b16 %v4043
    %v4112 = vunpack.c.l.b16 %v4044
    %v4113 = vunpack.c.l.b16 %v4045
    %v4114 = vunpack.c.l.b16 %v4046
    %v4115 = vunpack.c.l.b16 %v4047
    %v4116 = vunpack.c.l.b16 %v4048
    %v4117 = vunpack.c.l.b16 %v4049
    %v4118 = vunpack.c.l.b16 %v4050
    %v4119 = vunpack.c.l.b16 %v4051
    %v4120 = vunpack.c.l.b16 %v4052
    %v4121 = vunpack.c.l.b16 %v4053
    %v4122 = vunpack.c.l.b16 %v4054
    %v4123 = vunpack.c.l.b16 %v4055
    %v4124 = vunpack.c.l.b16 %v4056
    %v4125 = vunpack.c.l.b16 %v4057
    %v4126 = vunpack.c.l.b16 %v4058
    %v4127 = vunpack.c.l.b16 %v4059
    %v4128 = vunpack.c.l.b16 %v4060
    %v4129 = vpack.c.b16 %v4098, %v4097
    %v4130 = vpack.c.b16 %v4100, %v4099
    %v4131 = vpack.c.b16 %v4102, %v4101
    %v4132 = vpack.c.b16 %v4104, %v4103
    %v4133 = vpack.c.b16 %v4106, %v4105
    %v4134 = vpack.c.b16 %v4108, %v4107
    %v4135 = vpack.c.b16 %v4110, %v4109
    %v4136 = vpack.c.b16 %v4112, %v4111
    %v4137 = vpack.c.b16 %v4114, %v4113
    %v4138 = vpack.c.b16 %v4116, %v4115
    %v4139 = vpack.c.b16 %v4118, %v4117
    %v4140 = vpack.c.b16 %v4120, %v4119
    %v4141 = vpack.c.b16 %v4122, %v4121
    %v4142 = vpack.c.b16 %v4124, %v4123
    %v4143 = vpack.c.b16 %v4126, %v4125
    %v4144 = vpack.c.b16 %v4128, %v4127
    %4161 = vmatpush.bf16.msra.mxu0 %v4136
    %4162 = vmatpush.bf16.msra.mxu0 %v4135
    %4163 = vmatpush.bf16.msra.mxu0 %v4134
    %4164 = vmatpush.bf16.msra.mxu0 %v4133
    %4165 = vmatpush.bf16.msra.mxu0 %v4132
    %4166 = vmatpush.bf16.msra.mxu0 %v4131
    %4167 = vmatpush.bf16.msra.mxu0 %v4130
    %4168 = vmatpush.bf16.msra.mxu0 %v4129
    %4169 = vmatmul.bf16.gmra.mxu0 %v4027
    %v4170 = vpop.f32.mrf.mxu0
    %v4171 = vadd.f32 %v4063, %v4170
    %v4172 = vpop.f32.mrf.mxu0
    %4173 = vdwg.mxu0
    %4174 = vmatpush.bf16.msra.mxu0 %v4144
    %4175 = vmatpush.bf16.msra.mxu0 %v4143
    %4176 = vmatpush.bf16.msra.mxu0 %v4142
    %4177 = vmatpush.bf16.msra.mxu0 %v4141
    %4178 = vmatpush.bf16.msra.mxu0 %v4140
    %4179 = vmatpush.bf16.msra.mxu0 %v4139
    %4180 = vmatpush.bf16.msra.mxu0 %v4138
    %4181 = vmatpush.bf16.msra.mxu0 %v4137
    %4182 = vmatmul.bf16.gmra.mxu0 %v4028
    %v4183 = vpop.f32.mrf.mxu0
    %v4184 = vadd.f32 %v4171, %v4183
    %v4185 = vpop.f32.mrf.mxu0
    %4186 = vdwg.mxu0
    %v4187 = vpack.c.bf16 %v4184, %v4184
    %4188 = vst [vmem:[%s9] sm:$0xf] %v4187
    // Predicated region
    $region74: #{chest_xray_classifier_forward.1} parent=1 // pred_check
      _
    $region75: #{chest_xray_classifier_forward.1} parent=1 // pred_check_branch
      %4190 = sbr.rel (0) target = $region77
    $region76: #{chest_xray_classifier_forward.1} parent=1 // pred_region
      _
    $region77: #{chest_xray_classifier_forward.1} parent=1 // pred_fallthru
      _
    // Predicated region
    $region78: #{chest_xray_classifier_forward.1} parent=1 // pred_check
      _
    $region79: #{chest_xray_classifier_forward.1} parent=1 // pred_check_branch
      %4192 = sbr.rel (0) target = $region81
    $region80: #{chest_xray_classifier_forward.1} parent=1 // pred_region
      _
    $region81: #{chest_xray_classifier_forward.1} parent=1 // pred_fallthru
      _
    %4193 = vsyncpa [#allocation3], 1
    %4194 = vsyncpa [#allocation5], 1
    %4195 = vsyncpa [#allocation8], 1
    %4196 = vsyncpa [#allocation11], 1
    %4197 = vsyncpa [#allocation14], 1

</llo_original>
